<compile_context>
chip_gen: v7x
topology: tpu7x:2x2x1
jax: 0.10.0
libtpu: 0.0.40
codegen_flags: <defaults>
</compile_context>

<pallas_src>
import math

import jax
import jax.numpy as jnp
from jax.experimental import pallas as pl
from jax.experimental.pallas import tpu as pltpu

KW = 4
STRIDE = 2
PAD = 1
LEAKY = 0.1

_TAPS = ((0, 0), (0, 1), (1, 0), (1, 1))   # (row, col) offsets of the 2x2 s2d conv


def _out_size(h):
    return (h + 2 * PAD - KW) // STRIDE + 1


# --------------------------- XLA-side layout prep ---------------------------

def _pad_s2d(x_nhwc):
    """Zero-pad (pad=1) + 2x2 space-to-depth.

    (N, H, W, C) -> (N, OH+1, OW+1, 4*C), channel order (row-parity, col-parity, C).
    A 4x4 / stride-2 / pad-1 conv on x is exactly a 2x2 / stride-1 conv on the
    result, so the kernel's im2col "gather" becomes 4 contiguous slices.
    """
    N, H, W, C = x_nhwc.shape
    OH, OW = _out_size(H), _out_size(W)
    ph = 2 * (OH + 1) - 1 - H            # bottom pad so padded H == 2*(OH+1)
    pw = 2 * (OW + 1) - 1 - W
    xp = jnp.pad(x_nhwc, ((0, 0), (PAD, ph), (PAD, pw), (0, 0)))
    s = xp.reshape(N, OH + 1, 2, OW + 1, 2, C)
    s = jnp.transpose(s, (0, 1, 3, 2, 4, 5)).reshape(N, OH + 1, OW + 1, 4 * C)
    return s, OH, OW


def _s2d_weight(w):
    """(4, 4, Cin, Cout) conv weight -> (4, 4*Cin, Cout) per-tap matrices."""
    kh, kw, cin, cout = w.shape
    assert kh == KW and kw == KW
    w6 = w.reshape(2, 2, 2, 2, cin, cout)          # (dr, rp, dc, cp, cin, cout)
    w6 = jnp.transpose(w6, (0, 2, 1, 3, 4, 5))     # (dr, dc, rp, cp, cin, cout)
    return w6.reshape(4, 4 * cin, cout)


# ------------------------------ Pallas kernels ------------------------------

def _conv_leaky(s, w_s, bias, OH, OW, leaky):
    """Fused Conv2d(k=4, s=2, p=1) + bias + LeakyReLU.

    s:    (N, OH+1, OW+1, 4*Cin) bf16   (padded + space-to-depth activation)
    w_s:  (4, 4*Cin, Cout)       bf16
    bias: (1, Cout)              f32
    returns (N, OH*OW, Cout)     bf16
    """
    N, OHp, OWp, C4 = s.shape
    cout = w_s.shape[-1]
    M = OH * OW

    def kernel(s_ref, w_ref, b_ref, o_ref):
        acc = jnp.zeros((M, cout), jnp.float32)
        for t, (dr, dc) in enumerate(_TAPS):
            if OW % 8 == 0:
                tap = s_ref[0, dr:dr + OH, dc:dc + OW, :].reshape(M, C4)
            else:
                # tiny late-layer maps: build the tap row-by-row (sublane concat)
                tap = jnp.concatenate(
                    [s_ref[0, dr + r, dc:dc + OW, :] for r in range(OH)], axis=0)
            acc += jnp.dot(tap, w_ref[t], preferred_element_type=jnp.float32)
        acc += b_ref[...]
        acc = jnp.maximum(acc, leaky * acc)            # LeakyReLU, single vmax
        o_ref[0] = acc.astype(o_ref.dtype)

    # Real per-step working-set byte count (+2x headroom), 48 MiB v7x-safe cap.
    est = (2 * OHp * OWp * C4 * 2          # double-buffered s tile   (bf16)
           + 4 * C4 * cout * 2             # resident weights         (bf16)
           + cout * 4                      # resident bias            (f32)
           + 2 * M * cout * 2              # double-buffered out tile (bf16)
           + M * cout * 4                  # f32 accumulator
           + 2 * M * C4 * 2)               # tap temporaries          (bf16)
    vmem_limit = int(min(48 << 20, max(16 << 20, 2 * est)))

    return pl.pallas_call(
        kernel,
        out_shape=jax.ShapeDtypeStruct((N, M, cout), jnp.bfloat16),
        grid_spec=pltpu.PrefetchScalarGridSpec(
            num_scalar_prefetch=0,
            grid=(N,),
            in_specs=[
                pl.BlockSpec((1, OHp, OWp, C4), lambda n: (n, 0, 0, 0)),
                pl.BlockSpec((4, C4, cout), lambda n: (0, 0, 0)),   # resident weight
                pl.BlockSpec((1, cout), lambda n: (0, 0)),          # resident bias
            ],
            out_specs=pl.BlockSpec((1, M, cout), lambda n: (n, 0, 0)),
        ),
        compiler_params=pltpu.CompilerParams(
            dimension_semantics=("parallel",),
            vmem_limit_bytes=vmem_limit,
        ),
    )(s, w_s, bias)


def _final_conv_mean(s, w_s, bias, OH, OW):
    """Final Conv2d(->1, k=4, s=2, p=1) (no activation) fused with the spatial
    mean `out.view(N, 1, -1).mean(dim=2)`.

    mean_p(conv(x)) == sum_t mean_p(tap_t) . w_t + b     (linearity)

    s: (N, OH+1, OW+1, 4*Cin) bf16    w_s: (4, 4*Cin, 1) f32    bias: (1, 1) f32
    returns (N, 1) f32
    """
    N, OHp, OWp, C4 = s.shape
    w_flat = w_s.reshape(1, 4 * C4).astype(jnp.float32)   # (1, 16*Cin), tap-major
    inv_p = 1.0 / float(OH * OW)

    def kernel(s_ref, w_ref, b_ref, o_ref):
        sv = s_ref[...].astype(jnp.float32)                # (N, OH+1, OW+1, 4C)
        means = []
        for dr, dc in _TAPS:
            tap = sv[:, dr:dr + OH, dc:dc + OW, :]
            means.append(jnp.sum(jnp.sum(tap, axis=2), axis=1) * inv_p)  # (N, 4C)
        m = jnp.concatenate(means, axis=-1)                # (N, 16*Cin)
        o_ref[...] = jnp.sum(m * w_ref[...], axis=-1, keepdims=True) + b_ref[...]

    return pl.pallas_call(
        kernel,
        out_shape=jax.ShapeDtypeStruct((N, 1), jnp.float32),
    )(s, w_flat, bias)


# ------------------------------- JAX glue -----------------------------------

def make_params(key, input_nc, ndf, n_layers):
    """Deterministic example weights. Layout (kh, kw, Cin, Cout).
    (A PyTorch Conv2d weight (Cout, Cin, kh, kw) maps via transpose(2, 3, 1, 0).)"""
    chans = [input_nc, ndf]
    for n in range(1, n_layers):
        chans.append(ndf * min(2 ** n, 8))
    chans.append(ndf * min(2 ** n_layers, 8))
    chans.append(1)
    params = []
    for cin, cout in zip(chans[:-1], chans[1:]):
        key, k1, k2 = jax.random.split(key, 3)
        bound = 1.0 / math.sqrt(cin * KW * KW)       # kaiming-uniform-like fan-in bound
        w = jax.random.uniform(k1, (KW, KW, cin, cout), jnp.float32, -bound, bound)
        b = jax.random.uniform(k2, (cout,), jnp.float32, -bound, bound)
        params.append((w, b))
    return params


def discriminator_forward(x_nchw, params, leaky=LEAKY):
    # NCHW -> NHWC, bf16 activations (MXU-native); accumulation / epilogue in f32.
    x = jnp.transpose(x_nchw, (0, 2, 3, 1)).astype(jnp.bfloat16)
    N = x.shape[0]

    # All convs except the last: conv + LeakyReLU (all stride 2, per the module).
    for w, b in params[:-1]:
        s, OH, OW = _pad_s2d(x)
        w_s = _s2d_weight(w).astype(jnp.bfloat16)
        bias = b.reshape(1, -1).astype(jnp.float32)
        y = _conv_leaky(s, w_s, bias, OH, OW, leaky)       # (N, OH*OW, Cout)
        x = y.reshape(N, OH, OW, -1)                       # metadata-only reshape

    # Final conv (Cout=1, no activation) fused with out.view(N,1,-1).mean(dim=2).
    w, b = params[-1]
    s, OH, OW = _pad_s2d(x)
    w_s = _s2d_weight(w)                                   # f32, Cout=1
    bias = b.reshape(1, 1).astype(jnp.float32)
    return _final_conv_mean(s, w_s, bias, OH, OW)


# --------------------------------- main --------------------------------------

if __name__ == "__main__":
    key = jax.random.PRNGKey(0)
    k_x, k_p = jax.random.split(key)

    batch, input_nc, spatial = 2, 4, 32        # spatial=32 survives 5 stride-2 convs
    ndf, n_layers = 8, 3

    x = jax.random.normal(k_x, (batch, input_nc, spatial, spatial), jnp.float32)
    params = make_params(k_p, input_nc, ndf, n_layers)

    fwd = jax.jit(discriminator_forward)
    out = jax.block_until_ready(fwd(x, params))
    assert out.shape == (batch, 1), out.shape
    assert bool(jnp.all(jnp.isfinite(out)))
    print("KERNEL_OK")
</pallas_src>

<mosaic_0001>
module attributes {stable_mosaic.version = 11 : i64} {
  func.func @kernel(%arg0: i32, %arg1: memref<1x17x17x16xbf16, #tpu.memory_space<vmem>>, %arg2: memref<4x16x8xbf16, #tpu.memory_space<vmem>>, %arg3: memref<1x8xf32, #tpu.memory_space<vmem>>, %arg4: memref<1x256x8xbf16, #tpu.memory_space<vmem>>) attributes {dimension_semantics = [#tpu.dimension_semantics<parallel>], iteration_bounds = array<i64: 2>, scalar_prefetch = 0 : i64, scratch_operands = 0 : i64, tpu.core_type = #tpu.core_type<tc>, window_params = [{transform_indices = @transform_0, window_bounds = array<i64: 1, 17, 17, 16>}, {pipeline_mode = #tpu.pipeline_mode<synchronous>, transform_indices = @transform_1, window_bounds = array<i64: 4, 16, 8>}, {pipeline_mode = #tpu.pipeline_mode<synchronous>, transform_indices = @transform_2, window_bounds = array<i64: 1, 8>}, {transform_indices = @transform_3, window_bounds = array<i64: 1, 256, 8>}]} {
    %cst = arith.constant 0.000000e+00 : f32
    %0 = vector.broadcast %cst : f32 to vector<256x8xf32>
    %c0 = arith.constant 0 : index
    %c0_0 = arith.constant 0 : index
    %c0_1 = arith.constant 0 : index
    %c0_2 = arith.constant 0 : index
    %1 = vector.load %arg1[%c0, %c0_0, %c0_1, %c0_2] : memref<1x17x17x16xbf16, #tpu.memory_space<vmem>>, vector<1x16x16x16xbf16>
    %2 = vector.shape_cast %1 : vector<1x16x16x16xbf16> to vector<16x16x16xbf16>
    %3 = vector.shape_cast %2 : vector<16x16x16xbf16> to vector<256x16xbf16>
    %c0_3 = arith.constant 0 : index
    %c0_4 = arith.constant 0 : index
    %c0_5 = arith.constant 0 : index
    %4 = vector.load %arg2[%c0_3, %c0_4, %c0_5] : memref<4x16x8xbf16, #tpu.memory_space<vmem>>, vector<1x16x8xbf16>
    %5 = vector.shape_cast %4 : vector<1x16x8xbf16> to vector<16x8xbf16>
    %cst_6 = arith.constant dense<0.000000e+00> : vector<256x8xf32>
    %6 = tpu.matmul %3, %5, %cst_6 {dimension_numbers = #tpu.dot_dimension_numbers<[1], [0], [0], [1], [0, 0, 1, 1], [], []>} : vector<256x16xbf16>, vector<16x8xbf16>, vector<256x8xf32> -> vector<256x8xf32>
    %7 = arith.addf %0, %6 : vector<256x8xf32>
    %c0_7 = arith.constant 0 : index
    %c0_8 = arith.constant 0 : index
    %c1 = arith.constant 1 : index
    %c0_9 = arith.constant 0 : index
    %8 = vector.load %arg1[%c0_7, %c0_8, %c1, %c0_9] : memref<1x17x17x16xbf16, #tpu.memory_space<vmem>>, vector<1x16x16x16xbf16>
    %9 = vector.shape_cast %8 : vector<1x16x16x16xbf16> to vector<16x16x16xbf16>
    %10 = vector.shape_cast %9 : vector<16x16x16xbf16> to vector<256x16xbf16>
    %c1_10 = arith.constant 1 : index
    %c0_11 = arith.constant 0 : index
    %c0_12 = arith.constant 0 : index
    %11 = vector.load %arg2[%c1_10, %c0_11, %c0_12] : memref<4x16x8xbf16, #tpu.memory_space<vmem>>, vector<1x16x8xbf16>
    %12 = vector.shape_cast %11 : vector<1x16x8xbf16> to vector<16x8xbf16>
    %cst_13 = arith.constant dense<0.000000e+00> : vector<256x8xf32>
    %13 = tpu.matmul %10, %12, %cst_13 {dimension_numbers = #tpu.dot_dimension_numbers<[1], [0], [0], [1], [0, 0, 1, 1], [], []>} : vector<256x16xbf16>, vector<16x8xbf16>, vector<256x8xf32> -> vector<256x8xf32>
    %14 = arith.addf %7, %13 : vector<256x8xf32>
    %c0_14 = arith.constant 0 : index
    %c1_15 = arith.constant 1 : index
    %c0_16 = arith.constant 0 : index
    %c0_17 = arith.constant 0 : index
    %15 = vector.load %arg1[%c0_14, %c1_15, %c0_16, %c0_17] : memref<1x17x17x16xbf16, #tpu.memory_space<vmem>>, vector<1x16x16x16xbf16>
    %16 = vector.shape_cast %15 : vector<1x16x16x16xbf16> to vector<16x16x16xbf16>
    %17 = vector.shape_cast %16 : vector<16x16x16xbf16> to vector<256x16xbf16>
    %c2 = arith.constant 2 : index
    %c0_18 = arith.constant 0 : index
    %c0_19 = arith.constant 0 : index
    %18 = vector.load %arg2[%c2, %c0_18, %c0_19] : memref<4x16x8xbf16, #tpu.memory_space<vmem>>, vector<1x16x8xbf16>
    %19 = vector.shape_cast %18 : vector<1x16x8xbf16> to vector<16x8xbf16>
    %cst_20 = arith.constant dense<0.000000e+00> : vector<256x8xf32>
    %20 = tpu.matmul %17, %19, %cst_20 {dimension_numbers = #tpu.dot_dimension_numbers<[1], [0], [0], [1], [0, 0, 1, 1], [], []>} : vector<256x16xbf16>, vector<16x8xbf16>, vector<256x8xf32> -> vector<256x8xf32>
    %21 = arith.addf %14, %20 : vector<256x8xf32>
    %c0_21 = arith.constant 0 : index
    %c1_22 = arith.constant 1 : index
    %c1_23 = arith.constant 1 : index
    %c0_24 = arith.constant 0 : index
    %22 = vector.load %arg1[%c0_21, %c1_22, %c1_23, %c0_24] : memref<1x17x17x16xbf16, #tpu.memory_space<vmem>>, vector<1x16x16x16xbf16>
    %23 = vector.shape_cast %22 : vector<1x16x16x16xbf16> to vector<16x16x16xbf16>
    %24 = vector.shape_cast %23 : vector<16x16x16xbf16> to vector<256x16xbf16>
    %c3 = arith.constant 3 : index
    %c0_25 = arith.constant 0 : index
    %c0_26 = arith.constant 0 : index
    %25 = vector.load %arg2[%c3, %c0_25, %c0_26] : memref<4x16x8xbf16, #tpu.memory_space<vmem>>, vector<1x16x8xbf16>
    %26 = vector.shape_cast %25 : vector<1x16x8xbf16> to vector<16x8xbf16>
    %cst_27 = arith.constant dense<0.000000e+00> : vector<256x8xf32>
    %27 = tpu.matmul %24, %26, %cst_27 {dimension_numbers = #tpu.dot_dimension_numbers<[1], [0], [0], [1], [0, 0, 1, 1], [], []>} : vector<256x16xbf16>, vector<16x8xbf16>, vector<256x8xf32> -> vector<256x8xf32>
    %28 = arith.addf %21, %27 : vector<256x8xf32>
    %c0_28 = arith.constant 0 : index
    %c0_29 = arith.constant 0 : index
    %29 = vector.load %arg3[%c0_28, %c0_29] : memref<1x8xf32, #tpu.memory_space<vmem>>, vector<1x8xf32>
    %30 = vector.broadcast %29 : vector<1x8xf32> to vector<256x8xf32>
    %31 = arith.addf %28, %30 : vector<256x8xf32>
    %cst_30 = arith.constant 1.000000e-01 : f32
    %32 = vector.broadcast %cst_30 : f32 to vector<256x8xf32>
    %33 = arith.mulf %32, %31 : vector<256x8xf32>
    %34 = arith.maximumf %31, %33 : vector<256x8xf32>
    %35 = arith.truncf %34 : vector<256x8xf32> to vector<256x8xbf16>
    %c0_31 = arith.constant 0 : index
    %c0_32 = arith.constant 0 : index
    %c0_33 = arith.constant 0 : index
    %36 = vector.load %arg4[%c0_31, %c0_32, %c0_33] : memref<1x256x8xbf16, #tpu.memory_space<vmem>>, vector<1x256x8xbf16>
    %37 = vector.shape_cast %36 : vector<1x256x8xbf16> to vector<256x8xbf16>
    %38 = vector.shape_cast %35 : vector<256x8xbf16> to vector<1x256x8xbf16>
    tpu.vector_store %arg4[%c0_31, %c0_32, %c0_33], %38 {strides = array<i32>} : memref<1x256x8xbf16, #tpu.memory_space<vmem>>, vector<1x256x8xbf16>,
    return
  }
  func.func @transform_0(%arg0: i32) -> (i32, i32, i32, i32) {
    %c0_i32 = arith.constant 0 : i32
    %c0_i32_0 = arith.constant 0 : i32
    %c0_i32_1 = arith.constant 0 : i32
    %c0_i32_2 = arith.constant 0 : i32
    return %arg0, %c0_i32, %c0_i32_0, %c0_i32_1 : i32, i32, i32, i32
  }
  func.func @transform_1(%arg0: i32) -> (i32, i32, i32) {
    %c0_i32 = arith.constant 0 : i32
    %c0_i32_0 = arith.constant 0 : i32
    %c0_i32_1 = arith.constant 0 : i32
    %c0_i32_2 = arith.constant 0 : i32
    return %c0_i32, %c0_i32_0, %c0_i32_1 : i32, i32, i32
  }
  func.func @transform_2(%arg0: i32) -> (i32, i32) {
    %c0_i32 = arith.constant 0 : i32
    %c0_i32_0 = arith.constant 0 : i32
    %c0_i32_1 = arith.constant 0 : i32
    return %c0_i32, %c0_i32_0 : i32, i32
  }
  func.func @transform_3(%arg0: i32) -> (i32, i32, i32) {
    %c0_i32 = arith.constant 0 : i32
    %c0_i32_0 = arith.constant 0 : i32
    %c0_i32_1 = arith.constant 0 : i32
    return %arg0, %c0_i32, %c0_i32_0 : i32, i32, i32
  }
}

module attributes {stable_mosaic.version = 11 : i64} {
  func.func @kernel(%arg0: i32, %arg1: memref<1x9x9x32xbf16, #tpu.memory_space<vmem>>, %arg2: memref<4x32x16xbf16, #tpu.memory_space<vmem>>, %arg3: memref<1x16xf32, #tpu.memory_space<vmem>>, %arg4: memref<1x64x16xbf16, #tpu.memory_space<vmem>>) attributes {dimension_semantics = [#tpu.dimension_semantics<parallel>], iteration_bounds = array<i64: 2>, scalar_prefetch = 0 : i64, scratch_operands = 0 : i64, tpu.core_type = #tpu.core_type<tc>, window_params = [{transform_indices = @transform_0, window_bounds = array<i64: 1, 9, 9, 32>}, {pipeline_mode = #tpu.pipeline_mode<synchronous>, transform_indices = @transform_1, window_bounds = array<i64: 4, 32, 16>}, {pipeline_mode = #tpu.pipeline_mode<synchronous>, transform_indices = @transform_2, window_bounds = array<i64: 1, 16>}, {transform_indices = @transform_3, window_bounds = array<i64: 1, 64, 16>}]} {
    %cst = arith.constant 0.000000e+00 : f32
    %0 = vector.broadcast %cst : f32 to vector<64x16xf32>
    %c0 = arith.constant 0 : index
    %c0_0 = arith.constant 0 : index
    %c0_1 = arith.constant 0 : index
    %c0_2 = arith.constant 0 : index
    %1 = vector.load %arg1[%c0, %c0_0, %c0_1, %c0_2] : memref<1x9x9x32xbf16, #tpu.memory_space<vmem>>, vector<1x8x8x32xbf16>
    %2 = vector.shape_cast %1 : vector<1x8x8x32xbf16> to vector<8x8x32xbf16>
    %3 = vector.shape_cast %2 : vector<8x8x32xbf16> to vector<64x32xbf16>
    %c0_3 = arith.constant 0 : index
    %c0_4 = arith.constant 0 : index
    %c0_5 = arith.constant 0 : index
    %4 = vector.load %arg2[%c0_3, %c0_4, %c0_5] : memref<4x32x16xbf16, #tpu.memory_space<vmem>>, vector<1x32x16xbf16>
    %5 = vector.shape_cast %4 : vector<1x32x16xbf16> to vector<32x16xbf16>
    %cst_6 = arith.constant dense<0.000000e+00> : vector<64x16xf32>
    %6 = tpu.matmul %3, %5, %cst_6 {dimension_numbers = #tpu.dot_dimension_numbers<[1], [0], [0], [1], [0, 0, 1, 1], [], []>} : vector<64x32xbf16>, vector<32x16xbf16>, vector<64x16xf32> -> vector<64x16xf32>
    %7 = arith.addf %0, %6 : vector<64x16xf32>
    %c0_7 = arith.constant 0 : index
    %c0_8 = arith.constant 0 : index
    %c1 = arith.constant 1 : index
    %c0_9 = arith.constant 0 : index
    %8 = vector.load %arg1[%c0_7, %c0_8, %c1, %c0_9] : memref<1x9x9x32xbf16, #tpu.memory_space<vmem>>, vector<1x8x8x32xbf16>
    %9 = vector.shape_cast %8 : vector<1x8x8x32xbf16> to vector<8x8x32xbf16>
    %10 = vector.shape_cast %9 : vector<8x8x32xbf16> to vector<64x32xbf16>
    %c1_10 = arith.constant 1 : index
    %c0_11 = arith.constant 0 : index
    %c0_12 = arith.constant 0 : index
    %11 = vector.load %arg2[%c1_10, %c0_11, %c0_12] : memref<4x32x16xbf16, #tpu.memory_space<vmem>>, vector<1x32x16xbf16>
    %12 = vector.shape_cast %11 : vector<1x32x16xbf16> to vector<32x16xbf16>
    %cst_13 = arith.constant dense<0.000000e+00> : vector<64x16xf32>
    %13 = tpu.matmul %10, %12, %cst_13 {dimension_numbers = #tpu.dot_dimension_numbers<[1], [0], [0], [1], [0, 0, 1, 1], [], []>} : vector<64x32xbf16>, vector<32x16xbf16>, vector<64x16xf32> -> vector<64x16xf32>
    %14 = arith.addf %7, %13 : vector<64x16xf32>
    %c0_14 = arith.constant 0 : index
    %c1_15 = arith.constant 1 : index
    %c0_16 = arith.constant 0 : index
    %c0_17 = arith.constant 0 : index
    %15 = vector.load %arg1[%c0_14, %c1_15, %c0_16, %c0_17] : memref<1x9x9x32xbf16, #tpu.memory_space<vmem>>, vector<1x8x8x32xbf16>
    %16 = vector.shape_cast %15 : vector<1x8x8x32xbf16> to vector<8x8x32xbf16>
    %17 = vector.shape_cast %16 : vector<8x8x32xbf16> to vector<64x32xbf16>
    %c2 = arith.constant 2 : index
    %c0_18 = arith.constant 0 : index
    %c0_19 = arith.constant 0 : index
    %18 = vector.load %arg2[%c2, %c0_18, %c0_19] : memref<4x32x16xbf16, #tpu.memory_space<vmem>>, vector<1x32x16xbf16>
    %19 = vector.shape_cast %18 : vector<1x32x16xbf16> to vector<32x16xbf16>
    %cst_20 = arith.constant dense<0.000000e+00> : vector<64x16xf32>
    %20 = tpu.matmul %17, %19, %cst_20 {dimension_numbers = #tpu.dot_dimension_numbers<[1], [0], [0], [1], [0, 0, 1, 1], [], []>} : vector<64x32xbf16>, vector<32x16xbf16>, vector<64x16xf32> -> vector<64x16xf32>
    %21 = arith.addf %14, %20 : vector<64x16xf32>
    %c0_21 = arith.constant 0 : index
    %c1_22 = arith.constant 1 : index
    %c1_23 = arith.constant 1 : index
    %c0_24 = arith.constant 0 : index
    %22 = vector.load %arg1[%c0_21, %c1_22, %c1_23, %c0_24] : memref<1x9x9x32xbf16, #tpu.memory_space<vmem>>, vector<1x8x8x32xbf16>
    %23 = vector.shape_cast %22 : vector<1x8x8x32xbf16> to vector<8x8x32xbf16>
    %24 = vector.shape_cast %23 : vector<8x8x32xbf16> to vector<64x32xbf16>
    %c3 = arith.constant 3 : index
    %c0_25 = arith.constant 0 : index
    %c0_26 = arith.constant 0 : index
    %25 = vector.load %arg2[%c3, %c0_25, %c0_26] : memref<4x32x16xbf16, #tpu.memory_space<vmem>>, vector<1x32x16xbf16>
    %26 = vector.shape_cast %25 : vector<1x32x16xbf16> to vector<32x16xbf16>
    %cst_27 = arith.constant dense<0.000000e+00> : vector<64x16xf32>
    %27 = tpu.matmul %24, %26, %cst_27 {dimension_numbers = #tpu.dot_dimension_numbers<[1], [0], [0], [1], [0, 0, 1, 1], [], []>} : vector<64x32xbf16>, vector<32x16xbf16>, vector<64x16xf32> -> vector<64x16xf32>
    %28 = arith.addf %21, %27 : vector<64x16xf32>
    %c0_28 = arith.constant 0 : index
    %c0_29 = arith.constant 0 : index
    %29 = vector.load %arg3[%c0_28, %c0_29] : memref<1x16xf32, #tpu.memory_space<vmem>>, vector<1x16xf32>
    %30 = vector.broadcast %29 : vector<1x16xf32> to vector<64x16xf32>
    %31 = arith.addf %28, %30 : vector<64x16xf32>
    %cst_30 = arith.constant 1.000000e-01 : f32
    %32 = vector.broadcast %cst_30 : f32 to vector<64x16xf32>
    %33 = arith.mulf %32, %31 : vector<64x16xf32>
    %34 = arith.maximumf %31, %33 : vector<64x16xf32>
    %35 = arith.truncf %34 : vector<64x16xf32> to vector<64x16xbf16>
    %c0_31 = arith.constant 0 : index
    %c0_32 = arith.constant 0 : index
    %c0_33 = arith.constant 0 : index
    %36 = vector.load %arg4[%c0_31, %c0_32, %c0_33] : memref<1x64x16xbf16, #tpu.memory_space<vmem>>, vector<1x64x16xbf16>
    %37 = vector.shape_cast %36 : vector<1x64x16xbf16> to vector<64x16xbf16>
    %38 = vector.shape_cast %35 : vector<64x16xbf16> to vector<1x64x16xbf16>
    tpu.vector_store %arg4[%c0_31, %c0_32, %c0_33], %38 {strides = array<i32>} : memref<1x64x16xbf16, #tpu.memory_space<vmem>>, vector<1x64x16xbf16>,
    return
  }
  func.func @transform_0(%arg0: i32) -> (i32, i32, i32, i32) {
    %c0_i32 = arith.constant 0 : i32
    %c0_i32_0 = arith.constant 0 : i32
    %c0_i32_1 = arith.constant 0 : i32
    %c0_i32_2 = arith.constant 0 : i32
    return %arg0, %c0_i32, %c0_i32_0, %c0_i32_1 : i32, i32, i32, i32
  }
  func.func @transform_1(%arg0: i32) -> (i32, i32, i32) {
    %c0_i32 = arith.constant 0 : i32
    %c0_i32_0 = arith.constant 0 : i32
    %c0_i32_1 = arith.constant 0 : i32
    %c0_i32_2 = arith.constant 0 : i32
    return %c0_i32, %c0_i32_0, %c0_i32_1 : i32, i32, i32
  }
  func.func @transform_2(%arg0: i32) -> (i32, i32) {
    %c0_i32 = arith.constant 0 : i32
    %c0_i32_0 = arith.constant 0 : i32
    %c0_i32_1 = arith.constant 0 : i32
    return %c0_i32, %c0_i32_0 : i32, i32
  }
  func.func @transform_3(%arg0: i32) -> (i32, i32, i32) {
    %c0_i32 = arith.constant 0 : i32
    %c0_i32_0 = arith.constant 0 : i32
    %c0_i32_1 = arith.constant 0 : i32
    return %arg0, %c0_i32, %c0_i32_0 : i32, i32, i32
  }
}

module attributes {stable_mosaic.version = 11 : i64} {
  func.func @kernel(%arg0: i32, %arg1: memref<1x5x5x64xbf16, #tpu.memory_space<vmem>>, %arg2: memref<4x64x32xbf16, #tpu.memory_space<vmem>>, %arg3: memref<1x32xf32, #tpu.memory_space<vmem>>, %arg4: memref<1x16x32xbf16, #tpu.memory_space<vmem>>) attributes {dimension_semantics = [#tpu.dimension_semantics<parallel>], iteration_bounds = array<i64: 2>, scalar_prefetch = 0 : i64, scratch_operands = 0 : i64, tpu.core_type = #tpu.core_type<tc>, window_params = [{transform_indices = @transform_0, window_bounds = array<i64: 1, 5, 5, 64>}, {pipeline_mode = #tpu.pipeline_mode<synchronous>, transform_indices = @transform_1, window_bounds = array<i64: 4, 64, 32>}, {pipeline_mode = #tpu.pipeline_mode<synchronous>, transform_indices = @transform_2, window_bounds = array<i64: 1, 32>}, {transform_indices = @transform_3, window_bounds = array<i64: 1, 16, 32>}]} {
    %cst = arith.constant 0.000000e+00 : f32
    %0 = vector.broadcast %cst : f32 to vector<16x32xf32>
    %c0 = arith.constant 0 : index
    %c0_0 = arith.constant 0 : index
    %c0_1 = arith.constant 0 : index
    %c0_2 = arith.constant 0 : index
    %1 = vector.load %arg1[%c0, %c0_0, %c0_1, %c0_2] : memref<1x5x5x64xbf16, #tpu.memory_space<vmem>>, vector<1x1x4x64xbf16>
    %2 = vector.shape_cast %1 : vector<1x1x4x64xbf16> to vector<4x64xbf16>
    %c0_3 = arith.constant 0 : index
    %c1 = arith.constant 1 : index
    %c0_4 = arith.constant 0 : index
    %c0_5 = arith.constant 0 : index
    %3 = vector.load %arg1[%c0_3, %c1, %c0_4, %c0_5] : memref<1x5x5x64xbf16, #tpu.memory_space<vmem>>, vector<1x1x4x64xbf16>
    %4 = vector.shape_cast %3 : vector<1x1x4x64xbf16> to vector<4x64xbf16>
    %c0_6 = arith.constant 0 : index
    %c2 = arith.constant 2 : index
    %c0_7 = arith.constant 0 : index
    %c0_8 = arith.constant 0 : index
    %5 = vector.load %arg1[%c0_6, %c2, %c0_7, %c0_8] : memref<1x5x5x64xbf16, #tpu.memory_space<vmem>>, vector<1x1x4x64xbf16>
    %6 = vector.shape_cast %5 : vector<1x1x4x64xbf16> to vector<4x64xbf16>
    %c0_9 = arith.constant 0 : index
    %c3 = arith.constant 3 : index
    %c0_10 = arith.constant 0 : index
    %c0_11 = arith.constant 0 : index
    %7 = vector.load %arg1[%c0_9, %c3, %c0_10, %c0_11] : memref<1x5x5x64xbf16, #tpu.memory_space<vmem>>, vector<1x1x4x64xbf16>
    %8 = vector.shape_cast %7 : vector<1x1x4x64xbf16> to vector<4x64xbf16>
    %9 = tpu.concatenate %2, %4, %6, %8 in 0 : vector<4x64xbf16>, vector<4x64xbf16>, vector<4x64xbf16>, vector<4x64xbf16> -> vector<16x64xbf16>
    %c0_12 = arith.constant 0 : index
    %c0_13 = arith.constant 0 : index
    %c0_14 = arith.constant 0 : index
    %10 = vector.load %arg2[%c0_12, %c0_13, %c0_14] : memref<4x64x32xbf16, #tpu.memory_space<vmem>>, vector<1x64x32xbf16>
    %11 = vector.shape_cast %10 : vector<1x64x32xbf16> to vector<64x32xbf16>
    %cst_15 = arith.constant dense<0.000000e+00> : vector<16x32xf32>
    %12 = tpu.matmul %9, %11, %cst_15 {dimension_numbers = #tpu.dot_dimension_numbers<[1], [0], [0], [1], [0, 0, 1, 1], [], []>} : vector<16x64xbf16>, vector<64x32xbf16>, vector<16x32xf32> -> vector<16x32xf32>
    %13 = arith.addf %0, %12 : vector<16x32xf32>
    %c0_16 = arith.constant 0 : index
    %c0_17 = arith.constant 0 : index
    %c1_18 = arith.constant 1 : index
    %c0_19 = arith.constant 0 : index
    %14 = vector.load %arg1[%c0_16, %c0_17, %c1_18, %c0_19] : memref<1x5x5x64xbf16, #tpu.memory_space<vmem>>, vector<1x1x4x64xbf16>
    %15 = vector.shape_cast %14 : vector<1x1x4x64xbf16> to vector<4x64xbf16>
    %c0_20 = arith.constant 0 : index
    %c1_21 = arith.constant 1 : index
    %c1_22 = arith.constant 1 : index
    %c0_23 = arith.constant 0 : index
    %16 = vector.load %arg1[%c0_20, %c1_21, %c1_22, %c0_23] : memref<1x5x5x64xbf16, #tpu.memory_space<vmem>>, vector<1x1x4x64xbf16>
    %17 = vector.shape_cast %16 : vector<1x1x4x64xbf16> to vector<4x64xbf16>
    %c0_24 = arith.constant 0 : index
    %c2_25 = arith.constant 2 : index
    %c1_26 = arith.constant 1 : index
    %c0_27 = arith.constant 0 : index
    %18 = vector.load %arg1[%c0_24, %c2_25, %c1_26, %c0_27] : memref<1x5x5x64xbf16, #tpu.memory_space<vmem>>, vector<1x1x4x64xbf16>
    %19 = vector.shape_cast %18 : vector<1x1x4x64xbf16> to vector<4x64xbf16>
    %c0_28 = arith.constant 0 : index
    %c3_29 = arith.constant 3 : index
    %c1_30 = arith.constant 1 : index
    %c0_31 = arith.constant 0 : index
    %20 = vector.load %arg1[%c0_28, %c3_29, %c1_30, %c0_31] : memref<1x5x5x64xbf16, #tpu.memory_space<vmem>>, vector<1x1x4x64xbf16>
    %21 = vector.shape_cast %20 : vector<1x1x4x64xbf16> to vector<4x64xbf16>
    %22 = tpu.concatenate %15, %17, %19, %21 in 0 : vector<4x64xbf16>, vector<4x64xbf16>, vector<4x64xbf16>, vector<4x64xbf16> -> vector<16x64xbf16>
    %c1_32 = arith.constant 1 : index
    %c0_33 = arith.constant 0 : index
    %c0_34 = arith.constant 0 : index
    %23 = vector.load %arg2[%c1_32, %c0_33, %c0_34] : memref<4x64x32xbf16, #tpu.memory_space<vmem>>, vector<1x64x32xbf16>
    %24 = vector.shape_cast %23 : vector<1x64x32xbf16> to vector<64x32xbf16>
    %cst_35 = arith.constant dense<0.000000e+00> : vector<16x32xf32>
    %25 = tpu.matmul %22, %24, %cst_35 {dimension_numbers = #tpu.dot_dimension_numbers<[1], [0], [0], [1], [0, 0, 1, 1], [], []>} : vector<16x64xbf16>, vector<64x32xbf16>, vector<16x32xf32> -> vector<16x32xf32>
    %26 = arith.addf %13, %25 : vector<16x32xf32>
    %c0_36 = arith.constant 0 : index
    %c1_37 = arith.constant 1 : index
    %c0_38 = arith.constant 0 : index
    %c0_39 = arith.constant 0 : index
    %27 = vector.load %arg1[%c0_36, %c1_37, %c0_38, %c0_39] : memref<1x5x5x64xbf16, #tpu.memory_space<vmem>>, vector<1x1x4x64xbf16>
    %28 = vector.shape_cast %27 : vector<1x1x4x64xbf16> to vector<4x64xbf16>
    %c0_40 = arith.constant 0 : index
    %c2_41 = arith.constant 2 : index
    %c0_42 = arith.constant 0 : index
    %c0_43 = arith.constant 0 : index
    %29 = vector.load %arg1[%c0_40, %c2_41, %c0_42, %c0_43] : memref<1x5x5x64xbf16, #tpu.memory_space<vmem>>, vector<1x1x4x64xbf16>
    %30 = vector.shape_cast %29 : vector<1x1x4x64xbf16> to vector<4x64xbf16>
    %c0_44 = arith.constant 0 : index
    %c3_45 = arith.constant 3 : index
    %c0_46 = arith.constant 0 : index
    %c0_47 = arith.constant 0 : index
    %31 = vector.load %arg1[%c0_44, %c3_45, %c0_46, %c0_47] : memref<1x5x5x64xbf16, #tpu.memory_space<vmem>>, vector<1x1x4x64xbf16>
    %32 = vector.shape_cast %31 : vector<1x1x4x64xbf16> to vector<4x64xbf16>
    %c0_48 = arith.constant 0 : index
    %c4 = arith.constant 4 : index
    %c0_49 = arith.constant 0 : index
    %c0_50 = arith.constant 0 : index
    %33 = vector.load %arg1[%c0_48, %c4, %c0_49, %c0_50] : memref<1x5x5x64xbf16, #tpu.memory_space<vmem>>, vector<1x1x4x64xbf16>
    %34 = vector.shape_cast %33 : vector<1x1x4x64xbf16> to vector<4x64xbf16>
    %35 = tpu.concatenate %28, %30, %32, %34 in 0 : vector<4x64xbf16>, vector<4x64xbf16>, vector<4x64xbf16>, vector<4x64xbf16> -> vector<16x64xbf16>
    %c2_51 = arith.constant 2 : index
    %c0_52 = arith.constant 0 : index
    %c0_53 = arith.constant 0 : index
    %36 = vector.load %arg2[%c2_51, %c0_52, %c0_53] : memref<4x64x32xbf16, #tpu.memory_space<vmem>>, vector<1x64x32xbf16>
    %37 = vector.shape_cast %36 : vector<1x64x32xbf16> to vector<64x32xbf16>
    %cst_54 = arith.constant dense<0.000000e+00> : vector<16x32xf32>
    %38 = tpu.matmul %35, %37, %cst_54 {dimension_numbers = #tpu.dot_dimension_numbers<[1], [0], [0], [1], [0, 0, 1, 1], [], []>} : vector<16x64xbf16>, vector<64x32xbf16>, vector<16x32xf32> -> vector<16x32xf32>
    %39 = arith.addf %26, %38 : vector<16x32xf32>
    %c0_55 = arith.constant 0 : index
    %c1_56 = arith.constant 1 : index
    %c1_57 = arith.constant 1 : index
    %c0_58 = arith.constant 0 : index
    %40 = vector.load %arg1[%c0_55, %c1_56, %c1_57, %c0_58] : memref<1x5x5x64xbf16, #tpu.memory_space<vmem>>, vector<1x1x4x64xbf16>
    %41 = vector.shape_cast %40 : vector<1x1x4x64xbf16> to vector<4x64xbf16>
    %c0_59 = arith.constant 0 : index
    %c2_60 = arith.constant 2 : index
    %c1_61 = arith.constant 1 : index
    %c0_62 = arith.constant 0 : index
    %42 = vector.load %arg1[%c0_59, %c2_60, %c1_61, %c0_62] : memref<1x5x5x64xbf16, #tpu.memory_space<vmem>>, vector<1x1x4x64xbf16>
    %43 = vector.shape_cast %42 : vector<1x1x4x64xbf16> to vector<4x64xbf16>
    %c0_63 = arith.constant 0 : index
    %c3_64 = arith.constant 3 : index
    %c1_65 = arith.constant 1 : index
    %c0_66 = arith.constant 0 : index
    %44 = vector.load %arg1[%c0_63, %c3_64, %c1_65, %c0_66] : memref<1x5x5x64xbf16, #tpu.memory_space<vmem>>, vector<1x1x4x64xbf16>
    %45 = vector.shape_cast %44 : vector<1x1x4x64xbf16> to vector<4x64xbf16>
    %c0_67 = arith.constant 0 : index
    %c4_68 = arith.constant 4 : index
    %c1_69 = arith.constant 1 : index
    %c0_70 = arith.constant 0 : index
    %46 = vector.load %arg1[%c0_67, %c4_68, %c1_69, %c0_70] : memref<1x5x5x64xbf16, #tpu.memory_space<vmem>>, vector<1x1x4x64xbf16>
    %47 = vector.shape_cast %46 : vector<1x1x4x64xbf16> to vector<4x64xbf16>
    %48 = tpu.concatenate %41, %43, %45, %47 in 0 : vector<4x64xbf16>, vector<4x64xbf16>, vector<4x64xbf16>, vector<4x64xbf16> -> vector<16x64xbf16>
    %c3_71 = arith.constant 3 : index
    %c0_72 = arith.constant 0 : index
    %c0_73 = arith.constant 0 : index
    %49 = vector.load %arg2[%c3_71, %c0_72, %c0_73] : memref<4x64x32xbf16, #tpu.memory_space<vmem>>, vector<1x64x32xbf16>
    %50 = vector.shape_cast %49 : vector<1x64x32xbf16> to vector<64x32xbf16>
    %cst_74 = arith.constant dense<0.000000e+00> : vector<16x32xf32>
    %51 = tpu.matmul %48, %50, %cst_74 {dimension_numbers = #tpu.dot_dimension_numbers<[1], [0], [0], [1], [0, 0, 1, 1], [], []>} : vector<16x64xbf16>, vector<64x32xbf16>, vector<16x32xf32> -> vector<16x32xf32>
    %52 = arith.addf %39, %51 : vector<16x32xf32>
    %c0_75 = arith.constant 0 : index
    %c0_76 = arith.constant 0 : index
    %53 = vector.load %arg3[%c0_75, %c0_76] : memref<1x32xf32, #tpu.memory_space<vmem>>, vector<1x32xf32>
    %54 = vector.broadcast %53 : vector<1x32xf32> to vector<16x32xf32>
    %55 = arith.addf %52, %54 : vector<16x32xf32>
    %cst_77 = arith.constant 1.000000e-01 : f32
    %56 = vector.broadcast %cst_77 : f32 to vector<16x32xf32>
    %57 = arith.mulf %56, %55 : vector<16x32xf32>
    %58 = arith.maximumf %55, %57 : vector<16x32xf32>
    %59 = arith.truncf %58 : vector<16x32xf32> to vector<16x32xbf16>
    %c0_78 = arith.constant 0 : index
    %c0_79 = arith.constant 0 : index
    %c0_80 = arith.constant 0 : index
    %60 = vector.load %arg4[%c0_78, %c0_79, %c0_80] : memref<1x16x32xbf16, #tpu.memory_space<vmem>>, vector<1x16x32xbf16>
    %61 = vector.shape_cast %60 : vector<1x16x32xbf16> to vector<16x32xbf16>
    %62 = vector.shape_cast %59 : vector<16x32xbf16> to vector<1x16x32xbf16>
    tpu.vector_store %arg4[%c0_78, %c0_79, %c0_80], %62 {strides = array<i32>} : memref<1x16x32xbf16, #tpu.memory_space<vmem>>, vector<1x16x32xbf16>,
    return
  }
  func.func @transform_0(%arg0: i32) -> (i32, i32, i32, i32) {
    %c0_i32 = arith.constant 0 : i32
    %c0_i32_0 = arith.constant 0 : i32
    %c0_i32_1 = arith.constant 0 : i32
    %c0_i32_2 = arith.constant 0 : i32
    return %arg0, %c0_i32, %c0_i32_0, %c0_i32_1 : i32, i32, i32, i32
  }
  func.func @transform_1(%arg0: i32) -> (i32, i32, i32) {
    %c0_i32 = arith.constant 0 : i32
    %c0_i32_0 = arith.constant 0 : i32
    %c0_i32_1 = arith.constant 0 : i32
    %c0_i32_2 = arith.constant 0 : i32
    return %c0_i32, %c0_i32_0, %c0_i32_1 : i32, i32, i32
  }
  func.func @transform_2(%arg0: i32) -> (i32, i32) {
    %c0_i32 = arith.constant 0 : i32
    %c0_i32_0 = arith.constant 0 : i32
    %c0_i32_1 = arith.constant 0 : i32
    return %c0_i32, %c0_i32_0 : i32, i32
  }
  func.func @transform_3(%arg0: i32) -> (i32, i32, i32) {
    %c0_i32 = arith.constant 0 : i32
    %c0_i32_0 = arith.constant 0 : i32
    %c0_i32_1 = arith.constant 0 : i32
    return %arg0, %c0_i32, %c0_i32_0 : i32, i32, i32
  }
}

module attributes {stable_mosaic.version = 11 : i64} {
  func.func @kernel(%arg0: i32, %arg1: memref<1x3x3x128xbf16, #tpu.memory_space<vmem>>, %arg2: memref<4x128x64xbf16, #tpu.memory_space<vmem>>, %arg3: memref<1x64xf32, #tpu.memory_space<vmem>>, %arg4: memref<1x4x64xbf16, #tpu.memory_space<vmem>>) attributes {dimension_semantics = [#tpu.dimension_semantics<parallel>], iteration_bounds = array<i64: 2>, scalar_prefetch = 0 : i64, scratch_operands = 0 : i64, tpu.core_type = #tpu.core_type<tc>, window_params = [{transform_indices = @transform_0, window_bounds = array<i64: 1, 3, 3, 128>}, {pipeline_mode = #tpu.pipeline_mode<synchronous>, transform_indices = @transform_1, window_bounds = array<i64: 4, 128, 64>}, {pipeline_mode = #tpu.pipeline_mode<synchronous>, transform_indices = @transform_2, window_bounds = array<i64: 1, 64>}, {transform_indices = @transform_3, window_bounds = array<i64: 1, 4, 64>}]} {
    %cst = arith.constant 0.000000e+00 : f32
    %0 = vector.broadcast %cst : f32 to vector<4x64xf32>
    %c0 = arith.constant 0 : index
    %c0_0 = arith.constant 0 : index
    %c0_1 = arith.constant 0 : index
    %c0_2 = arith.constant 0 : index
    %1 = vector.load %arg1[%c0, %c0_0, %c0_1, %c0_2] : memref<1x3x3x128xbf16, #tpu.memory_space<vmem>>, vector<1x1x2x128xbf16>
    %2 = vector.shape_cast %1 : vector<1x1x2x128xbf16> to vector<2x128xbf16>
    %c0_3 = arith.constant 0 : index
    %c1 = arith.constant 1 : index
    %c0_4 = arith.constant 0 : index
    %c0_5 = arith.constant 0 : index
    %3 = vector.load %arg1[%c0_3, %c1, %c0_4, %c0_5] : memref<1x3x3x128xbf16, #tpu.memory_space<vmem>>, vector<1x1x2x128xbf16>
    %4 = vector.shape_cast %3 : vector<1x1x2x128xbf16> to vector<2x128xbf16>
    %5 = tpu.concatenate %2, %4 in 0 : vector<2x128xbf16>, vector<2x128xbf16> -> vector<4x128xbf16>
    %c0_6 = arith.constant 0 : index
    %c0_7 = arith.constant 0 : index
    %c0_8 = arith.constant 0 : index
    %6 = vector.load %arg2[%c0_6, %c0_7, %c0_8] : memref<4x128x64xbf16, #tpu.memory_space<vmem>>, vector<1x128x64xbf16>
    %7 = vector.shape_cast %6 : vector<1x128x64xbf16> to vector<128x64xbf16>
    %cst_9 = arith.constant dense<0.000000e+00> : vector<4x64xf32>
    %8 = tpu.matmul %5, %7, %cst_9 {dimension_numbers = #tpu.dot_dimension_numbers<[1], [0], [0], [1], [0, 0, 1, 1], [], []>} : vector<4x128xbf16>, vector<128x64xbf16>, vector<4x64xf32> -> vector<4x64xf32>
    %9 = arith.addf %0, %8 : vector<4x64xf32>
    %c0_10 = arith.constant 0 : index
    %c0_11 = arith.constant 0 : index
    %c1_12 = arith.constant 1 : index
    %c0_13 = arith.constant 0 : index
    %10 = vector.load %arg1[%c0_10, %c0_11, %c1_12, %c0_13] : memref<1x3x3x128xbf16, #tpu.memory_space<vmem>>, vector<1x1x2x128xbf16>
    %11 = vector.shape_cast %10 : vector<1x1x2x128xbf16> to vector<2x128xbf16>
    %c0_14 = arith.constant 0 : index
    %c1_15 = arith.constant 1 : index
    %c1_16 = arith.constant 1 : index
    %c0_17 = arith.constant 0 : index
    %12 = vector.load %arg1[%c0_14, %c1_15, %c1_16, %c0_17] : memref<1x3x3x128xbf16, #tpu.memory_space<vmem>>, vector<1x1x2x128xbf16>
    %13 = vector.shape_cast %12 : vector<1x1x2x128xbf16> to vector<2x128xbf16>
    %14 = tpu.concatenate %11, %13 in 0 : vector<2x128xbf16>, vector<2x128xbf16> -> vector<4x128xbf16>
    %c1_18 = arith.constant 1 : index
    %c0_19 = arith.constant 0 : index
    %c0_20 = arith.constant 0 : index
    %15 = vector.load %arg2[%c1_18, %c0_19, %c0_20] : memref<4x128x64xbf16, #tpu.memory_space<vmem>>, vector<1x128x64xbf16>
    %16 = vector.shape_cast %15 : vector<1x128x64xbf16> to vector<128x64xbf16>
    %cst_21 = arith.constant dense<0.000000e+00> : vector<4x64xf32>
    %17 = tpu.matmul %14, %16, %cst_21 {dimension_numbers = #tpu.dot_dimension_numbers<[1], [0], [0], [1], [0, 0, 1, 1], [], []>} : vector<4x128xbf16>, vector<128x64xbf16>, vector<4x64xf32> -> vector<4x64xf32>
    %18 = arith.addf %9, %17 : vector<4x64xf32>
    %c0_22 = arith.constant 0 : index
    %c1_23 = arith.constant 1 : index
    %c0_24 = arith.constant 0 : index
    %c0_25 = arith.constant 0 : index
    %19 = vector.load %arg1[%c0_22, %c1_23, %c0_24, %c0_25] : memref<1x3x3x128xbf16, #tpu.memory_space<vmem>>, vector<1x1x2x128xbf16>
    %20 = vector.shape_cast %19 : vector<1x1x2x128xbf16> to vector<2x128xbf16>
    %c0_26 = arith.constant 0 : index
    %c2 = arith.constant 2 : index
    %c0_27 = arith.constant 0 : index
    %c0_28 = arith.constant 0 : index
    %21 = vector.load %arg1[%c0_26, %c2, %c0_27, %c0_28] : memref<1x3x3x128xbf16, #tpu.memory_space<vmem>>, vector<1x1x2x128xbf16>
    %22 = vector.shape_cast %21 : vector<1x1x2x128xbf16> to vector<2x128xbf16>
    %23 = tpu.concatenate %20, %22 in 0 : vector<2x128xbf16>, vector<2x128xbf16> -> vector<4x128xbf16>
    %c2_29 = arith.constant 2 : index
    %c0_30 = arith.constant 0 : index
    %c0_31 = arith.constant 0 : index
    %24 = vector.load %arg2[%c2_29, %c0_30, %c0_31] : memref<4x128x64xbf16, #tpu.memory_space<vmem>>, vector<1x128x64xbf16>
    %25 = vector.shape_cast %24 : vector<1x128x64xbf16> to vector<128x64xbf16>
    %cst_32 = arith.constant dense<0.000000e+00> : vector<4x64xf32>
    %26 = tpu.matmul %23, %25, %cst_32 {dimension_numbers = #tpu.dot_dimension_numbers<[1], [0], [0], [1], [0, 0, 1, 1], [], []>} : vector<4x128xbf16>, vector<128x64xbf16>, vector<4x64xf32> -> vector<4x64xf32>
    %27 = arith.addf %18, %26 : vector<4x64xf32>
    %c0_33 = arith.constant 0 : index
    %c1_34 = arith.constant 1 : index
    %c1_35 = arith.constant 1 : index
    %c0_36 = arith.constant 0 : index
    %28 = vector.load %arg1[%c0_33, %c1_34, %c1_35, %c0_36] : memref<1x3x3x128xbf16, #tpu.memory_space<vmem>>, vector<1x1x2x128xbf16>
    %29 = vector.shape_cast %28 : vector<1x1x2x128xbf16> to vector<2x128xbf16>
    %c0_37 = arith.constant 0 : index
    %c2_38 = arith.constant 2 : index
    %c1_39 = arith.constant 1 : index
    %c0_40 = arith.constant 0 : index
    %30 = vector.load %arg1[%c0_37, %c2_38, %c1_39, %c0_40] : memref<1x3x3x128xbf16, #tpu.memory_space<vmem>>, vector<1x1x2x128xbf16>
    %31 = vector.shape_cast %30 : vector<1x1x2x128xbf16> to vector<2x128xbf16>
    %32 = tpu.concatenate %29, %31 in 0 : vector<2x128xbf16>, vector<2x128xbf16> -> vector<4x128xbf16>
    %c3 = arith.constant 3 : index
    %c0_41 = arith.constant 0 : index
    %c0_42 = arith.constant 0 : index
    %33 = vector.load %arg2[%c3, %c0_41, %c0_42] : memref<4x128x64xbf16, #tpu.memory_space<vmem>>, vector<1x128x64xbf16>
    %34 = vector.shape_cast %33 : vector<1x128x64xbf16> to vector<128x64xbf16>
    %cst_43 = arith.constant dense<0.000000e+00> : vector<4x64xf32>
    %35 = tpu.matmul %32, %34, %cst_43 {dimension_numbers = #tpu.dot_dimension_numbers<[1], [0], [0], [1], [0, 0, 1, 1], [], []>} : vector<4x128xbf16>, vector<128x64xbf16>, vector<4x64xf32> -> vector<4x64xf32>
    %36 = arith.addf %27, %35 : vector<4x64xf32>
    %c0_44 = arith.constant 0 : index
    %c0_45 = arith.constant 0 : index
    %37 = vector.load %arg3[%c0_44, %c0_45] : memref<1x64xf32, #tpu.memory_space<vmem>>, vector<1x64xf32>
    %38 = vector.broadcast %37 : vector<1x64xf32> to vector<4x64xf32>
    %39 = arith.addf %36, %38 : vector<4x64xf32>
    %cst_46 = arith.constant 1.000000e-01 : f32
    %40 = vector.broadcast %cst_46 : f32 to vector<4x64xf32>
    %41 = arith.mulf %40, %39 : vector<4x64xf32>
    %42 = arith.maximumf %39, %41 : vector<4x64xf32>
    %43 = arith.truncf %42 : vector<4x64xf32> to vector<4x64xbf16>
    %c0_47 = arith.constant 0 : index
    %c0_48 = arith.constant 0 : index
    %c0_49 = arith.constant 0 : index
    %44 = vector.load %arg4[%c0_47, %c0_48, %c0_49] : memref<1x4x64xbf16, #tpu.memory_space<vmem>>, vector<1x4x64xbf16>
    %45 = vector.shape_cast %44 : vector<1x4x64xbf16> to vector<4x64xbf16>
    %46 = vector.shape_cast %43 : vector<4x64xbf16> to vector<1x4x64xbf16>
    tpu.vector_store %arg4[%c0_47, %c0_48, %c0_49], %46 {strides = array<i32>} : memref<1x4x64xbf16, #tpu.memory_space<vmem>>, vector<1x4x64xbf16>,
    return
  }
  func.func @transform_0(%arg0: i32) -> (i32, i32, i32, i32) {
    %c0_i32 = arith.constant 0 : i32
    %c0_i32_0 = arith.constant 0 : i32
    %c0_i32_1 = arith.constant 0 : i32
    %c0_i32_2 = arith.constant 0 : i32
    return %arg0, %c0_i32, %c0_i32_0, %c0_i32_1 : i32, i32, i32, i32
  }
  func.func @transform_1(%arg0: i32) -> (i32, i32, i32) {
    %c0_i32 = arith.constant 0 : i32
    %c0_i32_0 = arith.constant 0 : i32
    %c0_i32_1 = arith.constant 0 : i32
    %c0_i32_2 = arith.constant 0 : i32
    return %c0_i32, %c0_i32_0, %c0_i32_1 : i32, i32, i32
  }
  func.func @transform_2(%arg0: i32) -> (i32, i32) {
    %c0_i32 = arith.constant 0 : i32
    %c0_i32_0 = arith.constant 0 : i32
    %c0_i32_1 = arith.constant 0 : i32
    return %c0_i32, %c0_i32_0 : i32, i32
  }
  func.func @transform_3(%arg0: i32) -> (i32, i32, i32) {
    %c0_i32 = arith.constant 0 : i32
    %c0_i32_0 = arith.constant 0 : i32
    %c0_i32_1 = arith.constant 0 : i32
    return %arg0, %c0_i32, %c0_i32_0 : i32, i32, i32
  }
}

module attributes {stable_mosaic.version = 11 : i64} {
  func.func @kernel(%arg0: memref<2x2x2x256xbf16, #tpu.memory_space<vmem>>, %arg1: memref<1x1024xf32, #tpu.memory_space<vmem>>, %arg2: memref<1x1xf32, #tpu.memory_space<vmem>>, %arg3: memref<2x1xf32, #tpu.memory_space<vmem>>) attributes {dimension_semantics = [], scalar_prefetch = 0 : i64, scratch_operands = 0 : i64, tpu.core_type = #tpu.core_type<tc>} {
    %c0 = arith.constant 0 : index
    %c0_0 = arith.constant 0 : index
    %c0_1 = arith.constant 0 : index
    %c0_2 = arith.constant 0 : index
    %0 = vector.load %arg0[%c0, %c0_0, %c0_1, %c0_2] : memref<2x2x2x256xbf16, #tpu.memory_space<vmem>>, vector<2x2x2x256xbf16>
    %1 = arith.extf %0 : vector<2x2x2x256xbf16> to vector<2x2x2x256xf32>
    %2 = vector.extract_strided_slice %1 {offsets = [0, 0, 0, 0], sizes = [2, 1, 1, 256], strides = [1, 1, 1, 1]} : vector<2x2x2x256xf32> to vector<2x1x1x256xf32>
    %cst = arith.constant dense<0.000000e+00> : vector<2x1x256xf32>
    %3 = vector.multi_reduction <add>, %2, %cst [2] : vector<2x1x1x256xf32> to vector<2x1x256xf32>
    %cst_3 = arith.constant dense<0.000000e+00> : vector<2x256xf32>
    %4 = vector.multi_reduction <add>, %3, %cst_3 [1] : vector<2x1x256xf32> to vector<2x256xf32>
    %cst_4 = arith.constant 1.000000e+00 : f32
    %5 = vector.broadcast %cst_4 : f32 to vector<2x256xf32>
    %6 = arith.mulf %4, %5 : vector<2x256xf32>
    %7 = vector.extract_strided_slice %1 {offsets = [0, 0, 1, 0], sizes = [2, 1, 1, 256], strides = [1, 1, 1, 1]} : vector<2x2x2x256xf32> to vector<2x1x1x256xf32>
    %cst_5 = arith.constant dense<0.000000e+00> : vector<2x1x256xf32>
    %8 = vector.multi_reduction <add>, %7, %cst_5 [2] : vector<2x1x1x256xf32> to vector<2x1x256xf32>
    %cst_6 = arith.constant dense<0.000000e+00> : vector<2x256xf32>
    %9 = vector.multi_reduction <add>, %8, %cst_6 [1] : vector<2x1x256xf32> to vector<2x256xf32>
    %cst_7 = arith.constant 1.000000e+00 : f32
    %10 = vector.broadcast %cst_7 : f32 to vector<2x256xf32>
    %11 = arith.mulf %9, %10 : vector<2x256xf32>
    %12 = vector.extract_strided_slice %1 {offsets = [0, 1, 0, 0], sizes = [2, 1, 1, 256], strides = [1, 1, 1, 1]} : vector<2x2x2x256xf32> to vector<2x1x1x256xf32>
    %cst_8 = arith.constant dense<0.000000e+00> : vector<2x1x256xf32>
    %13 = vector.multi_reduction <add>, %12, %cst_8 [2] : vector<2x1x1x256xf32> to vector<2x1x256xf32>
    %cst_9 = arith.constant dense<0.000000e+00> : vector<2x256xf32>
    %14 = vector.multi_reduction <add>, %13, %cst_9 [1] : vector<2x1x256xf32> to vector<2x256xf32>
    %cst_10 = arith.constant 1.000000e+00 : f32
    %15 = vector.broadcast %cst_10 : f32 to vector<2x256xf32>
    %16 = arith.mulf %14, %15 : vector<2x256xf32>
    %17 = vector.extract_strided_slice %1 {offsets = [0, 1, 1, 0], sizes = [2, 1, 1, 256], strides = [1, 1, 1, 1]} : vector<2x2x2x256xf32> to vector<2x1x1x256xf32>
    %cst_11 = arith.constant dense<0.000000e+00> : vector<2x1x256xf32>
    %18 = vector.multi_reduction <add>, %17, %cst_11 [2] : vector<2x1x1x256xf32> to vector<2x1x256xf32>
    %cst_12 = arith.constant dense<0.000000e+00> : vector<2x256xf32>
    %19 = vector.multi_reduction <add>, %18, %cst_12 [1] : vector<2x1x256xf32> to vector<2x256xf32>
    %cst_13 = arith.constant 1.000000e+00 : f32
    %20 = vector.broadcast %cst_13 : f32 to vector<2x256xf32>
    %21 = arith.mulf %19, %20 : vector<2x256xf32>
    %22 = tpu.concatenate %6, %11, %16, %21 in 1 : vector<2x256xf32>, vector<2x256xf32>, vector<2x256xf32>, vector<2x256xf32> -> vector<2x1024xf32>
    %c0_14 = arith.constant 0 : index
    %c0_15 = arith.constant 0 : index
    %23 = vector.load %arg1[%c0_14, %c0_15] : memref<1x1024xf32, #tpu.memory_space<vmem>>, vector<1x1024xf32>
    %24 = vector.broadcast %23 : vector<1x1024xf32> to vector<2x1024xf32>
    %25 = arith.mulf %22, %24 : vector<2x1024xf32>
    %cst_16 = arith.constant dense<0.000000e+00> : vector<2xf32>
    %26 = vector.multi_reduction <add>, %25, %cst_16 [1] : vector<2x1024xf32> to vector<2xf32>
    %27 = vector.shape_cast %26 : vector<2xf32> to vector<2x1xf32>
    %c0_17 = arith.constant 0 : index
    %c0_18 = arith.constant 0 : index
    %28 = vector.load %arg2[%c0_17, %c0_18] : memref<1x1xf32, #tpu.memory_space<vmem>>, vector<1x1xf32>
    %29 = vector.broadcast %28 : vector<1x1xf32> to vector<2x1xf32>
    %30 = arith.addf %27, %29 : vector<2x1xf32>
    %c0_19 = arith.constant 0 : index
    %c0_20 = arith.constant 0 : index
    %31 = vector.load %arg3[%c0_19, %c0_20] : memref<2x1xf32, #tpu.memory_space<vmem>>, vector<2x1xf32>
    tpu.vector_store %arg3[%c0_19, %c0_20], %30 {strides = array<i32>} : memref<2x1xf32, #tpu.memory_space<vmem>>, vector<2x1xf32>,
    return
  }
}

</mosaic_0001>

<llo_original>
// kernel: discriminator_forward.5
$region0: #{discriminator_forward.5}
  #allocation0 [shape = 'u32[]', space=smem, size = 0x4, offset = 0x4, fixed_abs, tag = 'smem constant byte address 0x4 - core index']
  #allocation1 [shape = 'u32[144,128]{1,0:T(1,128)}', space=vmem, size = 0x12000, scoped, tag = 'internal scratch']
  %s0 = inlined_call_operand.vmem [shape: bf16[2,17,17,16], index: 0, kind: input, shape index: {}]
  %s1 = inlined_call_operand.vmem [shape: bf16[4,16,8], index: 1, kind: input, shape index: {}]
  %s2 = inlined_call_operand.vmem [shape: f32[1,8], index: 2, kind: input, shape index: {}]
  %s3 = inlined_call_operand.vmem [shape: bf16[2,256,8], index: 3, kind: output, shape index: {}]
  %s4 = sld [smem:[#allocation0]]
  $region45: #{discriminator_forward.5} parent=0
    _
  %s6 = ssub.s32 1, %s4
  %s7 = scalar_select 0, %s6, %s4
  loop: start=0, step=1, limit=4
  $region2: #{discriminator_forward.5} parent=0 // loop_pre_header
    _
  $region3: #{discriminator_forward.5} parent=0 // loop_header
    %s9 = sphi 0, %s13
    %p10 = scmp.ge.s32.totalorder %s9, 4
    %s19 = sphi 0, %s21
    %s22 = sphi 0, %s19
    %s23 = sphi 0, %s22
    %s39 = sphi 0, %s23
    %s43 = sphi 0, %s43
    %s45 = sphi 0, %s43
    %s46 = sphi 0, %s45
    %s60 = sphi 0, %s46
    %s64 = sphi 0, %s64
    %s66 = sphi 0, %s64
    %s67 = sphi 0, %s66
    %s81 = sphi 0, %s67
    %s87 = sphi 0, %s89
    %s90 = sphi 0, %s87
    %s91 = sphi 0, %s90
    %s107 = sphi 0, %s91
  $region4: #{discriminator_forward.5} parent=0 // loop_header_branch
    %12 = sbr.rel (%p10) target = $region8
  $region5: #{discriminator_forward.5} parent=0 // loop_body
    %s14 = ssub.s32 %s9, 1
    %s15 = ssub.s32 %s9, 2
    %s16 = sadd.s32 %s9, 1
    %s17 = ssub.s32 %s9, %s16
    %p18 = scmp.eq.s32.totalorder %s17, 0
    %s20 = sadd.s32 %s19, 1
    %s21 = scalar_select %p18, %s19, %s20
    %p24 = pneg %p18
    %p25 = scmp.eq.s32.totalorder %s9, 1
    %p26 = por %p24, %p25
    %p27 = scmp.ne.s32.totalorder %s19, %s22
    %p28 = scmp.eq.s32.totalorder %s9, 0
    %p29 = por %p27, %p28
    %p30 = scmp.ne.s32.totalorder %s19, %s22
    %p31 = scmp.eq.s32.totalorder %s14, 1
    %p32 = por %p30, %p31
    %p33 = scmp.ne.s32.totalorder %s22, %s23
    %p34 = scmp.eq.s32.totalorder %s14, 0
    %p35 = por %p33, %p34
    %p36 = scmp.ne.s32.totalorder %s22, %s23
    %p37 = scmp.eq.s32.totalorder %s15, 1
    %p38 = por %p36, %p37
    %p40 = scmp.ne.s32.totalorder %s23, %s39
    %p41 = scmp.eq.s32.totalorder %s15, 0
    %p42 = por %p40, %p41
    %s44 = sadd.s32 %s43, 1
    %p47 = scmp.eq.s32.totalorder %s9, 1
    %p48 = scmp.ne.s32.totalorder %s43, %s45
    %p49 = scmp.eq.s32.totalorder %s9, 0
    %p50 = por %p48, %p49
    %p51 = scmp.ne.s32.totalorder %s43, %s45
    %p52 = scmp.eq.s32.totalorder %s14, 1
    %p53 = por %p51, %p52
    %p54 = scmp.ne.s32.totalorder %s45, %s46
    %p55 = scmp.eq.s32.totalorder %s14, 0
    %p56 = por %p54, %p55
    %p57 = scmp.ne.s32.totalorder %s45, %s46
    %p58 = scmp.eq.s32.totalorder %s15, 1
    %p59 = por %p57, %p58
    %p61 = scmp.ne.s32.totalorder %s46, %s60
    %p62 = scmp.eq.s32.totalorder %s15, 0
    %p63 = por %p61, %p62
    %s65 = sadd.s32 %s64, 1
    %p68 = scmp.eq.s32.totalorder %s9, 1
    %p69 = scmp.ne.s32.totalorder %s64, %s66
    %p70 = scmp.eq.s32.totalorder %s9, 0
    %p71 = por %p69, %p70
    %p72 = scmp.ne.s32.totalorder %s64, %s66
    %p73 = scmp.eq.s32.totalorder %s14, 1
    %p74 = por %p72, %p73
    %p75 = scmp.ne.s32.totalorder %s66, %s67
    %p76 = scmp.eq.s32.totalorder %s14, 0
    %p77 = por %p75, %p76
    %p78 = scmp.ne.s32.totalorder %s66, %s67
    %p79 = scmp.eq.s32.totalorder %s15, 1
    %p80 = por %p78, %p79
    %p82 = scmp.ne.s32.totalorder %s67, %s81
    %p83 = scmp.eq.s32.totalorder %s15, 0
    %p84 = por %p82, %p83
    %s85 = ssub.s32 %s9, %s16
    %p86 = scmp.eq.s32.totalorder %s85, 0
    %s88 = sadd.s32 %s87, 1
    %s89 = scalar_select %p86, %s87, %s88
    %p92 = pneg %p86
    %p93 = scmp.eq.s32.totalorder %s9, 1
    %p94 = por %p92, %p93
    %p95 = scmp.ne.s32.totalorder %s87, %s90
    %p96 = scmp.eq.s32.totalorder %s9, 0
    %p97 = por %p95, %p96
    %p98 = scmp.ne.s32.totalorder %s87, %s90
    %p99 = scmp.eq.s32.totalorder %s14, 1
    %p100 = por %p98, %p99
    %p101 = scmp.ne.s32.totalorder %s90, %s91
    %p102 = scmp.eq.s32.totalorder %s14, 0
    %p103 = por %p101, %p102
    %p104 = scmp.ne.s32.totalorder %s90, %s91
    %p105 = scmp.eq.s32.totalorder %s15, 1
    %p106 = por %p104, %p105
    %p108 = scmp.ne.s32.totalorder %s91, %s107
    %p109 = scmp.eq.s32.totalorder %s15, 0
    %p110 = por %p108, %p109
    %p111 = scmp.le.s32.totalorder 1, %s9
    %p112 = scmp.lt.s32.totalorder %s9, 3
    %p113 = pnand %p111, %p112
    %p114 = pneg %p113
    // Predicated region
    $region9: #{discriminator_forward.5} parent=5 // pred_check
      _
    $region10: #{discriminator_forward.5} parent=5 // pred_check_branch
      %116 = sbr.rel (%p113) target = $region12
    $region11: #{discriminator_forward.5} parent=5 // pred_region
      %s117 = ssub.s32 %s9, 1
      // Predicated region
      $region13: #{discriminator_forward.5} parent=11 // pred_check
        %p118 = pneg %p56
      $region14: #{discriminator_forward.5} parent=11 // pred_check_branch
        %120 = sbr.rel (%p118) target = $region16
      $region15: #{discriminator_forward.5} parent=11 // pred_region
        _
      $region16: #{discriminator_forward.5} parent=11 // pred_fallthru
        _
      // Predicated region
      $region17: #{discriminator_forward.5} parent=11 // pred_check
        %p121 = pneg %p77
      $region18: #{discriminator_forward.5} parent=11 // pred_check_branch
        %123 = sbr.rel (%p121) target = $region20
      $region19: #{discriminator_forward.5} parent=11 // pred_region
        _
      $region20: #{discriminator_forward.5} parent=11 // pred_fallthru
        _
    $region12: #{discriminator_forward.5} parent=5 // pred_fallthru
      _
    %p124 = scmp.lt.s32.totalorder %s9, 2
    // Predicated region
    $region21: #{discriminator_forward.5} parent=5 // pred_check
      %p125 = pneg %p124
    $region22: #{discriminator_forward.5} parent=5 // pred_check_branch
      %127 = sbr.rel (%p125) target = $region24
    $region23: #{discriminator_forward.5} parent=5 // pred_region
      // Predicated region
      $region25: #{discriminator_forward.5} parent=23 // pred_check
        %p128 = pneg %p29
      $region26: #{discriminator_forward.5} parent=23 // pred_check_branch
        %130 = sbr.rel (%p128) target = $region28
      $region27: #{discriminator_forward.5} parent=23 // pred_region
        %p131 = scmp.lt.s32.totalorder %s9, 1
        %s132 = scalar_select %p131, %s9, 1
        %s133 = smul.addr %s132, 51
        %s134 = smul.addr %s133, 4
        %s135 = scalar_lea.vmem %s0, %s134
      $region28: #{discriminator_forward.5} parent=23 // pred_fallthru
        _
    $region24: #{discriminator_forward.5} parent=5 // pred_fallthru
      _
    %p136 = scmp.le.s32.totalorder 1, %s9
    %p137 = scmp.lt.s32.totalorder %s9, 3
    %p138 = pnand %p136, %p137
    %p139 = pneg %p138
    // Predicated region
    $region29: #{discriminator_forward.5} parent=5 // pred_check
      _
    $region30: #{discriminator_forward.5} parent=5 // pred_check_branch
      %141 = sbr.rel (%p138) target = $region32
    $region31: #{discriminator_forward.5} parent=5 // pred_region
      %s142 = ssub.s32 %s9, 1
      %p143 = scmp.lt.s32.totalorder %s14, 1
      %s144 = scalar_select %p143, %s14, 1
      %s145 = smul.addr %s144, 51
      %s146 = smul.addr %s145, 4
      %s147 = scalar_lea.vmem %s0, %s146
      %p148 = pneg %p35
      %p149 = pneg %p32
      %p150 = pneg %p56
      %p151 = pneg %p53
      %p152 = pneg %p77
      %p153 = pneg %p74
      %p154 = pneg %p103
      %p155 = pneg %p100
      %p156 = scmp.lt.s32.totalorder %s14, 1
      %s157 = scalar_select %p156, %s14, 1
      %s158 = smul.addr %s157, 32
      %s159 = smul.addr %s158, 4
      %s160 = scalar_lea.vmem %s3, %s159
      %p161 = scmp.lt.s32.totalorder %s14, 1
      %s162 = scalar_select %p161, %s14, 1
      %s163 = smul.addr %s162, 51
      %s164 = smul.addr %s163, 4
      %s165 = scalar_lea.vmem %s0, %s164
      %p166 = scmp.lt.s32.totalorder %s14, 1
      %s167 = scalar_select %p166, %s14, 1
      %s168 = smul.addr %s167, 32
      %s169 = smul.addr %s168, 4
      %s170 = scalar_lea.vmem %s3, %s169
      %v172 = vld [vmem:[%s165] sm:$0xf]
      %v173 = vld [vmem:[%s165 + $0x4] sm:$0xf]
      %v174 = vld [vmem:[%s165 + $0xc] sm:$0xf]
      %v175 = vld [vmem:[%s165 + $0x10] sm:$0xf]
      %v176 = vld [vmem:[%s165 + $0x18] sm:$0xf]
      %v177 = vld [vmem:[%s165 + $0x1c] sm:$0xf]
      %v178 = vld [vmem:[%s165 + $0x24] sm:$0xf]
      %v179 = vld [vmem:[%s165 + $0x28] sm:$0xf]
      %v180 = vld [vmem:[%s165 + $0x30] sm:$0xf]
      %v181 = vld [vmem:[%s165 + $0x34] sm:$0xf]
      %v182 = vld [vmem:[%s165 + $0x3c] sm:$0xf]
      %v183 = vld [vmem:[%s165 + $0x40] sm:$0xf]
      %v184 = vld [vmem:[%s165 + $0x48] sm:$0xf]
      %v185 = vld [vmem:[%s165 + $0x4c] sm:$0xf]
      %v186 = vld [vmem:[%s165 + $0x54] sm:$0xf]
      %v187 = vld [vmem:[%s165 + $0x58] sm:$0xf]
      %v188 = vld [vmem:[%s165 + $0x60] sm:$0xf]
      %v189 = vld [vmem:[%s165 + $0x64] sm:$0xf]
      %v190 = vld [vmem:[%s165 + $0x6c] sm:$0xf]
      %v191 = vld [vmem:[%s165 + $0x70] sm:$0xf]
      %v192 = vld [vmem:[%s165 + $0x78] sm:$0xf]
      %v193 = vld [vmem:[%s165 + $0x7c] sm:$0xf]
      %v194 = vld [vmem:[%s165 + $0x84] sm:$0xf]
      %v195 = vld [vmem:[%s165 + $0x88] sm:$0xf]
      %v196 = vld [vmem:[%s165 + $0x90] sm:$0xf]
      %v197 = vld [vmem:[%s165 + $0x94] sm:$0xf]
      %v198 = vld [vmem:[%s165 + $0x9c] sm:$0xf]
      %v199 = vld [vmem:[%s165 + $0xa0] sm:$0xf]
      %v200 = vld [vmem:[%s165 + $0xa8] sm:$0xf]
      %v201 = vld [vmem:[%s165 + $0xac] sm:$0xf]
      %v202 = vld [vmem:[%s165 + $0xb4] sm:$0xf]
      %v203 = vld [vmem:[%s165 + $0xb8] sm:$0xf]
      %v204 = vld [vmem:[%s1] sm:$0xf]
      %v205 = vld [vmem:[%s1 + $0x4] sm:$0xf]
      %v206 = vld [vmem:[%s165 + $0x8] sm:$0x1]
      %v207 = vld [vmem:[%s165 + $0x14] sm:$0x1]
      %v208 = vld [vmem:[%s165 + $0x20] sm:$0x1]
      %v209 = vld [vmem:[%s165 + $0x2c] sm:$0x1]
      %v210 = vld [vmem:[%s165 + $0x38] sm:$0x1]
      %v211 = vld [vmem:[%s165 + $0x44] sm:$0x1]
      %v212 = vld [vmem:[%s165 + $0x50] sm:$0x1]
      %v213 = vld [vmem:[%s165 + $0x5c] sm:$0x1]
      %v214 = vld [vmem:[%s165 + $0x68] sm:$0x1]
      %v215 = vld [vmem:[%s165 + $0x74] sm:$0x1]
      %v216 = vld [vmem:[%s165 + $0x80] sm:$0x1]
      %v217 = vld [vmem:[%s165 + $0x8c] sm:$0x1]
      %v218 = vld [vmem:[%s165 + $0x98] sm:$0x1]
      %v219 = vld [vmem:[%s165 + $0xa4] sm:$0x1]
      %v220 = vld [vmem:[%s165 + $0xb0] sm:$0x1]
      %v221 = vld [vmem:[%s165 + $0xbc] sm:$0x1]
      %vm222 = vsmask.f32 3328
      %vm223 = vsmask.f32 7440
      %vm224 = vmor %vm222, %vm223
      %v226 = vshrl.u32 %v172, 16
      %v228 = vrot.slane %v226, 4
      %v229 = vshll.u32 %v172, 16
      %v231 = vrot.slane %v229, 5
      %v232 = vor.u32 %v228, %v231
      %v233 = vrot.slane %v232, 4
      %v235 = vshll.u32 %v173, 16
      %v237 = vrot.slane %v235, 5
      %v238 = vsel %vm224, %v233, %v237
      %v239 = vshrl.u32 %v173, 16
      %v241 = vrot.slane %v239, 4
      %v242 = vor.u32 %v241, %v237
      %v243 = vrot.slane %v242, 4
      %v245 = vshll.u32 %v206, 16
      %v247 = vrot.slane %v245, 5
      %v248 = vsel %vm224, %v243, %v247
      %v250 = vshrl.u32 %v174, 16
      %v252 = vrot.slane %v250, 4
      %v253 = vshll.u32 %v174, 16
      %v255 = vrot.slane %v253, 5
      %v256 = vor.u32 %v252, %v255
      %v257 = vrot.slane %v256, 4
      %v259 = vshll.u32 %v175, 16
      %v261 = vrot.slane %v259, 5
      %v262 = vsel %vm224, %v257, %v261
      %v263 = vshrl.u32 %v175, 16
      %v265 = vrot.slane %v263, 4
      %v266 = vor.u32 %v265, %v261
      %v267 = vrot.slane %v266, 4
      %v269 = vshll.u32 %v207, 16
      %v271 = vrot.slane %v269, 5
      %v272 = vsel %vm224, %v267, %v271
      %v274 = vshrl.u32 %v176, 16
      %v276 = vrot.slane %v274, 4
      %v277 = vshll.u32 %v176, 16
      %v279 = vrot.slane %v277, 5
      %v280 = vor.u32 %v276, %v279
      %v281 = vrot.slane %v280, 4
      %v283 = vshll.u32 %v177, 16
      %v285 = vrot.slane %v283, 5
      %v286 = vsel %vm224, %v281, %v285
      %v287 = vshrl.u32 %v177, 16
      %v289 = vrot.slane %v287, 4
      %v290 = vor.u32 %v289, %v285
      %v291 = vrot.slane %v290, 4
      %v293 = vshll.u32 %v208, 16
      %v295 = vrot.slane %v293, 5
      %v296 = vsel %vm224, %v291, %v295
      %v298 = vshrl.u32 %v178, 16
      %v300 = vrot.slane %v298, 4
      %v301 = vshll.u32 %v178, 16
      %v303 = vrot.slane %v301, 5
      %v304 = vor.u32 %v300, %v303
      %v305 = vrot.slane %v304, 4
      %v307 = vshll.u32 %v179, 16
      %v309 = vrot.slane %v307, 5
      %v310 = vsel %vm224, %v305, %v309
      %v311 = vshrl.u32 %v179, 16
      %v313 = vrot.slane %v311, 4
      %v314 = vor.u32 %v313, %v309
      %v315 = vrot.slane %v314, 4
      %v317 = vshll.u32 %v209, 16
      %v319 = vrot.slane %v317, 5
      %v320 = vsel %vm224, %v315, %v319
      %v322 = vshrl.u32 %v180, 16
      %v324 = vrot.slane %v322, 4
      %v325 = vshll.u32 %v180, 16
      %v327 = vrot.slane %v325, 5
      %v328 = vor.u32 %v324, %v327
      %v329 = vrot.slane %v328, 4
      %v331 = vshll.u32 %v181, 16
      %v333 = vrot.slane %v331, 5
      %v334 = vsel %vm224, %v329, %v333
      %v335 = vshrl.u32 %v181, 16
      %v337 = vrot.slane %v335, 4
      %v338 = vor.u32 %v337, %v333
      %v339 = vrot.slane %v338, 4
      %v341 = vshll.u32 %v210, 16
      %v343 = vrot.slane %v341, 5
      %v344 = vsel %vm224, %v339, %v343
      %v346 = vshrl.u32 %v182, 16
      %v348 = vrot.slane %v346, 4
      %v349 = vshll.u32 %v182, 16
      %v351 = vrot.slane %v349, 5
      %v352 = vor.u32 %v348, %v351
      %v353 = vrot.slane %v352, 4
      %v355 = vshll.u32 %v183, 16
      %v357 = vrot.slane %v355, 5
      %v358 = vsel %vm224, %v353, %v357
      %v359 = vshrl.u32 %v183, 16
      %v361 = vrot.slane %v359, 4
      %v362 = vor.u32 %v361, %v357
      %v363 = vrot.slane %v362, 4
      %v365 = vshll.u32 %v211, 16
      %v367 = vrot.slane %v365, 5
      %v368 = vsel %vm224, %v363, %v367
      %v370 = vshrl.u32 %v184, 16
      %v372 = vrot.slane %v370, 4
      %v373 = vshll.u32 %v184, 16
      %v375 = vrot.slane %v373, 5
      %v376 = vor.u32 %v372, %v375
      %v377 = vrot.slane %v376, 4
      %v379 = vshll.u32 %v185, 16
      %v381 = vrot.slane %v379, 5
      %v382 = vsel %vm224, %v377, %v381
      %v383 = vshrl.u32 %v185, 16
      %v385 = vrot.slane %v383, 4
      %v386 = vor.u32 %v385, %v381
      %v387 = vrot.slane %v386, 4
      %v389 = vshll.u32 %v212, 16
      %v391 = vrot.slane %v389, 5
      %v392 = vsel %vm224, %v387, %v391
      %v394 = vshrl.u32 %v186, 16
      %v396 = vrot.slane %v394, 4
      %v397 = vshll.u32 %v186, 16
      %v399 = vrot.slane %v397, 5
      %v400 = vor.u32 %v396, %v399
      %v401 = vrot.slane %v400, 4
      %v403 = vshll.u32 %v187, 16
      %v405 = vrot.slane %v403, 5
      %v406 = vsel %vm224, %v401, %v405
      %v407 = vshrl.u32 %v187, 16
      %v409 = vrot.slane %v407, 4
      %v410 = vor.u32 %v409, %v405
      %v411 = vrot.slane %v410, 4
      %v413 = vshll.u32 %v213, 16
      %v415 = vrot.slane %v413, 5
      %v416 = vsel %vm224, %v411, %v415
      %v418 = vshrl.u32 %v188, 16
      %v420 = vrot.slane %v418, 4
      %v421 = vshll.u32 %v188, 16
      %v423 = vrot.slane %v421, 5
      %v424 = vor.u32 %v420, %v423
      %v425 = vrot.slane %v424, 4
      %v427 = vshll.u32 %v189, 16
      %v429 = vrot.slane %v427, 5
      %v430 = vsel %vm224, %v425, %v429
      %v431 = vshrl.u32 %v189, 16
      %v433 = vrot.slane %v431, 4
      %v434 = vor.u32 %v433, %v429
      %v435 = vrot.slane %v434, 4
      %v437 = vshll.u32 %v214, 16
      %v439 = vrot.slane %v437, 5
      %v440 = vsel %vm224, %v435, %v439
      %v442 = vshrl.u32 %v190, 16
      %v444 = vrot.slane %v442, 4
      %v445 = vshll.u32 %v190, 16
      %v447 = vrot.slane %v445, 5
      %v448 = vor.u32 %v444, %v447
      %v449 = vrot.slane %v448, 4
      %v451 = vshll.u32 %v191, 16
      %v453 = vrot.slane %v451, 5
      %v454 = vsel %vm224, %v449, %v453
      %v455 = vshrl.u32 %v191, 16
      %v457 = vrot.slane %v455, 4
      %v458 = vor.u32 %v457, %v453
      %v459 = vrot.slane %v458, 4
      %v461 = vshll.u32 %v215, 16
      %v463 = vrot.slane %v461, 5
      %v464 = vsel %vm224, %v459, %v463
      %v466 = vshrl.u32 %v192, 16
      %v468 = vrot.slane %v466, 4
      %v469 = vshll.u32 %v192, 16
      %v471 = vrot.slane %v469, 5
      %v472 = vor.u32 %v468, %v471
      %v473 = vrot.slane %v472, 4
      %v475 = vshll.u32 %v193, 16
      %v477 = vrot.slane %v475, 5
      %v478 = vsel %vm224, %v473, %v477
      %v479 = vshrl.u32 %v193, 16
      %v481 = vrot.slane %v479, 4
      %v482 = vor.u32 %v481, %v477
      %v483 = vrot.slane %v482, 4
      %v485 = vshll.u32 %v216, 16
      %v487 = vrot.slane %v485, 5
      %v488 = vsel %vm224, %v483, %v487
      %v490 = vshrl.u32 %v194, 16
      %v492 = vrot.slane %v490, 4
      %v493 = vshll.u32 %v194, 16
      %v495 = vrot.slane %v493, 5
      %v496 = vor.u32 %v492, %v495
      %v497 = vrot.slane %v496, 4
      %v499 = vshll.u32 %v195, 16
      %v501 = vrot.slane %v499, 5
      %v502 = vsel %vm224, %v497, %v501
      %v503 = vshrl.u32 %v195, 16
      %v505 = vrot.slane %v503, 4
      %v506 = vor.u32 %v505, %v501
      %v507 = vrot.slane %v506, 4
      %v509 = vshll.u32 %v217, 16
      %v511 = vrot.slane %v509, 5
      %v512 = vsel %vm224, %v507, %v511
      %v514 = vshrl.u32 %v196, 16
      %v516 = vrot.slane %v514, 4
      %v517 = vshll.u32 %v196, 16
      %v519 = vrot.slane %v517, 5
      %v520 = vor.u32 %v516, %v519
      %v521 = vrot.slane %v520, 4
      %v523 = vshll.u32 %v197, 16
      %v525 = vrot.slane %v523, 5
      %v526 = vsel %vm224, %v521, %v525
      %v527 = vshrl.u32 %v197, 16
      %v529 = vrot.slane %v527, 4
      %v530 = vor.u32 %v529, %v525
      %v531 = vrot.slane %v530, 4
      %v533 = vshll.u32 %v218, 16
      %v535 = vrot.slane %v533, 5
      %v536 = vsel %vm224, %v531, %v535
      %v538 = vshrl.u32 %v198, 16
      %v540 = vrot.slane %v538, 4
      %v541 = vshll.u32 %v198, 16
      %v543 = vrot.slane %v541, 5
      %v544 = vor.u32 %v540, %v543
      %v545 = vrot.slane %v544, 4
      %v547 = vshll.u32 %v199, 16
      %v549 = vrot.slane %v547, 5
      %v550 = vsel %vm224, %v545, %v549
      %v551 = vshrl.u32 %v199, 16
      %v553 = vrot.slane %v551, 4
      %v554 = vor.u32 %v553, %v549
      %v555 = vrot.slane %v554, 4
      %v557 = vshll.u32 %v219, 16
      %v559 = vrot.slane %v557, 5
      %v560 = vsel %vm224, %v555, %v559
      %v562 = vshrl.u32 %v200, 16
      %v564 = vrot.slane %v562, 4
      %v565 = vshll.u32 %v200, 16
      %v567 = vrot.slane %v565, 5
      %v568 = vor.u32 %v564, %v567
      %v569 = vrot.slane %v568, 4
      %v571 = vshll.u32 %v201, 16
      %v573 = vrot.slane %v571, 5
      %v574 = vsel %vm224, %v569, %v573
      %v575 = vshrl.u32 %v201, 16
      %v577 = vrot.slane %v575, 4
      %v578 = vor.u32 %v577, %v573
      %v579 = vrot.slane %v578, 4
      %v581 = vshll.u32 %v220, 16
      %v583 = vrot.slane %v581, 5
      %v584 = vsel %vm224, %v579, %v583
      %v586 = vshrl.u32 %v202, 16
      %v588 = vrot.slane %v586, 4
      %v589 = vshll.u32 %v202, 16
      %v591 = vrot.slane %v589, 5
      %v592 = vor.u32 %v588, %v591
      %v593 = vrot.slane %v592, 4
      %v595 = vshll.u32 %v203, 16
      %v597 = vrot.slane %v595, 5
      %v598 = vsel %vm224, %v593, %v597
      %v599 = vshrl.u32 %v203, 16
      %v601 = vrot.slane %v599, 4
      %v602 = vor.u32 %v601, %v597
      %v603 = vrot.slane %v602, 4
      %v605 = vshll.u32 %v221, 16
      %v607 = vrot.slane %v605, 5
      %v608 = vsel %vm224, %v603, %v607
      %s609 = scalar_lea.vmem %s1, 8
      %v610 = vld [vmem:[%s609] sm:$0xf]
      %v611 = vld [vmem:[%s609 + $0x4] sm:$0xf]
      %v612 = vunpack.c.l.b16 %v238
      %v613 = vunpack.c.l.b16 %v248
      %v614 = vunpack.c.l.b16 %v262
      %v615 = vunpack.c.l.b16 %v272
      %v616 = vunpack.c.l.b16 %v286
      %v617 = vunpack.c.l.b16 %v296
      %v618 = vunpack.c.l.b16 %v310
      %v619 = vunpack.c.l.b16 %v320
      %v620 = vunpack.c.l.b16 %v334
      %v621 = vunpack.c.l.b16 %v344
      %v622 = vunpack.c.l.b16 %v358
      %v623 = vunpack.c.l.b16 %v368
      %v624 = vunpack.c.l.b16 %v382
      %v625 = vunpack.c.l.b16 %v392
      %v626 = vunpack.c.l.b16 %v406
      %v627 = vunpack.c.l.b16 %v416
      %v628 = vunpack.c.l.b16 %v430
      %v629 = vunpack.c.l.b16 %v440
      %v630 = vunpack.c.l.b16 %v454
      %v631 = vunpack.c.l.b16 %v464
      %v632 = vunpack.c.l.b16 %v478
      %v633 = vunpack.c.l.b16 %v488
      %v634 = vunpack.c.l.b16 %v502
      %v635 = vunpack.c.l.b16 %v512
      %v636 = vunpack.c.l.b16 %v526
      %v637 = vunpack.c.l.b16 %v536
      %v638 = vunpack.c.l.b16 %v550
      %v639 = vunpack.c.l.b16 %v560
      %v640 = vunpack.c.l.b16 %v574
      %v641 = vunpack.c.l.b16 %v584
      %v642 = vunpack.c.l.b16 %v598
      %v643 = vunpack.c.l.b16 %v608
      %v644 = vpack.c.b16 %v613, %v612
      %v645 = vpack.c.b16 %v615, %v614
      %v646 = vpack.c.b16 %v617, %v616
      %v647 = vpack.c.b16 %v619, %v618
      %v648 = vpack.c.b16 %v621, %v620
      %v649 = vpack.c.b16 %v623, %v622
      %v650 = vpack.c.b16 %v625, %v624
      %v651 = vpack.c.b16 %v627, %v626
      %v652 = vpack.c.b16 %v629, %v628
      %v653 = vpack.c.b16 %v631, %v630
      %v654 = vpack.c.b16 %v633, %v632
      %v655 = vpack.c.b16 %v635, %v634
      %v656 = vpack.c.b16 %v637, %v636
      %v657 = vpack.c.b16 %v639, %v638
      %v658 = vpack.c.b16 %v641, %v640
      %v659 = vpack.c.b16 %v643, %v642
      %v662 = vunpack.c.l.b16 %v610
      %v663 = vunpack.c.l.b16 %v611
      %v664 = vpack.c.b16 %v663, %v662
      %vm666 = vcmask 130048
      %v668 = vsel %vm666, %v644, 0
      %v671 = vsel %vm666, %v645, 0
      %v674 = vsel %vm666, %v646, 0
      %v677 = vsel %vm666, %v647, 0
      %v680 = vsel %vm666, %v648, 0
      %v683 = vsel %vm666, %v649, 0
      %v686 = vsel %vm666, %v650, 0
      %v689 = vsel %vm666, %v651, 0
      %v692 = vsel %vm666, %v652, 0
      %v695 = vsel %vm666, %v653, 0
      %v698 = vsel %vm666, %v654, 0
      %v701 = vsel %vm666, %v655, 0
      %v704 = vsel %vm666, %v656, 0
      %v707 = vsel %vm666, %v657, 0
      %v710 = vsel %vm666, %v658, 0
      %v713 = vsel %vm666, %v659, 0
      %715 = vmatprep.subr.bf16.mxu0 0
      %716 = vmatpush1.bf16.msra.mxu0 %v664
      %717 = vmatprep.subr.bf16.mxu0 0
      %718 = vmatpush1.bf16.msra.mxu0 0
      %719 = vmatprep.subr.bf16.mxu0 0
      %720 = vmatpush1.bf16.msra.mxu0 0
      %721 = vmatprep.subr.bf16.mxu0 0
      %722 = vmatpush1.bf16.msra.mxu0 0
      %723 = vmatprep.subr.bf16.mxu0 0
      %724 = vmatpush1.bf16.msra.mxu0 0
      %725 = vmatprep.subr.bf16.mxu0 0
      %726 = vmatpush1.bf16.msra.mxu0 0
      %727 = vmatprep.subr.bf16.mxu0 0
      %728 = vmatpush1.bf16.msra.mxu0 0
      %729 = vmatprep.subr.bf16.mxu0 0
      %730 = vmatpush1.bf16.msra.mxu0 0
      %731 = vmatprep.subr.bf16.mxu0 0
      %732 = vmatpush1.bf16.msra.mxu0 0
      %733 = vmatprep.subr.bf16.mxu0 0
      %734 = vmatpush1.bf16.msra.mxu0 0
      %735 = vmatprep.subr.bf16.mxu0 0
      %736 = vmatpush1.bf16.msra.mxu0 0
      %737 = vmatprep.subr.bf16.mxu0 0
      %738 = vmatpush1.bf16.msra.mxu0 0
      %739 = vmatprep.subr.bf16.mxu0 0
      %740 = vmatpush1.bf16.msra.mxu0 0
      %741 = vmatprep.subr.bf16.mxu0 0
      %742 = vmatpush1.bf16.msra.mxu0 0
      %743 = vmatprep.subr.bf16.mxu0 0
      %744 = vmatpush1.bf16.msra.mxu0 0
      %745 = vmatprep.subr.bf16.mxu0 0
      %746 = vmatpush1.bf16.msra.mxu0 0
      %747 = vmatprep.mubr.bf16.mxu0 0
      %748 = vmatmul.mubr.bf16.gmra.mrb[0].mxu0 %v668
      %v749 = vpop.f32.mrb[0].mxu0
      %v750 = vadd.f32 0.0, %v749
      %v751 = vpop.f32.mrb[0].mxu0
      %v752 = vpop.f32.mrb[0].mxu0
      %v753 = vadd.f32 0.0, %v752
      %v754 = vpop.f32.mrb[0].mxu0
      %755 = vmatprep.mubr.bf16.mxu0 0
      %756 = vmatmul.mubr.bf16.gmra.mrb[0].mxu0 %v671
      %v757 = vpop.f32.mrb[0].mxu0
      %v758 = vadd.f32 0.0, %v757
      %v759 = vpop.f32.mrb[0].mxu0
      %v760 = vpop.f32.mrb[0].mxu0
      %v761 = vadd.f32 0.0, %v760
      %v762 = vpop.f32.mrb[0].mxu0
      %763 = vmatprep.mubr.bf16.mxu0 0
      %764 = vmatmul.mubr.bf16.gmra.mrb[0].mxu0 %v674
      %v765 = vpop.f32.mrb[0].mxu0
      %v766 = vadd.f32 0.0, %v765
      %v767 = vpop.f32.mrb[0].mxu0
      %v768 = vpop.f32.mrb[0].mxu0
      %v769 = vadd.f32 0.0, %v768
      %v770 = vpop.f32.mrb[0].mxu0
      %771 = vmatprep.mubr.bf16.mxu0 0
      %772 = vmatmul.mubr.bf16.gmra.mrb[0].mxu0 %v677
      %v773 = vpop.f32.mrb[0].mxu0
      %v774 = vadd.f32 0.0, %v773
      %v775 = vpop.f32.mrb[0].mxu0
      %v776 = vpop.f32.mrb[0].mxu0
      %v777 = vadd.f32 0.0, %v776
      %v778 = vpop.f32.mrb[0].mxu0
      %779 = vmatprep.mubr.bf16.mxu0 0
      %780 = vmatmul.mubr.bf16.gmra.mrb[0].mxu0 %v680
      %v781 = vpop.f32.mrb[0].mxu0
      %v782 = vadd.f32 0.0, %v781
      %v783 = vpop.f32.mrb[0].mxu0
      %v784 = vpop.f32.mrb[0].mxu0
      %v785 = vadd.f32 0.0, %v784
      %v786 = vpop.f32.mrb[0].mxu0
      %787 = vmatprep.mubr.bf16.mxu0 0
      %788 = vmatmul.mubr.bf16.gmra.mrb[0].mxu0 %v683
      %v789 = vpop.f32.mrb[0].mxu0
      %v790 = vadd.f32 0.0, %v789
      %v791 = vpop.f32.mrb[0].mxu0
      %v792 = vpop.f32.mrb[0].mxu0
      %v793 = vadd.f32 0.0, %v792
      %v794 = vpop.f32.mrb[0].mxu0
      %795 = vmatprep.mubr.bf16.mxu0 0
      %796 = vmatmul.mubr.bf16.gmra.mrb[0].mxu0 %v686
      %v797 = vpop.f32.mrb[0].mxu0
      %v798 = vadd.f32 0.0, %v797
      %v799 = vpop.f32.mrb[0].mxu0
      %v800 = vpop.f32.mrb[0].mxu0
      %v801 = vadd.f32 0.0, %v800
      %v802 = vpop.f32.mrb[0].mxu0
      %803 = vmatprep.mubr.bf16.mxu0 0
      %804 = vmatmul.mubr.bf16.gmra.mrb[0].mxu0 %v689
      %v805 = vpop.f32.mrb[0].mxu0
      %v806 = vadd.f32 0.0, %v805
      %v807 = vpop.f32.mrb[0].mxu0
      %v808 = vpop.f32.mrb[0].mxu0
      %v809 = vadd.f32 0.0, %v808
      %v810 = vpop.f32.mrb[0].mxu0
      %811 = vmatprep.mubr.bf16.mxu0 0
      %812 = vmatmul.mubr.bf16.gmra.mrb[0].mxu0 %v692
      %v813 = vpop.f32.mrb[0].mxu0
      %v814 = vadd.f32 0.0, %v813
      %v815 = vpop.f32.mrb[0].mxu0
      %v816 = vpop.f32.mrb[0].mxu0
      %v817 = vadd.f32 0.0, %v816
      %v818 = vpop.f32.mrb[0].mxu0
      %819 = vmatprep.mubr.bf16.mxu0 0
      %820 = vmatmul.mubr.bf16.gmra.mrb[0].mxu0 %v695
      %v821 = vpop.f32.mrb[0].mxu0
      %v822 = vadd.f32 0.0, %v821
      %v823 = vpop.f32.mrb[0].mxu0
      %v824 = vpop.f32.mrb[0].mxu0
      %v825 = vadd.f32 0.0, %v824
      %v826 = vpop.f32.mrb[0].mxu0
      %827 = vmatprep.mubr.bf16.mxu0 0
      %828 = vmatmul.mubr.bf16.gmra.mrb[0].mxu0 %v698
      %v829 = vpop.f32.mrb[0].mxu0
      %v830 = vadd.f32 0.0, %v829
      %v831 = vpop.f32.mrb[0].mxu0
      %v832 = vpop.f32.mrb[0].mxu0
      %v833 = vadd.f32 0.0, %v832
      %v834 = vpop.f32.mrb[0].mxu0
      %835 = vmatprep.mubr.bf16.mxu0 0
      %836 = vmatmul.mubr.bf16.gmra.mrb[0].mxu0 %v701
      %v837 = vpop.f32.mrb[0].mxu0
      %v838 = vadd.f32 0.0, %v837
      %v839 = vpop.f32.mrb[0].mxu0
      %v840 = vpop.f32.mrb[0].mxu0
      %v841 = vadd.f32 0.0, %v840
      %v842 = vpop.f32.mrb[0].mxu0
      %843 = vmatprep.mubr.bf16.mxu0 0
      %844 = vmatmul.mubr.bf16.gmra.mrb[0].mxu0 %v704
      %v845 = vpop.f32.mrb[0].mxu0
      %v846 = vadd.f32 0.0, %v845
      %v847 = vpop.f32.mrb[0].mxu0
      %v848 = vpop.f32.mrb[0].mxu0
      %v849 = vadd.f32 0.0, %v848
      %v850 = vpop.f32.mrb[0].mxu0
      %851 = vmatprep.mubr.bf16.mxu0 0
      %852 = vmatmul.mubr.bf16.gmra.mrb[0].mxu0 %v707
      %v853 = vpop.f32.mrb[0].mxu0
      %v854 = vadd.f32 0.0, %v853
      %v855 = vpop.f32.mrb[0].mxu0
      %v856 = vpop.f32.mrb[0].mxu0
      %v857 = vadd.f32 0.0, %v856
      %v858 = vpop.f32.mrb[0].mxu0
      %859 = vmatprep.mubr.bf16.mxu0 0
      %860 = vmatmul.mubr.bf16.gmra.mrb[0].mxu0 %v710
      %v861 = vpop.f32.mrb[0].mxu0
      %v862 = vadd.f32 0.0, %v861
      %v863 = vpop.f32.mrb[0].mxu0
      %v864 = vpop.f32.mrb[0].mxu0
      %v865 = vadd.f32 0.0, %v864
      %v866 = vpop.f32.mrb[0].mxu0
      %867 = vmatprep.mubr.bf16.mxu0 0
      %868 = vmatmul.mubr.bf16.gmra.mrb[0].mxu0 %v713
      %v869 = vpop.f32.mrb[0].mxu0
      %v870 = vadd.f32 0.0, %v869
      %v871 = vpop.f32.mrb[0].mxu0
      %v872 = vpop.f32.mrb[0].mxu0
      %v873 = vadd.f32 0.0, %v872
      %v874 = vpop.f32.mrb[0].mxu0
      %875 = vdwg.mxu0
      %v908 = vunpack.c.l.b16 %v172
      %v909 = vunpack.c.l.b16 %v173
      %v910 = vunpack.c.l.b16 %v174
      %v911 = vunpack.c.l.b16 %v175
      %v912 = vunpack.c.l.b16 %v176
      %v913 = vunpack.c.l.b16 %v177
      %v914 = vunpack.c.l.b16 %v178
      %v915 = vunpack.c.l.b16 %v179
      %v916 = vunpack.c.l.b16 %v180
      %v917 = vunpack.c.l.b16 %v181
      %v918 = vunpack.c.l.b16 %v182
      %v919 = vunpack.c.l.b16 %v183
      %v920 = vunpack.c.l.b16 %v184
      %v921 = vunpack.c.l.b16 %v185
      %v922 = vunpack.c.l.b16 %v186
      %v923 = vunpack.c.l.b16 %v187
      %v924 = vunpack.c.l.b16 %v188
      %v925 = vunpack.c.l.b16 %v189
      %v926 = vunpack.c.l.b16 %v190
      %v927 = vunpack.c.l.b16 %v191
      %v928 = vunpack.c.l.b16 %v192
      %v929 = vunpack.c.l.b16 %v193
      %v930 = vunpack.c.l.b16 %v194
      %v931 = vunpack.c.l.b16 %v195
      %v932 = vunpack.c.l.b16 %v196
      %v933 = vunpack.c.l.b16 %v197
      %v934 = vunpack.c.l.b16 %v198
      %v935 = vunpack.c.l.b16 %v199
      %v936 = vunpack.c.l.b16 %v200
      %v937 = vunpack.c.l.b16 %v201
      %v938 = vunpack.c.l.b16 %v202
      %v939 = vunpack.c.l.b16 %v203
      %v940 = vpack.c.b16 %v909, %v908
      %v941 = vpack.c.b16 %v911, %v910
      %v942 = vpack.c.b16 %v913, %v912
      %v943 = vpack.c.b16 %v915, %v914
      %v944 = vpack.c.b16 %v917, %v916
      %v945 = vpack.c.b16 %v919, %v918
      %v946 = vpack.c.b16 %v921, %v920
      %v947 = vpack.c.b16 %v923, %v922
      %v948 = vpack.c.b16 %v925, %v924
      %v949 = vpack.c.b16 %v927, %v926
      %v950 = vpack.c.b16 %v929, %v928
      %v951 = vpack.c.b16 %v931, %v930
      %v952 = vpack.c.b16 %v933, %v932
      %v953 = vpack.c.b16 %v935, %v934
      %v954 = vpack.c.b16 %v937, %v936
      %v955 = vpack.c.b16 %v939, %v938
      %v958 = vunpack.c.l.b16 %v204
      %v959 = vunpack.c.l.b16 %v205
      %v960 = vpack.c.b16 %v959, %v958
      %v963 = vsel %vm666, %v940, 0
      %v966 = vsel %vm666, %v941, 0
      %v969 = vsel %vm666, %v942, 0
      %v972 = vsel %vm666, %v943, 0
      %v975 = vsel %vm666, %v944, 0
      %v978 = vsel %vm666, %v945, 0
      %v981 = vsel %vm666, %v946, 0
      %v984 = vsel %vm666, %v947, 0
      %v987 = vsel %vm666, %v948, 0
      %v990 = vsel %vm666, %v949, 0
      %v993 = vsel %vm666, %v950, 0
      %v996 = vsel %vm666, %v951, 0
      %v999 = vsel %vm666, %v952, 0
      %v1002 = vsel %vm666, %v953, 0
      %v1005 = vsel %vm666, %v954, 0
      %v1008 = vsel %vm666, %v955, 0
      %1010 = vmatprep.subr.bf16.mxu0 0
      %1011 = vmatpush1.bf16.msra.mxu0 %v960
      %1012 = vmatprep.subr.bf16.mxu0 0
      %1013 = vmatpush1.bf16.msra.mxu0 0
      %1014 = vmatprep.subr.bf16.mxu0 0
      %1015 = vmatpush1.bf16.msra.mxu0 0
      %1016 = vmatprep.subr.bf16.mxu0 0
      %1017 = vmatpush1.bf16.msra.mxu0 0
      %1018 = vmatprep.subr.bf16.mxu0 0
      %1019 = vmatpush1.bf16.msra.mxu0 0
      %1020 = vmatprep.subr.bf16.mxu0 0
      %1021 = vmatpush1.bf16.msra.mxu0 0
      %1022 = vmatprep.subr.bf16.mxu0 0
      %1023 = vmatpush1.bf16.msra.mxu0 0
      %1024 = vmatprep.subr.bf16.mxu0 0
      %1025 = vmatpush1.bf16.msra.mxu0 0
      %1026 = vmatprep.subr.bf16.mxu0 0
      %1027 = vmatpush1.bf16.msra.mxu0 0
      %1028 = vmatprep.subr.bf16.mxu0 0
      %1029 = vmatpush1.bf16.msra.mxu0 0
      %1030 = vmatprep.subr.bf16.mxu0 0
      %1031 = vmatpush1.bf16.msra.mxu0 0
      %1032 = vmatprep.subr.bf16.mxu0 0
      %1033 = vmatpush1.bf16.msra.mxu0 0
      %1034 = vmatprep.subr.bf16.mxu0 0
      %1035 = vmatpush1.bf16.msra.mxu0 0
      %1036 = vmatprep.subr.bf16.mxu0 0
      %1037 = vmatpush1.bf16.msra.mxu0 0
      %1038 = vmatprep.subr.bf16.mxu0 0
      %1039 = vmatpush1.bf16.msra.mxu0 0
      %1040 = vmatprep.subr.bf16.mxu0 0
      %1041 = vmatpush1.bf16.msra.mxu0 0
      %1042 = vmatprep.mubr.bf16.mxu0 0
      %1043 = vmatmul.mubr.bf16.gmra.mrb[0].mxu0 %v963
      %v1044 = vpop.f32.mrb[0].mxu0
      %v1045 = vadd.f32 %v750, %v1044
      %v1046 = vpop.f32.mrb[0].mxu0
      %v1047 = vpop.f32.mrb[0].mxu0
      %v1048 = vadd.f32 %v753, %v1047
      %v1049 = vpop.f32.mrb[0].mxu0
      %1050 = vmatprep.mubr.bf16.mxu0 0
      %1051 = vmatmul.mubr.bf16.gmra.mrb[0].mxu0 %v966
      %v1052 = vpop.f32.mrb[0].mxu0
      %v1053 = vadd.f32 %v758, %v1052
      %v1054 = vpop.f32.mrb[0].mxu0
      %v1055 = vpop.f32.mrb[0].mxu0
      %v1056 = vadd.f32 %v761, %v1055
      %v1057 = vpop.f32.mrb[0].mxu0
      %1058 = vmatprep.mubr.bf16.mxu0 0
      %1059 = vmatmul.mubr.bf16.gmra.mrb[0].mxu0 %v969
      %v1060 = vpop.f32.mrb[0].mxu0
      %v1061 = vadd.f32 %v766, %v1060
      %v1062 = vpop.f32.mrb[0].mxu0
      %v1063 = vpop.f32.mrb[0].mxu0
      %v1064 = vadd.f32 %v769, %v1063
      %v1065 = vpop.f32.mrb[0].mxu0
      %1066 = vmatprep.mubr.bf16.mxu0 0
      %1067 = vmatmul.mubr.bf16.gmra.mrb[0].mxu0 %v972
      %v1068 = vpop.f32.mrb[0].mxu0
      %v1069 = vadd.f32 %v774, %v1068
      %v1070 = vpop.f32.mrb[0].mxu0
      %v1071 = vpop.f32.mrb[0].mxu0
      %v1072 = vadd.f32 %v777, %v1071
      %v1073 = vpop.f32.mrb[0].mxu0
      %1074 = vmatprep.mubr.bf16.mxu0 0
      %1075 = vmatmul.mubr.bf16.gmra.mrb[0].mxu0 %v975
      %v1076 = vpop.f32.mrb[0].mxu0
      %v1077 = vadd.f32 %v782, %v1076
      %v1078 = vpop.f32.mrb[0].mxu0
      %v1079 = vpop.f32.mrb[0].mxu0
      %v1080 = vadd.f32 %v785, %v1079
      %v1081 = vpop.f32.mrb[0].mxu0
      %1082 = vmatprep.mubr.bf16.mxu0 0
      %1083 = vmatmul.mubr.bf16.gmra.mrb[0].mxu0 %v978
      %v1084 = vpop.f32.mrb[0].mxu0
      %v1085 = vadd.f32 %v790, %v1084
      %v1086 = vpop.f32.mrb[0].mxu0
      %v1087 = vpop.f32.mrb[0].mxu0
      %v1088 = vadd.f32 %v793, %v1087
      %v1089 = vpop.f32.mrb[0].mxu0
      %1090 = vmatprep.mubr.bf16.mxu0 0
      %1091 = vmatmul.mubr.bf16.gmra.mrb[0].mxu0 %v981
      %v1092 = vpop.f32.mrb[0].mxu0
      %v1093 = vadd.f32 %v798, %v1092
      %v1094 = vpop.f32.mrb[0].mxu0
      %v1095 = vpop.f32.mrb[0].mxu0
      %v1096 = vadd.f32 %v801, %v1095
      %v1097 = vpop.f32.mrb[0].mxu0
      %1098 = vmatprep.mubr.bf16.mxu0 0
      %1099 = vmatmul.mubr.bf16.gmra.mrb[0].mxu0 %v984
      %v1100 = vpop.f32.mrb[0].mxu0
      %v1101 = vadd.f32 %v806, %v1100
      %v1102 = vpop.f32.mrb[0].mxu0
      %v1103 = vpop.f32.mrb[0].mxu0
      %v1104 = vadd.f32 %v809, %v1103
      %v1105 = vpop.f32.mrb[0].mxu0
      %1106 = vmatprep.mubr.bf16.mxu0 0
      %1107 = vmatmul.mubr.bf16.gmra.mrb[0].mxu0 %v987
      %v1108 = vpop.f32.mrb[0].mxu0
      %v1109 = vadd.f32 %v814, %v1108
      %v1110 = vpop.f32.mrb[0].mxu0
      %v1111 = vpop.f32.mrb[0].mxu0
      %v1112 = vadd.f32 %v817, %v1111
      %v1113 = vpop.f32.mrb[0].mxu0
      %1114 = vmatprep.mubr.bf16.mxu0 0
      %1115 = vmatmul.mubr.bf16.gmra.mrb[0].mxu0 %v990
      %v1116 = vpop.f32.mrb[0].mxu0
      %v1117 = vadd.f32 %v822, %v1116
      %v1118 = vpop.f32.mrb[0].mxu0
      %v1119 = vpop.f32.mrb[0].mxu0
      %v1120 = vadd.f32 %v825, %v1119
      %v1121 = vpop.f32.mrb[0].mxu0
      %1122 = vmatprep.mubr.bf16.mxu0 0
      %1123 = vmatmul.mubr.bf16.gmra.mrb[0].mxu0 %v993
      %v1124 = vpop.f32.mrb[0].mxu0
      %v1125 = vadd.f32 %v830, %v1124
      %v1126 = vpop.f32.mrb[0].mxu0
      %v1127 = vpop.f32.mrb[0].mxu0
      %v1128 = vadd.f32 %v833, %v1127
      %v1129 = vpop.f32.mrb[0].mxu0
      %1130 = vmatprep.mubr.bf16.mxu0 0
      %1131 = vmatmul.mubr.bf16.gmra.mrb[0].mxu0 %v996
      %v1132 = vpop.f32.mrb[0].mxu0
      %v1133 = vadd.f32 %v838, %v1132
      %v1134 = vpop.f32.mrb[0].mxu0
      %v1135 = vpop.f32.mrb[0].mxu0
      %v1136 = vadd.f32 %v841, %v1135
      %v1137 = vpop.f32.mrb[0].mxu0
      %1138 = vmatprep.mubr.bf16.mxu0 0
      %1139 = vmatmul.mubr.bf16.gmra.mrb[0].mxu0 %v999
      %v1140 = vpop.f32.mrb[0].mxu0
      %v1141 = vadd.f32 %v846, %v1140
      %v1142 = vpop.f32.mrb[0].mxu0
      %v1143 = vpop.f32.mrb[0].mxu0
      %v1144 = vadd.f32 %v849, %v1143
      %v1145 = vpop.f32.mrb[0].mxu0
      %1146 = vmatprep.mubr.bf16.mxu0 0
      %1147 = vmatmul.mubr.bf16.gmra.mrb[0].mxu0 %v1002
      %v1148 = vpop.f32.mrb[0].mxu0
      %v1149 = vadd.f32 %v854, %v1148
      %v1150 = vpop.f32.mrb[0].mxu0
      %v1151 = vpop.f32.mrb[0].mxu0
      %v1152 = vadd.f32 %v857, %v1151
      %v1153 = vpop.f32.mrb[0].mxu0
      %1154 = vmatprep.mubr.bf16.mxu0 0
      %1155 = vmatmul.mubr.bf16.gmra.mrb[0].mxu0 %v1005
      %v1156 = vpop.f32.mrb[0].mxu0
      %v1157 = vadd.f32 %v862, %v1156
      %v1158 = vpop.f32.mrb[0].mxu0
      %v1159 = vpop.f32.mrb[0].mxu0
      %v1160 = vadd.f32 %v865, %v1159
      %v1161 = vpop.f32.mrb[0].mxu0
      %1162 = vmatprep.mubr.bf16.mxu0 0
      %1163 = vmatmul.mubr.bf16.gmra.mrb[0].mxu0 %v1008
      %v1164 = vpop.f32.mrb[0].mxu0
      %v1165 = vadd.f32 %v870, %v1164
      %v1166 = vpop.f32.mrb[0].mxu0
      %v1167 = vpop.f32.mrb[0].mxu0
      %v1168 = vadd.f32 %v873, %v1167
      %v1169 = vpop.f32.mrb[0].mxu0
      %1170 = vdwg.mxu0
      %s1171 = scalar_lea.vmem %s165, 12
      %v1172 = vld [vmem:[%s1171] sm:$0xf]
      %v1173 = vld [vmem:[%s1171 + $0x4] sm:$0xf]
      %v1174 = vld [vmem:[%s1171 + $0xc] sm:$0xf]
      %v1175 = vld [vmem:[%s1171 + $0x10] sm:$0xf]
      %v1176 = vld [vmem:[%s1171 + $0x18] sm:$0xf]
      %v1177 = vld [vmem:[%s1171 + $0x1c] sm:$0xf]
      %v1178 = vld [vmem:[%s1171 + $0x24] sm:$0xf]
      %v1179 = vld [vmem:[%s1171 + $0x28] sm:$0xf]
      %v1180 = vld [vmem:[%s1171 + $0x30] sm:$0xf]
      %v1181 = vld [vmem:[%s1171 + $0x34] sm:$0xf]
      %v1182 = vld [vmem:[%s1171 + $0x3c] sm:$0xf]
      %v1183 = vld [vmem:[%s1171 + $0x40] sm:$0xf]
      %v1184 = vld [vmem:[%s1171 + $0x48] sm:$0xf]
      %v1185 = vld [vmem:[%s1171 + $0x4c] sm:$0xf]
      %v1186 = vld [vmem:[%s1171 + $0x54] sm:$0xf]
      %v1187 = vld [vmem:[%s1171 + $0x58] sm:$0xf]
      %v1188 = vld [vmem:[%s1171 + $0x60] sm:$0xf]
      %v1189 = vld [vmem:[%s1171 + $0x64] sm:$0xf]
      %v1190 = vld [vmem:[%s1171 + $0x6c] sm:$0xf]
      %v1191 = vld [vmem:[%s1171 + $0x70] sm:$0xf]
      %v1192 = vld [vmem:[%s1171 + $0x78] sm:$0xf]
      %v1193 = vld [vmem:[%s1171 + $0x7c] sm:$0xf]
      %v1194 = vld [vmem:[%s1171 + $0x84] sm:$0xf]
      %v1195 = vld [vmem:[%s1171 + $0x88] sm:$0xf]
      %v1196 = vld [vmem:[%s1171 + $0x90] sm:$0xf]
      %v1197 = vld [vmem:[%s1171 + $0x94] sm:$0xf]
      %v1198 = vld [vmem:[%s1171 + $0x9c] sm:$0xf]
      %v1199 = vld [vmem:[%s1171 + $0xa0] sm:$0xf]
      %v1200 = vld [vmem:[%s1171 + $0xa8] sm:$0xf]
      %v1201 = vld [vmem:[%s1171 + $0xac] sm:$0xf]
      %v1202 = vld [vmem:[%s1171 + $0xb4] sm:$0xf]
      %v1203 = vld [vmem:[%s1171 + $0xb8] sm:$0xf]
      %s1204 = scalar_lea.vmem %s1, 16
      %v1205 = vld [vmem:[%s1204] sm:$0xf]
      %v1206 = vld [vmem:[%s1204 + $0x4] sm:$0xf]
      %v1239 = vunpack.c.l.b16 %v1172
      %v1240 = vunpack.c.l.b16 %v1173
      %v1241 = vunpack.c.l.b16 %v1174
      %v1242 = vunpack.c.l.b16 %v1175
      %v1243 = vunpack.c.l.b16 %v1176
      %v1244 = vunpack.c.l.b16 %v1177
      %v1245 = vunpack.c.l.b16 %v1178
      %v1246 = vunpack.c.l.b16 %v1179
      %v1247 = vunpack.c.l.b16 %v1180
      %v1248 = vunpack.c.l.b16 %v1181
      %v1249 = vunpack.c.l.b16 %v1182
      %v1250 = vunpack.c.l.b16 %v1183
      %v1251 = vunpack.c.l.b16 %v1184
      %v1252 = vunpack.c.l.b16 %v1185
      %v1253 = vunpack.c.l.b16 %v1186
      %v1254 = vunpack.c.l.b16 %v1187
      %v1255 = vunpack.c.l.b16 %v1188
      %v1256 = vunpack.c.l.b16 %v1189
      %v1257 = vunpack.c.l.b16 %v1190
      %v1258 = vunpack.c.l.b16 %v1191
      %v1259 = vunpack.c.l.b16 %v1192
      %v1260 = vunpack.c.l.b16 %v1193
      %v1261 = vunpack.c.l.b16 %v1194
      %v1262 = vunpack.c.l.b16 %v1195
      %v1263 = vunpack.c.l.b16 %v1196
      %v1264 = vunpack.c.l.b16 %v1197
      %v1265 = vunpack.c.l.b16 %v1198
      %v1266 = vunpack.c.l.b16 %v1199
      %v1267 = vunpack.c.l.b16 %v1200
      %v1268 = vunpack.c.l.b16 %v1201
      %v1269 = vunpack.c.l.b16 %v1202
      %v1270 = vunpack.c.l.b16 %v1203
      %v1271 = vpack.c.b16 %v1240, %v1239
      %v1272 = vpack.c.b16 %v1242, %v1241
      %v1273 = vpack.c.b16 %v1244, %v1243
      %v1274 = vpack.c.b16 %v1246, %v1245
      %v1275 = vpack.c.b16 %v1248, %v1247
      %v1276 = vpack.c.b16 %v1250, %v1249
      %v1277 = vpack.c.b16 %v1252, %v1251
      %v1278 = vpack.c.b16 %v1254, %v1253
      %v1279 = vpack.c.b16 %v1256, %v1255
      %v1280 = vpack.c.b16 %v1258, %v1257
      %v1281 = vpack.c.b16 %v1260, %v1259
      %v1282 = vpack.c.b16 %v1262, %v1261
      %v1283 = vpack.c.b16 %v1264, %v1263
      %v1284 = vpack.c.b16 %v1266, %v1265
      %v1285 = vpack.c.b16 %v1268, %v1267
      %v1286 = vpack.c.b16 %v1270, %v1269
      %v1289 = vunpack.c.l.b16 %v1205
      %v1290 = vunpack.c.l.b16 %v1206
      %v1291 = vpack.c.b16 %v1290, %v1289
      %v1294 = vsel %vm666, %v1271, 0
      %v1297 = vsel %vm666, %v1272, 0
      %v1300 = vsel %vm666, %v1273, 0
      %v1303 = vsel %vm666, %v1274, 0
      %v1306 = vsel %vm666, %v1275, 0
      %v1309 = vsel %vm666, %v1276, 0
      %v1312 = vsel %vm666, %v1277, 0
      %v1315 = vsel %vm666, %v1278, 0
      %v1318 = vsel %vm666, %v1279, 0
      %v1321 = vsel %vm666, %v1280, 0
      %v1324 = vsel %vm666, %v1281, 0
      %v1327 = vsel %vm666, %v1282, 0
      %v1330 = vsel %vm666, %v1283, 0
      %v1333 = vsel %vm666, %v1284, 0
      %v1336 = vsel %vm666, %v1285, 0
      %v1339 = vsel %vm666, %v1286, 0
      %1341 = vmatprep.subr.bf16.mxu0 0
      %1342 = vmatpush1.bf16.msra.mxu0 %v1291
      %1343 = vmatprep.subr.bf16.mxu0 0
      %1344 = vmatpush1.bf16.msra.mxu0 0
      %1345 = vmatprep.subr.bf16.mxu0 0
      %1346 = vmatpush1.bf16.msra.mxu0 0
      %1347 = vmatprep.subr.bf16.mxu0 0
      %1348 = vmatpush1.bf16.msra.mxu0 0
      %1349 = vmatprep.subr.bf16.mxu0 0
      %1350 = vmatpush1.bf16.msra.mxu0 0
      %1351 = vmatprep.subr.bf16.mxu0 0
      %1352 = vmatpush1.bf16.msra.mxu0 0
      %1353 = vmatprep.subr.bf16.mxu0 0
      %1354 = vmatpush1.bf16.msra.mxu0 0
      %1355 = vmatprep.subr.bf16.mxu0 0
      %1356 = vmatpush1.bf16.msra.mxu0 0
      %1357 = vmatprep.subr.bf16.mxu0 0
      %1358 = vmatpush1.bf16.msra.mxu0 0
      %1359 = vmatprep.subr.bf16.mxu0 0
      %1360 = vmatpush1.bf16.msra.mxu0 0
      %1361 = vmatprep.subr.bf16.mxu0 0
      %1362 = vmatpush1.bf16.msra.mxu0 0
      %1363 = vmatprep.subr.bf16.mxu0 0
      %1364 = vmatpush1.bf16.msra.mxu0 0
      %1365 = vmatprep.subr.bf16.mxu0 0
      %1366 = vmatpush1.bf16.msra.mxu0 0
      %1367 = vmatprep.subr.bf16.mxu0 0
      %1368 = vmatpush1.bf16.msra.mxu0 0
      %1369 = vmatprep.subr.bf16.mxu0 0
      %1370 = vmatpush1.bf16.msra.mxu0 0
      %1371 = vmatprep.subr.bf16.mxu0 0
      %1372 = vmatpush1.bf16.msra.mxu0 0
      %1373 = vmatprep.mubr.bf16.mxu0 0
      %1374 = vmatmul.mubr.bf16.gmra.mrb[0].mxu0 %v1294
      %v1375 = vpop.f32.mrb[0].mxu0
      %v1376 = vadd.f32 0.0, %v1375
      %v1377 = vpop.f32.mrb[0].mxu0
      %v1378 = vpop.f32.mrb[0].mxu0
      %v1379 = vadd.f32 0.0, %v1378
      %v1380 = vpop.f32.mrb[0].mxu0
      %1381 = vmatprep.mubr.bf16.mxu0 0
      %1382 = vmatmul.mubr.bf16.gmra.mrb[0].mxu0 %v1297
      %v1383 = vpop.f32.mrb[0].mxu0
      %v1384 = vadd.f32 0.0, %v1383
      %v1385 = vpop.f32.mrb[0].mxu0
      %v1386 = vpop.f32.mrb[0].mxu0
      %v1387 = vadd.f32 0.0, %v1386
      %v1388 = vpop.f32.mrb[0].mxu0
      %1389 = vmatprep.mubr.bf16.mxu0 0
      %1390 = vmatmul.mubr.bf16.gmra.mrb[0].mxu0 %v1300
      %v1391 = vpop.f32.mrb[0].mxu0
      %v1392 = vadd.f32 0.0, %v1391
      %v1393 = vpop.f32.mrb[0].mxu0
      %v1394 = vpop.f32.mrb[0].mxu0
      %v1395 = vadd.f32 0.0, %v1394
      %v1396 = vpop.f32.mrb[0].mxu0
      %1397 = vmatprep.mubr.bf16.mxu0 0
      %1398 = vmatmul.mubr.bf16.gmra.mrb[0].mxu0 %v1303
      %v1399 = vpop.f32.mrb[0].mxu0
      %v1400 = vadd.f32 0.0, %v1399
      %v1401 = vpop.f32.mrb[0].mxu0
      %v1402 = vpop.f32.mrb[0].mxu0
      %v1403 = vadd.f32 0.0, %v1402
      %v1404 = vpop.f32.mrb[0].mxu0
      %1405 = vmatprep.mubr.bf16.mxu0 0
      %1406 = vmatmul.mubr.bf16.gmra.mrb[0].mxu0 %v1306
      %v1407 = vpop.f32.mrb[0].mxu0
      %v1408 = vadd.f32 0.0, %v1407
      %v1409 = vpop.f32.mrb[0].mxu0
      %v1410 = vpop.f32.mrb[0].mxu0
      %v1411 = vadd.f32 0.0, %v1410
      %v1412 = vpop.f32.mrb[0].mxu0
      %1413 = vmatprep.mubr.bf16.mxu0 0
      %1414 = vmatmul.mubr.bf16.gmra.mrb[0].mxu0 %v1309
      %v1415 = vpop.f32.mrb[0].mxu0
      %v1416 = vadd.f32 0.0, %v1415
      %v1417 = vpop.f32.mrb[0].mxu0
      %v1418 = vpop.f32.mrb[0].mxu0
      %v1419 = vadd.f32 0.0, %v1418
      %v1420 = vpop.f32.mrb[0].mxu0
      %1421 = vmatprep.mubr.bf16.mxu0 0
      %1422 = vmatmul.mubr.bf16.gmra.mrb[0].mxu0 %v1312
      %v1423 = vpop.f32.mrb[0].mxu0
      %v1424 = vadd.f32 0.0, %v1423
      %v1425 = vpop.f32.mrb[0].mxu0
      %v1426 = vpop.f32.mrb[0].mxu0
      %v1427 = vadd.f32 0.0, %v1426
      %v1428 = vpop.f32.mrb[0].mxu0
      %1429 = vmatprep.mubr.bf16.mxu0 0
      %1430 = vmatmul.mubr.bf16.gmra.mrb[0].mxu0 %v1315
      %v1431 = vpop.f32.mrb[0].mxu0
      %v1432 = vadd.f32 0.0, %v1431
      %v1433 = vpop.f32.mrb[0].mxu0
      %v1434 = vpop.f32.mrb[0].mxu0
      %v1435 = vadd.f32 0.0, %v1434
      %v1436 = vpop.f32.mrb[0].mxu0
      %1437 = vmatprep.mubr.bf16.mxu0 0
      %1438 = vmatmul.mubr.bf16.gmra.mrb[0].mxu0 %v1318
      %v1439 = vpop.f32.mrb[0].mxu0
      %v1440 = vadd.f32 0.0, %v1439
      %v1441 = vpop.f32.mrb[0].mxu0
      %v1442 = vpop.f32.mrb[0].mxu0
      %v1443 = vadd.f32 0.0, %v1442
      %v1444 = vpop.f32.mrb[0].mxu0
      %1445 = vmatprep.mubr.bf16.mxu0 0
      %1446 = vmatmul.mubr.bf16.gmra.mrb[0].mxu0 %v1321
      %v1447 = vpop.f32.mrb[0].mxu0
      %v1448 = vadd.f32 0.0, %v1447
      %v1449 = vpop.f32.mrb[0].mxu0
      %v1450 = vpop.f32.mrb[0].mxu0
      %v1451 = vadd.f32 0.0, %v1450
      %v1452 = vpop.f32.mrb[0].mxu0
      %1453 = vmatprep.mubr.bf16.mxu0 0
      %1454 = vmatmul.mubr.bf16.gmra.mrb[0].mxu0 %v1324
      %v1455 = vpop.f32.mrb[0].mxu0
      %v1456 = vadd.f32 0.0, %v1455
      %v1457 = vpop.f32.mrb[0].mxu0
      %v1458 = vpop.f32.mrb[0].mxu0
      %v1459 = vadd.f32 0.0, %v1458
      %v1460 = vpop.f32.mrb[0].mxu0
      %1461 = vmatprep.mubr.bf16.mxu0 0
      %1462 = vmatmul.mubr.bf16.gmra.mrb[0].mxu0 %v1327
      %v1463 = vpop.f32.mrb[0].mxu0
      %v1464 = vadd.f32 0.0, %v1463
      %v1465 = vpop.f32.mrb[0].mxu0
      %v1466 = vpop.f32.mrb[0].mxu0
      %v1467 = vadd.f32 0.0, %v1466
      %v1468 = vpop.f32.mrb[0].mxu0
      %1469 = vmatprep.mubr.bf16.mxu0 0
      %1470 = vmatmul.mubr.bf16.gmra.mrb[0].mxu0 %v1330
      %v1471 = vpop.f32.mrb[0].mxu0
      %v1472 = vadd.f32 0.0, %v1471
      %v1473 = vpop.f32.mrb[0].mxu0
      %v1474 = vpop.f32.mrb[0].mxu0
      %v1475 = vadd.f32 0.0, %v1474
      %v1476 = vpop.f32.mrb[0].mxu0
      %1477 = vmatprep.mubr.bf16.mxu0 0
      %1478 = vmatmul.mubr.bf16.gmra.mrb[0].mxu0 %v1333
      %v1479 = vpop.f32.mrb[0].mxu0
      %v1480 = vadd.f32 0.0, %v1479
      %v1481 = vpop.f32.mrb[0].mxu0
      %v1482 = vpop.f32.mrb[0].mxu0
      %v1483 = vadd.f32 0.0, %v1482
      %v1484 = vpop.f32.mrb[0].mxu0
      %1485 = vmatprep.mubr.bf16.mxu0 0
      %1486 = vmatmul.mubr.bf16.gmra.mrb[0].mxu0 %v1336
      %v1487 = vpop.f32.mrb[0].mxu0
      %v1488 = vadd.f32 0.0, %v1487
      %v1489 = vpop.f32.mrb[0].mxu0
      %v1490 = vpop.f32.mrb[0].mxu0
      %v1491 = vadd.f32 0.0, %v1490
      %v1492 = vpop.f32.mrb[0].mxu0
      %1493 = vmatprep.mubr.bf16.mxu0 0
      %1494 = vmatmul.mubr.bf16.gmra.mrb[0].mxu0 %v1339
      %v1495 = vpop.f32.mrb[0].mxu0
      %v1496 = vadd.f32 0.0, %v1495
      %v1497 = vpop.f32.mrb[0].mxu0
      %v1498 = vpop.f32.mrb[0].mxu0
      %v1499 = vadd.f32 0.0, %v1498
      %v1500 = vpop.f32.mrb[0].mxu0
      %1501 = vdwg.mxu0
      %v1502 = vadd.f32 %v1045, %v1376
      %v1503 = vadd.f32 %v1048, %v1379
      %v1504 = vadd.f32 %v1053, %v1384
      %v1505 = vadd.f32 %v1056, %v1387
      %v1506 = vadd.f32 %v1061, %v1392
      %v1507 = vadd.f32 %v1064, %v1395
      %v1508 = vadd.f32 %v1069, %v1400
      %v1509 = vadd.f32 %v1072, %v1403
      %v1510 = vadd.f32 %v1077, %v1408
      %v1511 = vadd.f32 %v1080, %v1411
      %v1512 = vadd.f32 %v1085, %v1416
      %v1513 = vadd.f32 %v1088, %v1419
      %v1514 = vadd.f32 %v1093, %v1424
      %v1515 = vadd.f32 %v1096, %v1427
      %v1516 = vadd.f32 %v1101, %v1432
      %v1517 = vadd.f32 %v1104, %v1435
      %v1518 = vadd.f32 %v1109, %v1440
      %v1519 = vadd.f32 %v1112, %v1443
      %v1520 = vadd.f32 %v1117, %v1448
      %v1521 = vadd.f32 %v1120, %v1451
      %v1522 = vadd.f32 %v1125, %v1456
      %v1523 = vadd.f32 %v1128, %v1459
      %v1524 = vadd.f32 %v1133, %v1464
      %v1525 = vadd.f32 %v1136, %v1467
      %v1526 = vadd.f32 %v1141, %v1472
      %v1527 = vadd.f32 %v1144, %v1475
      %v1528 = vadd.f32 %v1149, %v1480
      %v1529 = vadd.f32 %v1152, %v1483
      %v1530 = vadd.f32 %v1157, %v1488
      %v1531 = vadd.f32 %v1160, %v1491
      %v1532 = vadd.f32 %v1165, %v1496
      %v1533 = vadd.f32 %v1168, %v1499
      %v1534 = vld [vmem:[%s1171] sm:$0xf]
      %v1535 = vld [vmem:[%s1171 + $0x4] sm:$0xf]
      %v1536 = vld [vmem:[%s1171 + $0x8] sm:$0x1]
      %v1537 = vld [vmem:[%s1171 + $0xc] sm:$0xf]
      %v1538 = vld [vmem:[%s1171 + $0x10] sm:$0xf]
      %v1539 = vld [vmem:[%s1171 + $0x14] sm:$0x1]
      %v1540 = vld [vmem:[%s1171 + $0x18] sm:$0xf]
      %v1541 = vld [vmem:[%s1171 + $0x1c] sm:$0xf]
      %v1542 = vld [vmem:[%s1171 + $0x20] sm:$0x1]
      %v1543 = vld [vmem:[%s1171 + $0x24] sm:$0xf]
      %v1544 = vld [vmem:[%s1171 + $0x28] sm:$0xf]
      %v1545 = vld [vmem:[%s1171 + $0x2c] sm:$0x1]
      %v1546 = vld [vmem:[%s1171 + $0x30] sm:$0xf]
      %v1547 = vld [vmem:[%s1171 + $0x34] sm:$0xf]
      %v1548 = vld [vmem:[%s1171 + $0x38] sm:$0x1]
      %v1549 = vld [vmem:[%s1171 + $0x3c] sm:$0xf]
      %v1550 = vld [vmem:[%s1171 + $0x40] sm:$0xf]
      %v1551 = vld [vmem:[%s1171 + $0x44] sm:$0x1]
      %v1552 = vld [vmem:[%s1171 + $0x48] sm:$0xf]
      %v1553 = vld [vmem:[%s1171 + $0x4c] sm:$0xf]
      %v1554 = vld [vmem:[%s1171 + $0x50] sm:$0x1]
      %v1555 = vld [vmem:[%s1171 + $0x54] sm:$0xf]
      %v1556 = vld [vmem:[%s1171 + $0x58] sm:$0xf]
      %v1557 = vld [vmem:[%s1171 + $0x5c] sm:$0x1]
      %v1558 = vld [vmem:[%s1171 + $0x60] sm:$0xf]
      %v1559 = vld [vmem:[%s1171 + $0x64] sm:$0xf]
      %v1560 = vld [vmem:[%s1171 + $0x68] sm:$0x1]
      %v1561 = vld [vmem:[%s1171 + $0x6c] sm:$0xf]
      %v1562 = vld [vmem:[%s1171 + $0x70] sm:$0xf]
      %v1563 = vld [vmem:[%s1171 + $0x74] sm:$0x1]
      %v1564 = vld [vmem:[%s1171 + $0x78] sm:$0xf]
      %v1565 = vld [vmem:[%s1171 + $0x7c] sm:$0xf]
      %v1566 = vld [vmem:[%s1171 + $0x80] sm:$0x1]
      %v1567 = vld [vmem:[%s1171 + $0x84] sm:$0xf]
      %v1568 = vld [vmem:[%s1171 + $0x88] sm:$0xf]
      %v1569 = vld [vmem:[%s1171 + $0x8c] sm:$0x1]
      %v1570 = vld [vmem:[%s1171 + $0x90] sm:$0xf]
      %v1571 = vld [vmem:[%s1171 + $0x94] sm:$0xf]
      %v1572 = vld [vmem:[%s1171 + $0x98] sm:$0x1]
      %v1573 = vld [vmem:[%s1171 + $0x9c] sm:$0xf]
      %v1574 = vld [vmem:[%s1171 + $0xa0] sm:$0xf]
      %v1575 = vld [vmem:[%s1171 + $0xa4] sm:$0x1]
      %v1576 = vld [vmem:[%s1171 + $0xa8] sm:$0xf]
      %v1577 = vld [vmem:[%s1171 + $0xac] sm:$0xf]
      %v1578 = vld [vmem:[%s1171 + $0xb0] sm:$0x1]
      %v1579 = vld [vmem:[%s1171 + $0xb4] sm:$0xf]
      %v1580 = vld [vmem:[%s1171 + $0xb8] sm:$0xf]
      %v1581 = vld [vmem:[%s1171 + $0xbc] sm:$0x1]
      %v1583 = vshrl.u32 %v1534, 16
      %v1585 = vrot.slane %v1583, 4
      %v1586 = vshll.u32 %v1534, 16
      %v1588 = vrot.slane %v1586, 5
      %v1589 = vor.u32 %v1585, %v1588
      %v1590 = vrot.slane %v1589, 4
      %v1592 = vshll.u32 %v1535, 16
      %v1594 = vrot.slane %v1592, 5
      %v1595 = vsel %vm224, %v1590, %v1594
      %v1596 = vshrl.u32 %v1535, 16
      %v1598 = vrot.slane %v1596, 4
      %v1599 = vor.u32 %v1598, %v1594
      %v1600 = vrot.slane %v1599, 4
      %v1602 = vshll.u32 %v1536, 16
      %v1604 = vrot.slane %v1602, 5
      %v1605 = vsel %vm224, %v1600, %v1604
      %v1607 = vshrl.u32 %v1537, 16
      %v1609 = vrot.slane %v1607, 4
      %v1610 = vshll.u32 %v1537, 16
      %v1612 = vrot.slane %v1610, 5
      %v1613 = vor.u32 %v1609, %v1612
      %v1614 = vrot.slane %v1613, 4
      %v1616 = vshll.u32 %v1538, 16
      %v1618 = vrot.slane %v1616, 5
      %v1619 = vsel %vm224, %v1614, %v1618
      %v1620 = vshrl.u32 %v1538, 16
      %v1622 = vrot.slane %v1620, 4
      %v1623 = vor.u32 %v1622, %v1618
      %v1624 = vrot.slane %v1623, 4
      %v1626 = vshll.u32 %v1539, 16
      %v1628 = vrot.slane %v1626, 5
      %v1629 = vsel %vm224, %v1624, %v1628
      %v1631 = vshrl.u32 %v1540, 16
      %v1633 = vrot.slane %v1631, 4
      %v1634 = vshll.u32 %v1540, 16
      %v1636 = vrot.slane %v1634, 5
      %v1637 = vor.u32 %v1633, %v1636
      %v1638 = vrot.slane %v1637, 4
      %v1640 = vshll.u32 %v1541, 16
      %v1642 = vrot.slane %v1640, 5
      %v1643 = vsel %vm224, %v1638, %v1642
      %v1644 = vshrl.u32 %v1541, 16
      %v1646 = vrot.slane %v1644, 4
      %v1647 = vor.u32 %v1646, %v1642
      %v1648 = vrot.slane %v1647, 4
      %v1650 = vshll.u32 %v1542, 16
      %v1652 = vrot.slane %v1650, 5
      %v1653 = vsel %vm224, %v1648, %v1652
      %v1655 = vshrl.u32 %v1543, 16
      %v1657 = vrot.slane %v1655, 4
      %v1658 = vshll.u32 %v1543, 16
      %v1660 = vrot.slane %v1658, 5
      %v1661 = vor.u32 %v1657, %v1660
      %v1662 = vrot.slane %v1661, 4
      %v1664 = vshll.u32 %v1544, 16
      %v1666 = vrot.slane %v1664, 5
      %v1667 = vsel %vm224, %v1662, %v1666
      %v1668 = vshrl.u32 %v1544, 16
      %v1670 = vrot.slane %v1668, 4
      %v1671 = vor.u32 %v1670, %v1666
      %v1672 = vrot.slane %v1671, 4
      %v1674 = vshll.u32 %v1545, 16
      %v1676 = vrot.slane %v1674, 5
      %v1677 = vsel %vm224, %v1672, %v1676
      %v1679 = vshrl.u32 %v1546, 16
      %v1681 = vrot.slane %v1679, 4
      %v1682 = vshll.u32 %v1546, 16
      %v1684 = vrot.slane %v1682, 5
      %v1685 = vor.u32 %v1681, %v1684
      %v1686 = vrot.slane %v1685, 4
      %v1688 = vshll.u32 %v1547, 16
      %v1690 = vrot.slane %v1688, 5
      %v1691 = vsel %vm224, %v1686, %v1690
      %v1692 = vshrl.u32 %v1547, 16
      %v1694 = vrot.slane %v1692, 4
      %v1695 = vor.u32 %v1694, %v1690
      %v1696 = vrot.slane %v1695, 4
      %v1698 = vshll.u32 %v1548, 16
      %v1700 = vrot.slane %v1698, 5
      %v1701 = vsel %vm224, %v1696, %v1700
      %v1703 = vshrl.u32 %v1549, 16
      %v1705 = vrot.slane %v1703, 4
      %v1706 = vshll.u32 %v1549, 16
      %v1708 = vrot.slane %v1706, 5
      %v1709 = vor.u32 %v1705, %v1708
      %v1710 = vrot.slane %v1709, 4
      %v1712 = vshll.u32 %v1550, 16
      %v1714 = vrot.slane %v1712, 5
      %v1715 = vsel %vm224, %v1710, %v1714
      %v1716 = vshrl.u32 %v1550, 16
      %v1718 = vrot.slane %v1716, 4
      %v1719 = vor.u32 %v1718, %v1714
      %v1720 = vrot.slane %v1719, 4
      %v1722 = vshll.u32 %v1551, 16
      %v1724 = vrot.slane %v1722, 5
      %v1725 = vsel %vm224, %v1720, %v1724
      %v1727 = vshrl.u32 %v1552, 16
      %v1729 = vrot.slane %v1727, 4
      %v1730 = vshll.u32 %v1552, 16
      %v1732 = vrot.slane %v1730, 5
      %v1733 = vor.u32 %v1729, %v1732
      %v1734 = vrot.slane %v1733, 4
      %v1736 = vshll.u32 %v1553, 16
      %v1738 = vrot.slane %v1736, 5
      %v1739 = vsel %vm224, %v1734, %v1738
      %v1740 = vshrl.u32 %v1553, 16
      %v1742 = vrot.slane %v1740, 4
      %v1743 = vor.u32 %v1742, %v1738
      %v1744 = vrot.slane %v1743, 4
      %v1746 = vshll.u32 %v1554, 16
      %v1748 = vrot.slane %v1746, 5
      %v1749 = vsel %vm224, %v1744, %v1748
      %v1751 = vshrl.u32 %v1555, 16
      %v1753 = vrot.slane %v1751, 4
      %v1754 = vshll.u32 %v1555, 16
      %v1756 = vrot.slane %v1754, 5
      %v1757 = vor.u32 %v1753, %v1756
      %v1758 = vrot.slane %v1757, 4
      %v1760 = vshll.u32 %v1556, 16
      %v1762 = vrot.slane %v1760, 5
      %v1763 = vsel %vm224, %v1758, %v1762
      %v1764 = vshrl.u32 %v1556, 16
      %v1766 = vrot.slane %v1764, 4
      %v1767 = vor.u32 %v1766, %v1762
      %v1768 = vrot.slane %v1767, 4
      %v1770 = vshll.u32 %v1557, 16
      %v1772 = vrot.slane %v1770, 5
      %v1773 = vsel %vm224, %v1768, %v1772
      %v1775 = vshrl.u32 %v1558, 16
      %v1777 = vrot.slane %v1775, 4
      %v1778 = vshll.u32 %v1558, 16
      %v1780 = vrot.slane %v1778, 5
      %v1781 = vor.u32 %v1777, %v1780
      %v1782 = vrot.slane %v1781, 4
      %v1784 = vshll.u32 %v1559, 16
      %v1786 = vrot.slane %v1784, 5
      %v1787 = vsel %vm224, %v1782, %v1786
      %v1788 = vshrl.u32 %v1559, 16
      %v1790 = vrot.slane %v1788, 4
      %v1791 = vor.u32 %v1790, %v1786
      %v1792 = vrot.slane %v1791, 4
      %v1794 = vshll.u32 %v1560, 16
      %v1796 = vrot.slane %v1794, 5
      %v1797 = vsel %vm224, %v1792, %v1796
      %v1799 = vshrl.u32 %v1561, 16
      %v1801 = vrot.slane %v1799, 4
      %v1802 = vshll.u32 %v1561, 16
      %v1804 = vrot.slane %v1802, 5
      %v1805 = vor.u32 %v1801, %v1804
      %v1806 = vrot.slane %v1805, 4
      %v1808 = vshll.u32 %v1562, 16
      %v1810 = vrot.slane %v1808, 5
      %v1811 = vsel %vm224, %v1806, %v1810
      %v1812 = vshrl.u32 %v1562, 16
      %v1814 = vrot.slane %v1812, 4
      %v1815 = vor.u32 %v1814, %v1810
      %v1816 = vrot.slane %v1815, 4
      %v1818 = vshll.u32 %v1563, 16
      %v1820 = vrot.slane %v1818, 5
      %v1821 = vsel %vm224, %v1816, %v1820
      %v1823 = vshrl.u32 %v1564, 16
      %v1825 = vrot.slane %v1823, 4
      %v1826 = vshll.u32 %v1564, 16
      %v1828 = vrot.slane %v1826, 5
      %v1829 = vor.u32 %v1825, %v1828
      %v1830 = vrot.slane %v1829, 4
      %v1832 = vshll.u32 %v1565, 16
      %v1834 = vrot.slane %v1832, 5
      %v1835 = vsel %vm224, %v1830, %v1834
      %v1836 = vshrl.u32 %v1565, 16
      %v1838 = vrot.slane %v1836, 4
      %v1839 = vor.u32 %v1838, %v1834
      %v1840 = vrot.slane %v1839, 4
      %v1842 = vshll.u32 %v1566, 16
      %v1844 = vrot.slane %v1842, 5
      %v1845 = vsel %vm224, %v1840, %v1844
      %v1847 = vshrl.u32 %v1567, 16
      %v1849 = vrot.slane %v1847, 4
      %v1850 = vshll.u32 %v1567, 16
      %v1852 = vrot.slane %v1850, 5
      %v1853 = vor.u32 %v1849, %v1852
      %v1854 = vrot.slane %v1853, 4
      %v1856 = vshll.u32 %v1568, 16
      %v1858 = vrot.slane %v1856, 5
      %v1859 = vsel %vm224, %v1854, %v1858
      %v1860 = vshrl.u32 %v1568, 16
      %v1862 = vrot.slane %v1860, 4
      %v1863 = vor.u32 %v1862, %v1858
      %v1864 = vrot.slane %v1863, 4
      %v1866 = vshll.u32 %v1569, 16
      %v1868 = vrot.slane %v1866, 5
      %v1869 = vsel %vm224, %v1864, %v1868
      %v1871 = vshrl.u32 %v1570, 16
      %v1873 = vrot.slane %v1871, 4
      %v1874 = vshll.u32 %v1570, 16
      %v1876 = vrot.slane %v1874, 5
      %v1877 = vor.u32 %v1873, %v1876
      %v1878 = vrot.slane %v1877, 4
      %v1880 = vshll.u32 %v1571, 16
      %v1882 = vrot.slane %v1880, 5
      %v1883 = vsel %vm224, %v1878, %v1882
      %v1884 = vshrl.u32 %v1571, 16
      %v1886 = vrot.slane %v1884, 4
      %v1887 = vor.u32 %v1886, %v1882
      %v1888 = vrot.slane %v1887, 4
      %v1890 = vshll.u32 %v1572, 16
      %v1892 = vrot.slane %v1890, 5
      %v1893 = vsel %vm224, %v1888, %v1892
      %v1895 = vshrl.u32 %v1573, 16
      %v1897 = vrot.slane %v1895, 4
      %v1898 = vshll.u32 %v1573, 16
      %v1900 = vrot.slane %v1898, 5
      %v1901 = vor.u32 %v1897, %v1900
      %v1902 = vrot.slane %v1901, 4
      %v1904 = vshll.u32 %v1574, 16
      %v1906 = vrot.slane %v1904, 5
      %v1907 = vsel %vm224, %v1902, %v1906
      %v1908 = vshrl.u32 %v1574, 16
      %v1910 = vrot.slane %v1908, 4
      %v1911 = vor.u32 %v1910, %v1906
      %v1912 = vrot.slane %v1911, 4
      %v1914 = vshll.u32 %v1575, 16
      %v1916 = vrot.slane %v1914, 5
      %v1917 = vsel %vm224, %v1912, %v1916
      %v1919 = vshrl.u32 %v1576, 16
      %v1921 = vrot.slane %v1919, 4
      %v1922 = vshll.u32 %v1576, 16
      %v1924 = vrot.slane %v1922, 5
      %v1925 = vor.u32 %v1921, %v1924
      %v1926 = vrot.slane %v1925, 4
      %v1928 = vshll.u32 %v1577, 16
      %v1930 = vrot.slane %v1928, 5
      %v1931 = vsel %vm224, %v1926, %v1930
      %v1932 = vshrl.u32 %v1577, 16
      %v1934 = vrot.slane %v1932, 4
      %v1935 = vor.u32 %v1934, %v1930
      %v1936 = vrot.slane %v1935, 4
      %v1938 = vshll.u32 %v1578, 16
      %v1940 = vrot.slane %v1938, 5
      %v1941 = vsel %vm224, %v1936, %v1940
      %v1943 = vshrl.u32 %v1579, 16
      %v1945 = vrot.slane %v1943, 4
      %v1946 = vshll.u32 %v1579, 16
      %v1948 = vrot.slane %v1946, 5
      %v1949 = vor.u32 %v1945, %v1948
      %v1950 = vrot.slane %v1949, 4
      %v1952 = vshll.u32 %v1580, 16
      %v1954 = vrot.slane %v1952, 5
      %v1955 = vsel %vm224, %v1950, %v1954
      %v1956 = vshrl.u32 %v1580, 16
      %v1958 = vrot.slane %v1956, 4
      %v1959 = vor.u32 %v1958, %v1954
      %v1960 = vrot.slane %v1959, 4
      %v1962 = vshll.u32 %v1581, 16
      %v1964 = vrot.slane %v1962, 5
      %v1965 = vsel %vm224, %v1960, %v1964
      %s1966 = scalar_lea.vmem %s1, 24
      %v1967 = vld [vmem:[%s1966] sm:$0xf]
      %v1968 = vld [vmem:[%s1966 + $0x4] sm:$0xf]
      %v1969 = vunpack.c.l.b16 %v1595
      %v1970 = vunpack.c.l.b16 %v1605
      %v1971 = vunpack.c.l.b16 %v1619
      %v1972 = vunpack.c.l.b16 %v1629
      %v1973 = vunpack.c.l.b16 %v1643
      %v1974 = vunpack.c.l.b16 %v1653
      %v1975 = vunpack.c.l.b16 %v1667
      %v1976 = vunpack.c.l.b16 %v1677
      %v1977 = vunpack.c.l.b16 %v1691
      %v1978 = vunpack.c.l.b16 %v1701
      %v1979 = vunpack.c.l.b16 %v1715
      %v1980 = vunpack.c.l.b16 %v1725
      %v1981 = vunpack.c.l.b16 %v1739
      %v1982 = vunpack.c.l.b16 %v1749
      %v1983 = vunpack.c.l.b16 %v1763
      %v1984 = vunpack.c.l.b16 %v1773
      %v1985 = vunpack.c.l.b16 %v1787
      %v1986 = vunpack.c.l.b16 %v1797
      %v1987 = vunpack.c.l.b16 %v1811
      %v1988 = vunpack.c.l.b16 %v1821
      %v1989 = vunpack.c.l.b16 %v1835
      %v1990 = vunpack.c.l.b16 %v1845
      %v1991 = vunpack.c.l.b16 %v1859
      %v1992 = vunpack.c.l.b16 %v1869
      %v1993 = vunpack.c.l.b16 %v1883
      %v1994 = vunpack.c.l.b16 %v1893
      %v1995 = vunpack.c.l.b16 %v1907
      %v1996 = vunpack.c.l.b16 %v1917
      %v1997 = vunpack.c.l.b16 %v1931
      %v1998 = vunpack.c.l.b16 %v1941
      %v1999 = vunpack.c.l.b16 %v1955
      %v2000 = vunpack.c.l.b16 %v1965
      %v2001 = vpack.c.b16 %v1970, %v1969
      %v2002 = vpack.c.b16 %v1972, %v1971
      %v2003 = vpack.c.b16 %v1974, %v1973
      %v2004 = vpack.c.b16 %v1976, %v1975
      %v2005 = vpack.c.b16 %v1978, %v1977
      %v2006 = vpack.c.b16 %v1980, %v1979
      %v2007 = vpack.c.b16 %v1982, %v1981
      %v2008 = vpack.c.b16 %v1984, %v1983
      %v2009 = vpack.c.b16 %v1986, %v1985
      %v2010 = vpack.c.b16 %v1988, %v1987
      %v2011 = vpack.c.b16 %v1990, %v1989
      %v2012 = vpack.c.b16 %v1992, %v1991
      %v2013 = vpack.c.b16 %v1994, %v1993
      %v2014 = vpack.c.b16 %v1996, %v1995
      %v2015 = vpack.c.b16 %v1998, %v1997
      %v2016 = vpack.c.b16 %v2000, %v1999
      %v2019 = vunpack.c.l.b16 %v1967
      %v2020 = vunpack.c.l.b16 %v1968
      %v2021 = vpack.c.b16 %v2020, %v2019
      %v2024 = vsel %vm666, %v2001, 0
      %v2027 = vsel %vm666, %v2002, 0
      %v2030 = vsel %vm666, %v2003, 0
      %v2033 = vsel %vm666, %v2004, 0
      %v2036 = vsel %vm666, %v2005, 0
      %v2039 = vsel %vm666, %v2006, 0
      %v2042 = vsel %vm666, %v2007, 0
      %v2045 = vsel %vm666, %v2008, 0
      %v2048 = vsel %vm666, %v2009, 0
      %v2051 = vsel %vm666, %v2010, 0
      %v2054 = vsel %vm666, %v2011, 0
      %v2057 = vsel %vm666, %v2012, 0
      %v2060 = vsel %vm666, %v2013, 0
      %v2063 = vsel %vm666, %v2014, 0
      %v2066 = vsel %vm666, %v2015, 0
      %v2069 = vsel %vm666, %v2016, 0
      %2071 = vmatprep.subr.bf16.mxu0 0
      %2072 = vmatpush1.bf16.msra.mxu0 %v2021
      %2073 = vmatprep.subr.bf16.mxu0 0
      %2074 = vmatpush1.bf16.msra.mxu0 0
      %2075 = vmatprep.subr.bf16.mxu0 0
      %2076 = vmatpush1.bf16.msra.mxu0 0
      %2077 = vmatprep.subr.bf16.mxu0 0
      %2078 = vmatpush1.bf16.msra.mxu0 0
      %2079 = vmatprep.subr.bf16.mxu0 0
      %2080 = vmatpush1.bf16.msra.mxu0 0
      %2081 = vmatprep.subr.bf16.mxu0 0
      %2082 = vmatpush1.bf16.msra.mxu0 0
      %2083 = vmatprep.subr.bf16.mxu0 0
      %2084 = vmatpush1.bf16.msra.mxu0 0
      %2085 = vmatprep.subr.bf16.mxu0 0
      %2086 = vmatpush1.bf16.msra.mxu0 0
      %2087 = vmatprep.subr.bf16.mxu0 0
      %2088 = vmatpush1.bf16.msra.mxu0 0
      %2089 = vmatprep.subr.bf16.mxu0 0
      %2090 = vmatpush1.bf16.msra.mxu0 0
      %2091 = vmatprep.subr.bf16.mxu0 0
      %2092 = vmatpush1.bf16.msra.mxu0 0
      %2093 = vmatprep.subr.bf16.mxu0 0
      %2094 = vmatpush1.bf16.msra.mxu0 0
      %2095 = vmatprep.subr.bf16.mxu0 0
      %2096 = vmatpush1.bf16.msra.mxu0 0
      %2097 = vmatprep.subr.bf16.mxu0 0
      %2098 = vmatpush1.bf16.msra.mxu0 0
      %2099 = vmatprep.subr.bf16.mxu0 0
      %2100 = vmatpush1.bf16.msra.mxu0 0
      %2101 = vmatprep.subr.bf16.mxu0 0
      %2102 = vmatpush1.bf16.msra.mxu0 0
      %2103 = vmatprep.mubr.bf16.mxu0 0
      %2104 = vmatmul.mubr.bf16.gmra.mrb[0].mxu0 %v2024
      %v2105 = vpop.f32.mrb[0].mxu0
      %v2106 = vadd.f32 0.0, %v2105
      %v2107 = vpop.f32.mrb[0].mxu0
      %v2108 = vpop.f32.mrb[0].mxu0
      %v2109 = vadd.f32 0.0, %v2108
      %v2110 = vpop.f32.mrb[0].mxu0
      %2111 = vmatprep.mubr.bf16.mxu0 0
      %2112 = vmatmul.mubr.bf16.gmra.mrb[0].mxu0 %v2027
      %v2113 = vpop.f32.mrb[0].mxu0
      %v2114 = vadd.f32 0.0, %v2113
      %v2115 = vpop.f32.mrb[0].mxu0
      %v2116 = vpop.f32.mrb[0].mxu0
      %v2117 = vadd.f32 0.0, %v2116
      %v2118 = vpop.f32.mrb[0].mxu0
      %2119 = vmatprep.mubr.bf16.mxu0 0
      %2120 = vmatmul.mubr.bf16.gmra.mrb[0].mxu0 %v2030
      %v2121 = vpop.f32.mrb[0].mxu0
      %v2122 = vadd.f32 0.0, %v2121
      %v2123 = vpop.f32.mrb[0].mxu0
      %v2124 = vpop.f32.mrb[0].mxu0
      %v2125 = vadd.f32 0.0, %v2124
      %v2126 = vpop.f32.mrb[0].mxu0
      %2127 = vmatprep.mubr.bf16.mxu0 0
      %2128 = vmatmul.mubr.bf16.gmra.mrb[0].mxu0 %v2033
      %v2129 = vpop.f32.mrb[0].mxu0
      %v2130 = vadd.f32 0.0, %v2129
      %v2131 = vpop.f32.mrb[0].mxu0
      %v2132 = vpop.f32.mrb[0].mxu0
      %v2133 = vadd.f32 0.0, %v2132
      %v2134 = vpop.f32.mrb[0].mxu0
      %2135 = vmatprep.mubr.bf16.mxu0 0
      %2136 = vmatmul.mubr.bf16.gmra.mrb[0].mxu0 %v2036
      %v2137 = vpop.f32.mrb[0].mxu0
      %v2138 = vadd.f32 0.0, %v2137
      %v2139 = vpop.f32.mrb[0].mxu0
      %v2140 = vpop.f32.mrb[0].mxu0
      %v2141 = vadd.f32 0.0, %v2140
      %v2142 = vpop.f32.mrb[0].mxu0
      %2143 = vmatprep.mubr.bf16.mxu0 0
      %2144 = vmatmul.mubr.bf16.gmra.mrb[0].mxu0 %v2039
      %v2145 = vpop.f32.mrb[0].mxu0
      %v2146 = vadd.f32 0.0, %v2145
      %v2147 = vpop.f32.mrb[0].mxu0
      %v2148 = vpop.f32.mrb[0].mxu0
      %v2149 = vadd.f32 0.0, %v2148
      %v2150 = vpop.f32.mrb[0].mxu0
      %2151 = vmatprep.mubr.bf16.mxu0 0
      %2152 = vmatmul.mubr.bf16.gmra.mrb[0].mxu0 %v2042
      %v2153 = vpop.f32.mrb[0].mxu0
      %v2154 = vadd.f32 0.0, %v2153
      %v2155 = vpop.f32.mrb[0].mxu0
      %v2156 = vpop.f32.mrb[0].mxu0
      %v2157 = vadd.f32 0.0, %v2156
      %v2158 = vpop.f32.mrb[0].mxu0
      %2159 = vmatprep.mubr.bf16.mxu0 0
      %2160 = vmatmul.mubr.bf16.gmra.mrb[0].mxu0 %v2045
      %v2161 = vpop.f32.mrb[0].mxu0
      %v2162 = vadd.f32 0.0, %v2161
      %v2163 = vpop.f32.mrb[0].mxu0
      %v2164 = vpop.f32.mrb[0].mxu0
      %v2165 = vadd.f32 0.0, %v2164
      %v2166 = vpop.f32.mrb[0].mxu0
      %2167 = vmatprep.mubr.bf16.mxu0 0
      %2168 = vmatmul.mubr.bf16.gmra.mrb[0].mxu0 %v2048
      %v2169 = vpop.f32.mrb[0].mxu0
      %v2170 = vadd.f32 0.0, %v2169
      %v2171 = vpop.f32.mrb[0].mxu0
      %v2172 = vpop.f32.mrb[0].mxu0
      %v2173 = vadd.f32 0.0, %v2172
      %v2174 = vpop.f32.mrb[0].mxu0
      %2175 = vmatprep.mubr.bf16.mxu0 0
      %2176 = vmatmul.mubr.bf16.gmra.mrb[0].mxu0 %v2051
      %v2177 = vpop.f32.mrb[0].mxu0
      %v2178 = vadd.f32 0.0, %v2177
      %v2179 = vpop.f32.mrb[0].mxu0
      %v2180 = vpop.f32.mrb[0].mxu0
      %v2181 = vadd.f32 0.0, %v2180
      %v2182 = vpop.f32.mrb[0].mxu0
      %2183 = vmatprep.mubr.bf16.mxu0 0
      %2184 = vmatmul.mubr.bf16.gmra.mrb[0].mxu0 %v2054
      %v2185 = vpop.f32.mrb[0].mxu0
      %v2186 = vadd.f32 0.0, %v2185
      %v2187 = vpop.f32.mrb[0].mxu0
      %v2188 = vpop.f32.mrb[0].mxu0
      %v2189 = vadd.f32 0.0, %v2188
      %v2190 = vpop.f32.mrb[0].mxu0
      %2191 = vmatprep.mubr.bf16.mxu0 0
      %2192 = vmatmul.mubr.bf16.gmra.mrb[0].mxu0 %v2057
      %v2193 = vpop.f32.mrb[0].mxu0
      %v2194 = vadd.f32 0.0, %v2193
      %v2195 = vpop.f32.mrb[0].mxu0
      %v2196 = vpop.f32.mrb[0].mxu0
      %v2197 = vadd.f32 0.0, %v2196
      %v2198 = vpop.f32.mrb[0].mxu0
      %2199 = vmatprep.mubr.bf16.mxu0 0
      %2200 = vmatmul.mubr.bf16.gmra.mrb[0].mxu0 %v2060
      %v2201 = vpop.f32.mrb[0].mxu0
      %v2202 = vadd.f32 0.0, %v2201
      %v2203 = vpop.f32.mrb[0].mxu0
      %v2204 = vpop.f32.mrb[0].mxu0
      %v2205 = vadd.f32 0.0, %v2204
      %v2206 = vpop.f32.mrb[0].mxu0
      %2207 = vmatprep.mubr.bf16.mxu0 0
      %2208 = vmatmul.mubr.bf16.gmra.mrb[0].mxu0 %v2063
      %v2209 = vpop.f32.mrb[0].mxu0
      %v2210 = vadd.f32 0.0, %v2209
      %v2211 = vpop.f32.mrb[0].mxu0
      %v2212 = vpop.f32.mrb[0].mxu0
      %v2213 = vadd.f32 0.0, %v2212
      %v2214 = vpop.f32.mrb[0].mxu0
      %2215 = vmatprep.mubr.bf16.mxu0 0
      %2216 = vmatmul.mubr.bf16.gmra.mrb[0].mxu0 %v2066
      %v2217 = vpop.f32.mrb[0].mxu0
      %v2218 = vadd.f32 0.0, %v2217
      %v2219 = vpop.f32.mrb[0].mxu0
      %v2220 = vpop.f32.mrb[0].mxu0
      %v2221 = vadd.f32 0.0, %v2220
      %v2222 = vpop.f32.mrb[0].mxu0
      %2223 = vmatprep.mubr.bf16.mxu0 0
      %2224 = vmatmul.mubr.bf16.gmra.mrb[0].mxu0 %v2069
      %v2225 = vpop.f32.mrb[0].mxu0
      %v2226 = vadd.f32 0.0, %v2225
      %v2227 = vpop.f32.mrb[0].mxu0
      %v2228 = vpop.f32.mrb[0].mxu0
      %v2229 = vadd.f32 0.0, %v2228
      %v2230 = vpop.f32.mrb[0].mxu0
      %2231 = vdwg.mxu0
      %v2232 = vadd.f32 %v1502, %v2106
      %v2233 = vadd.f32 %v1503, %v2109
      %v2234 = vadd.f32 %v1504, %v2114
      %v2235 = vadd.f32 %v1505, %v2117
      %v2236 = vadd.f32 %v1506, %v2122
      %v2237 = vadd.f32 %v1507, %v2125
      %v2238 = vadd.f32 %v1508, %v2130
      %v2239 = vadd.f32 %v1509, %v2133
      %v2240 = vadd.f32 %v1510, %v2138
      %v2241 = vadd.f32 %v1511, %v2141
      %v2242 = vadd.f32 %v1512, %v2146
      %v2243 = vadd.f32 %v1513, %v2149
      %v2244 = vadd.f32 %v1514, %v2154
      %v2245 = vadd.f32 %v1515, %v2157
      %v2246 = vadd.f32 %v1516, %v2162
      %v2247 = vadd.f32 %v1517, %v2165
      %v2248 = vadd.f32 %v1518, %v2170
      %v2249 = vadd.f32 %v1519, %v2173
      %v2250 = vadd.f32 %v1520, %v2178
      %v2251 = vadd.f32 %v1521, %v2181
      %v2252 = vadd.f32 %v1522, %v2186
      %v2253 = vadd.f32 %v1523, %v2189
      %v2254 = vadd.f32 %v1524, %v2194
      %v2255 = vadd.f32 %v1525, %v2197
      %v2256 = vadd.f32 %v1526, %v2202
      %v2257 = vadd.f32 %v1527, %v2205
      %v2258 = vadd.f32 %v1528, %v2210
      %v2259 = vadd.f32 %v1529, %v2213
      %v2260 = vadd.f32 %v1530, %v2218
      %v2261 = vadd.f32 %v1531, %v2221
      %v2262 = vadd.f32 %v1532, %v2226
      %v2263 = vadd.f32 %v1533, %v2229
      %v2264 = vld [vmem:[%s2] sm:$0x1]
      %v2266 = vlaneseq
      %v2267 = vshrl.u32 %v2266, 7
      %v2268 = vsub.s32 0, %v2267
      %v2269 = vrot.slane %v2264, %v2268
      %v2271 = vadd.f32 %v2232, %v2269
      %v2272 = vadd.f32 %v2233, %v2269
      %v2273 = vadd.f32 %v2234, %v2269
      %v2274 = vadd.f32 %v2235, %v2269
      %v2275 = vadd.f32 %v2236, %v2269
      %v2276 = vadd.f32 %v2237, %v2269
      %v2277 = vadd.f32 %v2238, %v2269
      %v2278 = vadd.f32 %v2239, %v2269
      %v2279 = vadd.f32 %v2240, %v2269
      %v2280 = vadd.f32 %v2241, %v2269
      %v2281 = vadd.f32 %v2242, %v2269
      %v2282 = vadd.f32 %v2243, %v2269
      %v2283 = vadd.f32 %v2244, %v2269
      %v2284 = vadd.f32 %v2245, %v2269
      %v2285 = vadd.f32 %v2246, %v2269
      %v2286 = vadd.f32 %v2247, %v2269
      %v2287 = vadd.f32 %v2248, %v2269
      %v2288 = vadd.f32 %v2249, %v2269
      %v2289 = vadd.f32 %v2250, %v2269
      %v2290 = vadd.f32 %v2251, %v2269
      %v2291 = vadd.f32 %v2252, %v2269
      %v2292 = vadd.f32 %v2253, %v2269
      %v2293 = vadd.f32 %v2254, %v2269
      %v2294 = vadd.f32 %v2255, %v2269
      %v2295 = vadd.f32 %v2256, %v2269
      %v2296 = vadd.f32 %v2257, %v2269
      %v2297 = vadd.f32 %v2258, %v2269
      %v2298 = vadd.f32 %v2259, %v2269
      %v2299 = vadd.f32 %v2260, %v2269
      %v2300 = vadd.f32 %v2261, %v2269
      %v2301 = vadd.f32 %v2262, %v2269
      %v2302 = vadd.f32 %v2263, %v2269
      %v2303 = vmul.f32 %v2271, 0.1
      %v2304 = vmul.f32 %v2272, 0.1
      %v2305 = vmul.f32 %v2273, 0.1
      %v2306 = vmul.f32 %v2274, 0.1
      %v2307 = vmul.f32 %v2275, 0.1
      %v2308 = vmul.f32 %v2276, 0.1
      %v2309 = vmul.f32 %v2277, 0.1
      %v2310 = vmul.f32 %v2278, 0.1
      %v2311 = vmul.f32 %v2279, 0.1
      %v2312 = vmul.f32 %v2280, 0.1
      %v2313 = vmul.f32 %v2281, 0.1
      %v2314 = vmul.f32 %v2282, 0.1
      %v2315 = vmul.f32 %v2283, 0.1
      %v2316 = vmul.f32 %v2284, 0.1
      %v2317 = vmul.f32 %v2285, 0.1
      %v2318 = vmul.f32 %v2286, 0.1
      %v2319 = vmul.f32 %v2287, 0.1
      %v2320 = vmul.f32 %v2288, 0.1
      %v2321 = vmul.f32 %v2289, 0.1
      %v2322 = vmul.f32 %v2290, 0.1
      %v2323 = vmul.f32 %v2291, 0.1
      %v2324 = vmul.f32 %v2292, 0.1
      %v2325 = vmul.f32 %v2293, 0.1
      %v2326 = vmul.f32 %v2294, 0.1
      %v2327 = vmul.f32 %v2295, 0.1
      %v2328 = vmul.f32 %v2296, 0.1
      %v2329 = vmul.f32 %v2297, 0.1
      %v2330 = vmul.f32 %v2298, 0.1
      %v2331 = vmul.f32 %v2299, 0.1
      %v2332 = vmul.f32 %v2300, 0.1
      %v2333 = vmul.f32 %v2301, 0.1
      %v2334 = vmul.f32 %v2302, 0.1
      %v2335 = vmax.f32 %v2271, %v2303
      %v2336 = vmax.f32 %v2272, %v2304
      %v2337 = vmax.f32 %v2273, %v2305
      %v2338 = vmax.f32 %v2274, %v2306
      %v2339 = vmax.f32 %v2275, %v2307
      %v2340 = vmax.f32 %v2276, %v2308
      %v2341 = vmax.f32 %v2277, %v2309
      %v2342 = vmax.f32 %v2278, %v2310
      %v2343 = vmax.f32 %v2279, %v2311
      %v2344 = vmax.f32 %v2280, %v2312
      %v2345 = vmax.f32 %v2281, %v2313
      %v2346 = vmax.f32 %v2282, %v2314
      %v2347 = vmax.f32 %v2283, %v2315
      %v2348 = vmax.f32 %v2284, %v2316
      %v2349 = vmax.f32 %v2285, %v2317
      %v2350 = vmax.f32 %v2286, %v2318
      %v2351 = vmax.f32 %v2287, %v2319
      %v2352 = vmax.f32 %v2288, %v2320
      %v2353 = vmax.f32 %v2289, %v2321
      %v2354 = vmax.f32 %v2290, %v2322
      %v2355 = vmax.f32 %v2291, %v2323
      %v2356 = vmax.f32 %v2292, %v2324
      %v2357 = vmax.f32 %v2293, %v2325
      %v2358 = vmax.f32 %v2294, %v2326
      %v2359 = vmax.f32 %v2295, %v2327
      %v2360 = vmax.f32 %v2296, %v2328
      %v2361 = vmax.f32 %v2297, %v2329
      %v2362 = vmax.f32 %v2298, %v2330
      %v2363 = vmax.f32 %v2299, %v2331
      %v2364 = vmax.f32 %v2300, %v2332
      %v2365 = vmax.f32 %v2301, %v2333
      %v2366 = vmax.f32 %v2302, %v2334
      %v2367 = vpack.c.bf16 %v2336, %v2335
      %v2368 = vpack.c.bf16 %v2338, %v2337
      %v2369 = vpack.c.bf16 %v2340, %v2339
      %v2370 = vpack.c.bf16 %v2342, %v2341
      %v2371 = vpack.c.bf16 %v2344, %v2343
      %v2372 = vpack.c.bf16 %v2346, %v2345
      %v2373 = vpack.c.bf16 %v2348, %v2347
      %v2374 = vpack.c.bf16 %v2350, %v2349
      %v2375 = vpack.c.bf16 %v2352, %v2351
      %v2376 = vpack.c.bf16 %v2354, %v2353
      %v2377 = vpack.c.bf16 %v2356, %v2355
      %v2378 = vpack.c.bf16 %v2358, %v2357
      %v2379 = vpack.c.bf16 %v2360, %v2359
      %v2380 = vpack.c.bf16 %v2362, %v2361
      %v2381 = vpack.c.bf16 %v2364, %v2363
      %v2382 = vpack.c.bf16 %v2366, %v2365
      %v2399 = vunpack.c.l.b16 %v2367
      %v2400 = vunpack.c.h.b16 %v2367
      %v2401 = vunpack.c.l.b16 %v2368
      %v2402 = vunpack.c.h.b16 %v2368
      %v2403 = vunpack.c.l.b16 %v2369
      %v2404 = vunpack.c.h.b16 %v2369
      %v2405 = vunpack.c.l.b16 %v2370
      %v2406 = vunpack.c.h.b16 %v2370
      %v2407 = vunpack.c.l.b16 %v2371
      %v2408 = vunpack.c.h.b16 %v2371
      %v2409 = vunpack.c.l.b16 %v2372
      %v2410 = vunpack.c.h.b16 %v2372
      %v2411 = vunpack.c.l.b16 %v2373
      %v2412 = vunpack.c.h.b16 %v2373
      %v2413 = vunpack.c.l.b16 %v2374
      %v2414 = vunpack.c.h.b16 %v2374
      %v2415 = vunpack.c.l.b16 %v2375
      %v2416 = vunpack.c.h.b16 %v2375
      %v2417 = vunpack.c.l.b16 %v2376
      %v2418 = vunpack.c.h.b16 %v2376
      %v2419 = vunpack.c.l.b16 %v2377
      %v2420 = vunpack.c.h.b16 %v2377
      %v2421 = vunpack.c.l.b16 %v2378
      %v2422 = vunpack.c.h.b16 %v2378
      %v2423 = vunpack.c.l.b16 %v2379
      %v2424 = vunpack.c.h.b16 %v2379
      %v2425 = vunpack.c.l.b16 %v2380
      %v2426 = vunpack.c.h.b16 %v2380
      %v2427 = vunpack.c.l.b16 %v2381
      %v2428 = vunpack.c.h.b16 %v2381
      %v2429 = vunpack.c.l.b16 %v2382
      %v2430 = vunpack.c.h.b16 %v2382
      %v2431 = vpack.c.b16 %v2399, %v2399
      %v2432 = vpack.c.b16 %v2400, %v2400
      %v2433 = vpack.c.b16 %v2401, %v2401
      %v2434 = vpack.c.b16 %v2402, %v2402
      %v2435 = vpack.c.b16 %v2403, %v2403
      %v2436 = vpack.c.b16 %v2404, %v2404
      %v2437 = vpack.c.b16 %v2405, %v2405
      %v2438 = vpack.c.b16 %v2406, %v2406
      %v2439 = vpack.c.b16 %v2407, %v2407
      %v2440 = vpack.c.b16 %v2408, %v2408
      %v2441 = vpack.c.b16 %v2409, %v2409
      %v2442 = vpack.c.b16 %v2410, %v2410
      %v2443 = vpack.c.b16 %v2411, %v2411
      %v2444 = vpack.c.b16 %v2412, %v2412
      %v2445 = vpack.c.b16 %v2413, %v2413
      %v2446 = vpack.c.b16 %v2414, %v2414
      %v2447 = vpack.c.b16 %v2415, %v2415
      %v2448 = vpack.c.b16 %v2416, %v2416
      %v2449 = vpack.c.b16 %v2417, %v2417
      %v2450 = vpack.c.b16 %v2418, %v2418
      %v2451 = vpack.c.b16 %v2419, %v2419
      %v2452 = vpack.c.b16 %v2420, %v2420
      %v2453 = vpack.c.b16 %v2421, %v2421
      %v2454 = vpack.c.b16 %v2422, %v2422
      %v2455 = vpack.c.b16 %v2423, %v2423
      %v2456 = vpack.c.b16 %v2424, %v2424
      %v2457 = vpack.c.b16 %v2425, %v2425
      %v2458 = vpack.c.b16 %v2426, %v2426
      %v2459 = vpack.c.b16 %v2427, %v2427
      %v2460 = vpack.c.b16 %v2428, %v2428
      %v2461 = vpack.c.b16 %v2429, %v2429
      %v2462 = vpack.c.b16 %v2430, %v2430
      %vm2495 = vcmask 60416
      %2496 = vst.msk [vmem:[%s170] sm:$0xf] %vm2495, %v2431
      %2497 = vst.msk [vmem:[%s170 + $0x4] sm:$0xf] %vm2495, %v2432
      %2498 = vst.msk [vmem:[%s170 + $0x8] sm:$0xf] %vm2495, %v2433
      %2499 = vst.msk [vmem:[%s170 + $0xc] sm:$0xf] %vm2495, %v2434
      %2500 = vst.msk [vmem:[%s170 + $0x10] sm:$0xf] %vm2495, %v2435
      %2501 = vst.msk [vmem:[%s170 + $0x14] sm:$0xf] %vm2495, %v2436
      %2502 = vst.msk [vmem:[%s170 + $0x18] sm:$0xf] %vm2495, %v2437
      %2503 = vst.msk [vmem:[%s170 + $0x1c] sm:$0xf] %vm2495, %v2438
      %2504 = vst.msk [vmem:[%s170 + $0x20] sm:$0xf] %vm2495, %v2439
      %2505 = vst.msk [vmem:[%s170 + $0x24] sm:$0xf] %vm2495, %v2440
      %2506 = vst.msk [vmem:[%s170 + $0x28] sm:$0xf] %vm2495, %v2441
      %2507 = vst.msk [vmem:[%s170 + $0x2c] sm:$0xf] %vm2495, %v2442
      %2508 = vst.msk [vmem:[%s170 + $0x30] sm:$0xf] %vm2495, %v2443
      %2509 = vst.msk [vmem:[%s170 + $0x34] sm:$0xf] %vm2495, %v2444
      %2510 = vst.msk [vmem:[%s170 + $0x38] sm:$0xf] %vm2495, %v2445
      %2511 = vst.msk [vmem:[%s170 + $0x3c] sm:$0xf] %vm2495, %v2446
      %2512 = vst.msk [vmem:[%s170 + $0x40] sm:$0xf] %vm2495, %v2447
      %2513 = vst.msk [vmem:[%s170 + $0x44] sm:$0xf] %vm2495, %v2448
      %2514 = vst.msk [vmem:[%s170 + $0x48] sm:$0xf] %vm2495, %v2449
      %2515 = vst.msk [vmem:[%s170 + $0x4c] sm:$0xf] %vm2495, %v2450
      %2516 = vst.msk [vmem:[%s170 + $0x50] sm:$0xf] %vm2495, %v2451
      %2517 = vst.msk [vmem:[%s170 + $0x54] sm:$0xf] %vm2495, %v2452
      %2518 = vst.msk [vmem:[%s170 + $0x58] sm:$0xf] %vm2495, %v2453
      %2519 = vst.msk [vmem:[%s170 + $0x5c] sm:$0xf] %vm2495, %v2454
      %2520 = vst.msk [vmem:[%s170 + $0x60] sm:$0xf] %vm2495, %v2455
      %2521 = vst.msk [vmem:[%s170 + $0x64] sm:$0xf] %vm2495, %v2456
      %2522 = vst.msk [vmem:[%s170 + $0x68] sm:$0xf] %vm2495, %v2457
      %2523 = vst.msk [vmem:[%s170 + $0x6c] sm:$0xf] %vm2495, %v2458
      %2524 = vst.msk [vmem:[%s170 + $0x70] sm:$0xf] %vm2495, %v2459
      %2525 = vst.msk [vmem:[%s170 + $0x74] sm:$0xf] %vm2495, %v2460
      %2526 = vst.msk [vmem:[%s170 + $0x78] sm:$0xf] %vm2495, %v2461
      %2527 = vst.msk [vmem:[%s170 + $0x7c] sm:$0xf] %vm2495, %v2462
      %p2528 = scmp.lt.s32.totalorder %s14, 1
      %s2529 = scalar_select %p2528, %s14, 1
      %s2530 = smul.addr %s2529, 32
      %s2531 = smul.addr %s2530, 4
      %s2532 = scalar_lea.vmem %s3, %s2531
      // Predicated region
      $region33: #{discriminator_forward.5} parent=31 // pred_check
        %p2533 = pneg %p100
      $region34: #{discriminator_forward.5} parent=31 // pred_check_branch
        %2535 = sbr.rel (%p2533) target = $region36
      $region35: #{discriminator_forward.5} parent=31 // pred_region
        _
      $region36: #{discriminator_forward.5} parent=31 // pred_fallthru
        _
    $region32: #{discriminator_forward.5} parent=5 // pred_fallthru
      _
    %p2536 = scmp.le.s32.totalorder 2, %s9
    // Predicated region
    $region37: #{discriminator_forward.5} parent=5 // pred_check
      %p2537 = pneg %p2536
    $region38: #{discriminator_forward.5} parent=5 // pred_check_branch
      %2539 = sbr.rel (%p2537) target = $region40
    $region39: #{discriminator_forward.5} parent=5 // pred_region
      %s2540 = ssub.s32 %s9, 2
      // Predicated region
      $region41: #{discriminator_forward.5} parent=39 // pred_check
        %p2541 = pneg %p106
      $region42: #{discriminator_forward.5} parent=39 // pred_check_branch
        %2543 = sbr.rel (%p2541) target = $region44
      $region43: #{discriminator_forward.5} parent=39 // pred_region
        %p2544 = scmp.lt.s32.totalorder %s15, 1
        %s2545 = scalar_select %p2544, %s15, 1
        %s2546 = smul.addr %s2545, 32
        %s2547 = smul.addr %s2546, 4
        %s2548 = scalar_lea.vmem %s3, %s2547
      $region44: #{discriminator_forward.5} parent=39 // pred_fallthru
        _
    $region40: #{discriminator_forward.5} parent=5 // pred_fallthru
      _
  $region6: #{discriminator_forward.5} parent=0 // loop_footer
    %s13 = sadd.s32 1, %s9
  $region7: #{discriminator_forward.5} parent=0 // loop_footer_branch
    %8 = sbr.rel target = $region3
  $region8: #{discriminator_forward.5} parent=0 // loop_exit
    _

// kernel: discriminator_forward.6
$region0: #{discriminator_forward.6}
  #allocation0 [shape = 'u32[]', space=smem, size = 0x4, offset = 0x4, fixed_abs, tag = 'smem constant byte address 0x4 - core index']
  #allocation1 [shape = 'u32[144,128]{1,0:T(1,128)}', space=vmem, size = 0x12000, scoped, tag = 'internal scratch']
  %s0 = inlined_call_operand.vmem [shape: bf16[2,9,9,32], index: 0, kind: input, shape index: {}]
  %s1 = inlined_call_operand.vmem [shape: bf16[4,32,16], index: 1, kind: input, shape index: {}]
  %s2 = inlined_call_operand.vmem [shape: f32[1,16], index: 2, kind: input, shape index: {}]
  %s3 = inlined_call_operand.vmem [shape: bf16[2,64,16], index: 3, kind: output, shape index: {}]
  %s4 = sld [smem:[#allocation0]]
  $region45: #{discriminator_forward.6} parent=0
    _
  %s6 = ssub.s32 1, %s4
  %s7 = scalar_select 0, %s6, %s4
  loop: start=0, step=1, limit=4
  $region2: #{discriminator_forward.6} parent=0 // loop_pre_header
    _
  $region3: #{discriminator_forward.6} parent=0 // loop_header
    %s9 = sphi 0, %s13
    %p10 = scmp.ge.s32.totalorder %s9, 4
    %s19 = sphi 0, %s21
    %s22 = sphi 0, %s19
    %s23 = sphi 0, %s22
    %s39 = sphi 0, %s23
    %s43 = sphi 0, %s43
    %s45 = sphi 0, %s43
    %s46 = sphi 0, %s45
    %s60 = sphi 0, %s46
    %s64 = sphi 0, %s64
    %s66 = sphi 0, %s64
    %s67 = sphi 0, %s66
    %s81 = sphi 0, %s67
    %s87 = sphi 0, %s89
    %s90 = sphi 0, %s87
    %s91 = sphi 0, %s90
    %s107 = sphi 0, %s91
  $region4: #{discriminator_forward.6} parent=0 // loop_header_branch
    %12 = sbr.rel (%p10) target = $region8
  $region5: #{discriminator_forward.6} parent=0 // loop_body
    %s14 = ssub.s32 %s9, 1
    %s15 = ssub.s32 %s9, 2
    %s16 = sadd.s32 %s9, 1
    %s17 = ssub.s32 %s9, %s16
    %p18 = scmp.eq.s32.totalorder %s17, 0
    %s20 = sadd.s32 %s19, 1
    %s21 = scalar_select %p18, %s19, %s20
    %p24 = pneg %p18
    %p25 = scmp.eq.s32.totalorder %s9, 1
    %p26 = por %p24, %p25
    %p27 = scmp.ne.s32.totalorder %s19, %s22
    %p28 = scmp.eq.s32.totalorder %s9, 0
    %p29 = por %p27, %p28
    %p30 = scmp.ne.s32.totalorder %s19, %s22
    %p31 = scmp.eq.s32.totalorder %s14, 1
    %p32 = por %p30, %p31
    %p33 = scmp.ne.s32.totalorder %s22, %s23
    %p34 = scmp.eq.s32.totalorder %s14, 0
    %p35 = por %p33, %p34
    %p36 = scmp.ne.s32.totalorder %s22, %s23
    %p37 = scmp.eq.s32.totalorder %s15, 1
    %p38 = por %p36, %p37
    %p40 = scmp.ne.s32.totalorder %s23, %s39
    %p41 = scmp.eq.s32.totalorder %s15, 0
    %p42 = por %p40, %p41
    %s44 = sadd.s32 %s43, 1
    %p47 = scmp.eq.s32.totalorder %s9, 1
    %p48 = scmp.ne.s32.totalorder %s43, %s45
    %p49 = scmp.eq.s32.totalorder %s9, 0
    %p50 = por %p48, %p49
    %p51 = scmp.ne.s32.totalorder %s43, %s45
    %p52 = scmp.eq.s32.totalorder %s14, 1
    %p53 = por %p51, %p52
    %p54 = scmp.ne.s32.totalorder %s45, %s46
    %p55 = scmp.eq.s32.totalorder %s14, 0
    %p56 = por %p54, %p55
    %p57 = scmp.ne.s32.totalorder %s45, %s46
    %p58 = scmp.eq.s32.totalorder %s15, 1
    %p59 = por %p57, %p58
    %p61 = scmp.ne.s32.totalorder %s46, %s60
    %p62 = scmp.eq.s32.totalorder %s15, 0
    %p63 = por %p61, %p62
    %s65 = sadd.s32 %s64, 1
    %p68 = scmp.eq.s32.totalorder %s9, 1
    %p69 = scmp.ne.s32.totalorder %s64, %s66
    %p70 = scmp.eq.s32.totalorder %s9, 0
    %p71 = por %p69, %p70
    %p72 = scmp.ne.s32.totalorder %s64, %s66
    %p73 = scmp.eq.s32.totalorder %s14, 1
    %p74 = por %p72, %p73
    %p75 = scmp.ne.s32.totalorder %s66, %s67
    %p76 = scmp.eq.s32.totalorder %s14, 0
    %p77 = por %p75, %p76
    %p78 = scmp.ne.s32.totalorder %s66, %s67
    %p79 = scmp.eq.s32.totalorder %s15, 1
    %p80 = por %p78, %p79
    %p82 = scmp.ne.s32.totalorder %s67, %s81
    %p83 = scmp.eq.s32.totalorder %s15, 0
    %p84 = por %p82, %p83
    %s85 = ssub.s32 %s9, %s16
    %p86 = scmp.eq.s32.totalorder %s85, 0
    %s88 = sadd.s32 %s87, 1
    %s89 = scalar_select %p86, %s87, %s88
    %p92 = pneg %p86
    %p93 = scmp.eq.s32.totalorder %s9, 1
    %p94 = por %p92, %p93
    %p95 = scmp.ne.s32.totalorder %s87, %s90
    %p96 = scmp.eq.s32.totalorder %s9, 0
    %p97 = por %p95, %p96
    %p98 = scmp.ne.s32.totalorder %s87, %s90
    %p99 = scmp.eq.s32.totalorder %s14, 1
    %p100 = por %p98, %p99
    %p101 = scmp.ne.s32.totalorder %s90, %s91
    %p102 = scmp.eq.s32.totalorder %s14, 0
    %p103 = por %p101, %p102
    %p104 = scmp.ne.s32.totalorder %s90, %s91
    %p105 = scmp.eq.s32.totalorder %s15, 1
    %p106 = por %p104, %p105
    %p108 = scmp.ne.s32.totalorder %s91, %s107
    %p109 = scmp.eq.s32.totalorder %s15, 0
    %p110 = por %p108, %p109
    %p111 = scmp.le.s32.totalorder 1, %s9
    %p112 = scmp.lt.s32.totalorder %s9, 3
    %p113 = pnand %p111, %p112
    %p114 = pneg %p113
    // Predicated region
    $region9: #{discriminator_forward.6} parent=5 // pred_check
      _
    $region10: #{discriminator_forward.6} parent=5 // pred_check_branch
      %116 = sbr.rel (%p113) target = $region12
    $region11: #{discriminator_forward.6} parent=5 // pred_region
      %s117 = ssub.s32 %s9, 1
      // Predicated region
      $region13: #{discriminator_forward.6} parent=11 // pred_check
        %p118 = pneg %p56
      $region14: #{discriminator_forward.6} parent=11 // pred_check_branch
        %120 = sbr.rel (%p118) target = $region16
      $region15: #{discriminator_forward.6} parent=11 // pred_region
        _
      $region16: #{discriminator_forward.6} parent=11 // pred_fallthru
        _
      // Predicated region
      $region17: #{discriminator_forward.6} parent=11 // pred_check
        %p121 = pneg %p77
      $region18: #{discriminator_forward.6} parent=11 // pred_check_branch
        %123 = sbr.rel (%p121) target = $region20
      $region19: #{discriminator_forward.6} parent=11 // pred_region
        _
      $region20: #{discriminator_forward.6} parent=11 // pred_fallthru
        _
    $region12: #{discriminator_forward.6} parent=5 // pred_fallthru
      _
    %p124 = scmp.lt.s32.totalorder %s9, 2
    // Predicated region
    $region21: #{discriminator_forward.6} parent=5 // pred_check
      %p125 = pneg %p124
    $region22: #{discriminator_forward.6} parent=5 // pred_check_branch
      %127 = sbr.rel (%p125) target = $region24
    $region23: #{discriminator_forward.6} parent=5 // pred_region
      // Predicated region
      $region25: #{discriminator_forward.6} parent=23 // pred_check
        %p128 = pneg %p29
      $region26: #{discriminator_forward.6} parent=23 // pred_check_branch
        %130 = sbr.rel (%p128) target = $region28
      $region27: #{discriminator_forward.6} parent=23 // pred_region
        %p131 = scmp.lt.s32.totalorder %s9, 1
        %s132 = scalar_select %p131, %s9, 1
        %s133 = smul.addr %s132, 18
        %s134 = smul.addr %s133, 4
        %s135 = scalar_lea.vmem %s0, %s134
      $region28: #{discriminator_forward.6} parent=23 // pred_fallthru
        _
    $region24: #{discriminator_forward.6} parent=5 // pred_fallthru
      _
    %p136 = scmp.le.s32.totalorder 1, %s9
    %p137 = scmp.lt.s32.totalorder %s9, 3
    %p138 = pnand %p136, %p137
    %p139 = pneg %p138
    // Predicated region
    $region29: #{discriminator_forward.6} parent=5 // pred_check
      _
    $region30: #{discriminator_forward.6} parent=5 // pred_check_branch
      %141 = sbr.rel (%p138) target = $region32
    $region31: #{discriminator_forward.6} parent=5 // pred_region
      %s142 = ssub.s32 %s9, 1
      %p143 = scmp.lt.s32.totalorder %s14, 1
      %s144 = scalar_select %p143, %s14, 1
      %s145 = smul.addr %s144, 18
      %s146 = smul.addr %s145, 4
      %s147 = scalar_lea.vmem %s0, %s146
      %p148 = pneg %p35
      %p149 = pneg %p32
      %p150 = pneg %p56
      %p151 = pneg %p53
      %p152 = pneg %p77
      %p153 = pneg %p74
      %p154 = pneg %p103
      %p155 = pneg %p100
      %p156 = scmp.lt.s32.totalorder %s14, 1
      %s157 = scalar_select %p156, %s14, 1
      %s158 = smul.addr %s157, 8
      %s159 = smul.addr %s158, 4
      %s160 = scalar_lea.vmem %s3, %s159
      %p161 = scmp.lt.s32.totalorder %s14, 1
      %s162 = scalar_select %p161, %s14, 1
      %s163 = smul.addr %s162, 18
      %s164 = smul.addr %s163, 4
      %s165 = scalar_lea.vmem %s0, %s164
      %p166 = scmp.lt.s32.totalorder %s14, 1
      %s167 = scalar_select %p166, %s14, 1
      %s168 = smul.addr %s167, 8
      %s169 = smul.addr %s168, 4
      %s170 = scalar_lea.vmem %s3, %s169
      %v172 = vld [vmem:[%s165] sm:$0xf]
      %v173 = vld [vmem:[%s165 + $0x8] sm:$0xf]
      %v174 = vld [vmem:[%s165 + $0x10] sm:$0xf]
      %v175 = vld [vmem:[%s165 + $0x18] sm:$0xf]
      %v176 = vld [vmem:[%s165 + $0x20] sm:$0xf]
      %v177 = vld [vmem:[%s165 + $0x28] sm:$0xf]
      %v178 = vld [vmem:[%s165 + $0x30] sm:$0xf]
      %v179 = vld [vmem:[%s165 + $0x38] sm:$0xf]
      %v180 = vld [vmem:[%s1] sm:$0xf]
      %v181 = vld [vmem:[%s1 + $0x4] sm:$0xf]
      %v182 = vld [vmem:[%s1 + $0x8] sm:$0xf]
      %v183 = vld [vmem:[%s1 + $0xc] sm:$0xf]
      %v184 = vld [vmem:[%s165 + $0x4] sm:$0x1]
      %v185 = vld [vmem:[%s165 + $0xc] sm:$0x1]
      %v186 = vld [vmem:[%s165 + $0x14] sm:$0x1]
      %v187 = vld [vmem:[%s165 + $0x1c] sm:$0x1]
      %v188 = vld [vmem:[%s165 + $0x24] sm:$0x1]
      %v189 = vld [vmem:[%s165 + $0x2c] sm:$0x1]
      %v190 = vld [vmem:[%s165 + $0x34] sm:$0x1]
      %v191 = vld [vmem:[%s165 + $0x3c] sm:$0x1]
      %vm192 = vsmask.f32 3328
      %vm193 = vsmask.f32 7440
      %vm194 = vmor %vm192, %vm193
      %v196 = vshrl.u32 %v172, 16
      %v198 = vrot.slane %v196, 4
      %v199 = vshll.u32 %v172, 16
      %v201 = vrot.slane %v199, 5
      %v202 = vor.u32 %v198, %v201
      %v203 = vrot.slane %v202, 4
      %v205 = vshll.u32 %v184, 16
      %v207 = vrot.slane %v205, 5
      %v208 = vsel %vm194, %v203, %v207
      %v210 = vshrl.u32 %v173, 16
      %v212 = vrot.slane %v210, 4
      %v213 = vshll.u32 %v173, 16
      %v215 = vrot.slane %v213, 5
      %v216 = vor.u32 %v212, %v215
      %v217 = vrot.slane %v216, 4
      %v219 = vshll.u32 %v185, 16
      %v221 = vrot.slane %v219, 5
      %v222 = vsel %vm194, %v217, %v221
      %v224 = vshrl.u32 %v174, 16
      %v226 = vrot.slane %v224, 4
      %v227 = vshll.u32 %v174, 16
      %v229 = vrot.slane %v227, 5
      %v230 = vor.u32 %v226, %v229
      %v231 = vrot.slane %v230, 4
      %v233 = vshll.u32 %v186, 16
      %v235 = vrot.slane %v233, 5
      %v236 = vsel %vm194, %v231, %v235
      %v238 = vshrl.u32 %v175, 16
      %v240 = vrot.slane %v238, 4
      %v241 = vshll.u32 %v175, 16
      %v243 = vrot.slane %v241, 5
      %v244 = vor.u32 %v240, %v243
      %v245 = vrot.slane %v244, 4
      %v247 = vshll.u32 %v187, 16
      %v249 = vrot.slane %v247, 5
      %v250 = vsel %vm194, %v245, %v249
      %v252 = vshrl.u32 %v176, 16
      %v254 = vrot.slane %v252, 4
      %v255 = vshll.u32 %v176, 16
      %v257 = vrot.slane %v255, 5
      %v258 = vor.u32 %v254, %v257
      %v259 = vrot.slane %v258, 4
      %v261 = vshll.u32 %v188, 16
      %v263 = vrot.slane %v261, 5
      %v264 = vsel %vm194, %v259, %v263
      %v266 = vshrl.u32 %v177, 16
      %v268 = vrot.slane %v266, 4
      %v269 = vshll.u32 %v177, 16
      %v271 = vrot.slane %v269, 5
      %v272 = vor.u32 %v268, %v271
      %v273 = vrot.slane %v272, 4
      %v275 = vshll.u32 %v189, 16
      %v277 = vrot.slane %v275, 5
      %v278 = vsel %vm194, %v273, %v277
      %v280 = vshrl.u32 %v178, 16
      %v282 = vrot.slane %v280, 4
      %v283 = vshll.u32 %v178, 16
      %v285 = vrot.slane %v283, 5
      %v286 = vor.u32 %v282, %v285
      %v287 = vrot.slane %v286, 4
      %v289 = vshll.u32 %v190, 16
      %v291 = vrot.slane %v289, 5
      %v292 = vsel %vm194, %v287, %v291
      %v294 = vshrl.u32 %v179, 16
      %v296 = vrot.slane %v294, 4
      %v297 = vshll.u32 %v179, 16
      %v299 = vrot.slane %v297, 5
      %v300 = vor.u32 %v296, %v299
      %v301 = vrot.slane %v300, 4
      %v303 = vshll.u32 %v191, 16
      %v305 = vrot.slane %v303, 5
      %v306 = vsel %vm194, %v301, %v305
      %s307 = scalar_lea.vmem %s1, 16
      %v308 = vld [vmem:[%s307] sm:$0xf]
      %v309 = vld [vmem:[%s307 + $0x4] sm:$0xf]
      %v310 = vld [vmem:[%s307 + $0x8] sm:$0xf]
      %v311 = vld [vmem:[%s307 + $0xc] sm:$0xf]
      %v312 = vunpack.c.l.b16 %v208
      %v313 = vunpack.c.l.b16 %v222
      %v314 = vunpack.c.l.b16 %v236
      %v315 = vunpack.c.l.b16 %v250
      %v316 = vunpack.c.l.b16 %v264
      %v317 = vunpack.c.l.b16 %v278
      %v318 = vunpack.c.l.b16 %v292
      %v319 = vunpack.c.l.b16 %v306
      %v320 = vpack.c.b16 %v313, %v312
      %v321 = vpack.c.b16 %v315, %v314
      %v322 = vpack.c.b16 %v317, %v316
      %v323 = vpack.c.b16 %v319, %v318
      %v328 = vunpack.c.l.b16 %v308
      %v329 = vunpack.c.l.b16 %v309
      %v330 = vunpack.c.l.b16 %v310
      %v331 = vunpack.c.l.b16 %v311
      %v332 = vpack.c.b16 %v329, %v328
      %v333 = vpack.c.b16 %v331, %v330
      %vm336 = vcmask 261120
      %v338 = vsel %vm336, %v320, 0
      %v341 = vsel %vm336, %v321, 0
      %v344 = vsel %vm336, %v322, 0
      %v347 = vsel %vm336, %v323, 0
      %349 = vmatprep.subr.bf16.mxu0 0
      %350 = vmatpush1.bf16.msra.mxu0 %v332
      %351 = vmatprep.subr.bf16.mxu0 0
      %352 = vmatpush1.bf16.msra.mxu0 %v333
      %353 = vmatprep.subr.bf16.mxu0 0
      %354 = vmatpush1.bf16.msra.mxu0 0
      %355 = vmatprep.subr.bf16.mxu0 0
      %356 = vmatpush1.bf16.msra.mxu0 0
      %357 = vmatprep.subr.bf16.mxu0 0
      %358 = vmatpush1.bf16.msra.mxu0 0
      %359 = vmatprep.subr.bf16.mxu0 0
      %360 = vmatpush1.bf16.msra.mxu0 0
      %361 = vmatprep.subr.bf16.mxu0 0
      %362 = vmatpush1.bf16.msra.mxu0 0
      %363 = vmatprep.subr.bf16.mxu0 0
      %364 = vmatpush1.bf16.msra.mxu0 0
      %365 = vmatprep.subr.bf16.mxu0 0
      %366 = vmatpush1.bf16.msra.mxu0 0
      %367 = vmatprep.subr.bf16.mxu0 0
      %368 = vmatpush1.bf16.msra.mxu0 0
      %369 = vmatprep.subr.bf16.mxu0 0
      %370 = vmatpush1.bf16.msra.mxu0 0
      %371 = vmatprep.subr.bf16.mxu0 0
      %372 = vmatpush1.bf16.msra.mxu0 0
      %373 = vmatprep.subr.bf16.mxu0 0
      %374 = vmatpush1.bf16.msra.mxu0 0
      %375 = vmatprep.subr.bf16.mxu0 0
      %376 = vmatpush1.bf16.msra.mxu0 0
      %377 = vmatprep.subr.bf16.mxu0 0
      %378 = vmatpush1.bf16.msra.mxu0 0
      %379 = vmatprep.subr.bf16.mxu0 0
      %380 = vmatpush1.bf16.msra.mxu0 0
      %381 = vmatprep.mubr.bf16.mxu0 0
      %382 = vmatmul.mubr.bf16.gmra.mrb[0].mxu0 %v338
      %v383 = vpop.f32.mrb[0].mxu0
      %v384 = vadd.f32 0.0, %v383
      %v385 = vpop.f32.mrb[0].mxu0
      %v386 = vpop.f32.mrb[0].mxu0
      %v387 = vadd.f32 0.0, %v386
      %v388 = vpop.f32.mrb[0].mxu0
      %389 = vmatprep.mubr.bf16.mxu0 0
      %390 = vmatmul.mubr.bf16.gmra.mrb[0].mxu0 %v341
      %v391 = vpop.f32.mrb[0].mxu0
      %v392 = vadd.f32 0.0, %v391
      %v393 = vpop.f32.mrb[0].mxu0
      %v394 = vpop.f32.mrb[0].mxu0
      %v395 = vadd.f32 0.0, %v394
      %v396 = vpop.f32.mrb[0].mxu0
      %397 = vmatprep.mubr.bf16.mxu0 0
      %398 = vmatmul.mubr.bf16.gmra.mrb[0].mxu0 %v344
      %v399 = vpop.f32.mrb[0].mxu0
      %v400 = vadd.f32 0.0, %v399
      %v401 = vpop.f32.mrb[0].mxu0
      %v402 = vpop.f32.mrb[0].mxu0
      %v403 = vadd.f32 0.0, %v402
      %v404 = vpop.f32.mrb[0].mxu0
      %405 = vmatprep.mubr.bf16.mxu0 0
      %406 = vmatmul.mubr.bf16.gmra.mrb[0].mxu0 %v347
      %v407 = vpop.f32.mrb[0].mxu0
      %v408 = vadd.f32 0.0, %v407
      %v409 = vpop.f32.mrb[0].mxu0
      %v410 = vpop.f32.mrb[0].mxu0
      %v411 = vadd.f32 0.0, %v410
      %v412 = vpop.f32.mrb[0].mxu0
      %413 = vdwg.mxu0
      %v422 = vunpack.c.l.b16 %v172
      %v423 = vunpack.c.l.b16 %v173
      %v424 = vunpack.c.l.b16 %v174
      %v425 = vunpack.c.l.b16 %v175
      %v426 = vunpack.c.l.b16 %v176
      %v427 = vunpack.c.l.b16 %v177
      %v428 = vunpack.c.l.b16 %v178
      %v429 = vunpack.c.l.b16 %v179
      %v430 = vpack.c.b16 %v423, %v422
      %v431 = vpack.c.b16 %v425, %v424
      %v432 = vpack.c.b16 %v427, %v426
      %v433 = vpack.c.b16 %v429, %v428
      %v438 = vunpack.c.l.b16 %v180
      %v439 = vunpack.c.l.b16 %v181
      %v440 = vunpack.c.l.b16 %v182
      %v441 = vunpack.c.l.b16 %v183
      %v442 = vpack.c.b16 %v439, %v438
      %v443 = vpack.c.b16 %v441, %v440
      %v447 = vsel %vm336, %v430, 0
      %v450 = vsel %vm336, %v431, 0
      %v453 = vsel %vm336, %v432, 0
      %v456 = vsel %vm336, %v433, 0
      %458 = vmatprep.subr.bf16.mxu0 0
      %459 = vmatpush1.bf16.msra.mxu0 %v442
      %460 = vmatprep.subr.bf16.mxu0 0
      %461 = vmatpush1.bf16.msra.mxu0 %v443
      %462 = vmatprep.subr.bf16.mxu0 0
      %463 = vmatpush1.bf16.msra.mxu0 0
      %464 = vmatprep.subr.bf16.mxu0 0
      %465 = vmatpush1.bf16.msra.mxu0 0
      %466 = vmatprep.subr.bf16.mxu0 0
      %467 = vmatpush1.bf16.msra.mxu0 0
      %468 = vmatprep.subr.bf16.mxu0 0
      %469 = vmatpush1.bf16.msra.mxu0 0
      %470 = vmatprep.subr.bf16.mxu0 0
      %471 = vmatpush1.bf16.msra.mxu0 0
      %472 = vmatprep.subr.bf16.mxu0 0
      %473 = vmatpush1.bf16.msra.mxu0 0
      %474 = vmatprep.subr.bf16.mxu0 0
      %475 = vmatpush1.bf16.msra.mxu0 0
      %476 = vmatprep.subr.bf16.mxu0 0
      %477 = vmatpush1.bf16.msra.mxu0 0
      %478 = vmatprep.subr.bf16.mxu0 0
      %479 = vmatpush1.bf16.msra.mxu0 0
      %480 = vmatprep.subr.bf16.mxu0 0
      %481 = vmatpush1.bf16.msra.mxu0 0
      %482 = vmatprep.subr.bf16.mxu0 0
      %483 = vmatpush1.bf16.msra.mxu0 0
      %484 = vmatprep.subr.bf16.mxu0 0
      %485 = vmatpush1.bf16.msra.mxu0 0
      %486 = vmatprep.subr.bf16.mxu0 0
      %487 = vmatpush1.bf16.msra.mxu0 0
      %488 = vmatprep.subr.bf16.mxu0 0
      %489 = vmatpush1.bf16.msra.mxu0 0
      %490 = vmatprep.mubr.bf16.mxu0 0
      %491 = vmatmul.mubr.bf16.gmra.mrb[0].mxu0 %v447
      %v492 = vpop.f32.mrb[0].mxu0
      %v493 = vadd.f32 %v384, %v492
      %v494 = vpop.f32.mrb[0].mxu0
      %v495 = vpop.f32.mrb[0].mxu0
      %v496 = vadd.f32 %v387, %v495
      %v497 = vpop.f32.mrb[0].mxu0
      %498 = vmatprep.mubr.bf16.mxu0 0
      %499 = vmatmul.mubr.bf16.gmra.mrb[0].mxu0 %v450
      %v500 = vpop.f32.mrb[0].mxu0
      %v501 = vadd.f32 %v392, %v500
      %v502 = vpop.f32.mrb[0].mxu0
      %v503 = vpop.f32.mrb[0].mxu0
      %v504 = vadd.f32 %v395, %v503
      %v505 = vpop.f32.mrb[0].mxu0
      %506 = vmatprep.mubr.bf16.mxu0 0
      %507 = vmatmul.mubr.bf16.gmra.mrb[0].mxu0 %v453
      %v508 = vpop.f32.mrb[0].mxu0
      %v509 = vadd.f32 %v400, %v508
      %v510 = vpop.f32.mrb[0].mxu0
      %v511 = vpop.f32.mrb[0].mxu0
      %v512 = vadd.f32 %v403, %v511
      %v513 = vpop.f32.mrb[0].mxu0
      %514 = vmatprep.mubr.bf16.mxu0 0
      %515 = vmatmul.mubr.bf16.gmra.mrb[0].mxu0 %v456
      %v516 = vpop.f32.mrb[0].mxu0
      %v517 = vadd.f32 %v408, %v516
      %v518 = vpop.f32.mrb[0].mxu0
      %v519 = vpop.f32.mrb[0].mxu0
      %v520 = vadd.f32 %v411, %v519
      %v521 = vpop.f32.mrb[0].mxu0
      %522 = vdwg.mxu0
      %s523 = scalar_lea.vmem %s165, 8
      %v524 = vld [vmem:[%s523] sm:$0xf]
      %v525 = vld [vmem:[%s523 + $0x8] sm:$0xf]
      %v526 = vld [vmem:[%s523 + $0x10] sm:$0xf]
      %v527 = vld [vmem:[%s523 + $0x18] sm:$0xf]
      %v528 = vld [vmem:[%s523 + $0x20] sm:$0xf]
      %v529 = vld [vmem:[%s523 + $0x28] sm:$0xf]
      %v530 = vld [vmem:[%s523 + $0x30] sm:$0xf]
      %v531 = vld [vmem:[%s523 + $0x38] sm:$0xf]
      %s532 = scalar_lea.vmem %s1, 32
      %v533 = vld [vmem:[%s532] sm:$0xf]
      %v534 = vld [vmem:[%s532 + $0x4] sm:$0xf]
      %v535 = vld [vmem:[%s532 + $0x8] sm:$0xf]
      %v536 = vld [vmem:[%s532 + $0xc] sm:$0xf]
      %v545 = vunpack.c.l.b16 %v524
      %v546 = vunpack.c.l.b16 %v525
      %v547 = vunpack.c.l.b16 %v526
      %v548 = vunpack.c.l.b16 %v527
      %v549 = vunpack.c.l.b16 %v528
      %v550 = vunpack.c.l.b16 %v529
      %v551 = vunpack.c.l.b16 %v530
      %v552 = vunpack.c.l.b16 %v531
      %v553 = vpack.c.b16 %v546, %v545
      %v554 = vpack.c.b16 %v548, %v547
      %v555 = vpack.c.b16 %v550, %v549
      %v556 = vpack.c.b16 %v552, %v551
      %v561 = vunpack.c.l.b16 %v533
      %v562 = vunpack.c.l.b16 %v534
      %v563 = vunpack.c.l.b16 %v535
      %v564 = vunpack.c.l.b16 %v536
      %v565 = vpack.c.b16 %v562, %v561
      %v566 = vpack.c.b16 %v564, %v563
      %v570 = vsel %vm336, %v553, 0
      %v573 = vsel %vm336, %v554, 0
      %v576 = vsel %vm336, %v555, 0
      %v579 = vsel %vm336, %v556, 0
      %581 = vmatprep.subr.bf16.mxu0 0
      %582 = vmatpush1.bf16.msra.mxu0 %v565
      %583 = vmatprep.subr.bf16.mxu0 0
      %584 = vmatpush1.bf16.msra.mxu0 %v566
      %585 = vmatprep.subr.bf16.mxu0 0
      %586 = vmatpush1.bf16.msra.mxu0 0
      %587 = vmatprep.subr.bf16.mxu0 0
      %588 = vmatpush1.bf16.msra.mxu0 0
      %589 = vmatprep.subr.bf16.mxu0 0
      %590 = vmatpush1.bf16.msra.mxu0 0
      %591 = vmatprep.subr.bf16.mxu0 0
      %592 = vmatpush1.bf16.msra.mxu0 0
      %593 = vmatprep.subr.bf16.mxu0 0
      %594 = vmatpush1.bf16.msra.mxu0 0
      %595 = vmatprep.subr.bf16.mxu0 0
      %596 = vmatpush1.bf16.msra.mxu0 0
      %597 = vmatprep.subr.bf16.mxu0 0
      %598 = vmatpush1.bf16.msra.mxu0 0
      %599 = vmatprep.subr.bf16.mxu0 0
      %600 = vmatpush1.bf16.msra.mxu0 0
      %601 = vmatprep.subr.bf16.mxu0 0
      %602 = vmatpush1.bf16.msra.mxu0 0
      %603 = vmatprep.subr.bf16.mxu0 0
      %604 = vmatpush1.bf16.msra.mxu0 0
      %605 = vmatprep.subr.bf16.mxu0 0
      %606 = vmatpush1.bf16.msra.mxu0 0
      %607 = vmatprep.subr.bf16.mxu0 0
      %608 = vmatpush1.bf16.msra.mxu0 0
      %609 = vmatprep.subr.bf16.mxu0 0
      %610 = vmatpush1.bf16.msra.mxu0 0
      %611 = vmatprep.subr.bf16.mxu0 0
      %612 = vmatpush1.bf16.msra.mxu0 0
      %613 = vmatprep.mubr.bf16.mxu0 0
      %614 = vmatmul.mubr.bf16.gmra.mrb[0].mxu0 %v570
      %v615 = vpop.f32.mrb[0].mxu0
      %v616 = vadd.f32 0.0, %v615
      %v617 = vpop.f32.mrb[0].mxu0
      %v618 = vpop.f32.mrb[0].mxu0
      %v619 = vadd.f32 0.0, %v618
      %v620 = vpop.f32.mrb[0].mxu0
      %621 = vmatprep.mubr.bf16.mxu0 0
      %622 = vmatmul.mubr.bf16.gmra.mrb[0].mxu0 %v573
      %v623 = vpop.f32.mrb[0].mxu0
      %v624 = vadd.f32 0.0, %v623
      %v625 = vpop.f32.mrb[0].mxu0
      %v626 = vpop.f32.mrb[0].mxu0
      %v627 = vadd.f32 0.0, %v626
      %v628 = vpop.f32.mrb[0].mxu0
      %629 = vmatprep.mubr.bf16.mxu0 0
      %630 = vmatmul.mubr.bf16.gmra.mrb[0].mxu0 %v576
      %v631 = vpop.f32.mrb[0].mxu0
      %v632 = vadd.f32 0.0, %v631
      %v633 = vpop.f32.mrb[0].mxu0
      %v634 = vpop.f32.mrb[0].mxu0
      %v635 = vadd.f32 0.0, %v634
      %v636 = vpop.f32.mrb[0].mxu0
      %637 = vmatprep.mubr.bf16.mxu0 0
      %638 = vmatmul.mubr.bf16.gmra.mrb[0].mxu0 %v579
      %v639 = vpop.f32.mrb[0].mxu0
      %v640 = vadd.f32 0.0, %v639
      %v641 = vpop.f32.mrb[0].mxu0
      %v642 = vpop.f32.mrb[0].mxu0
      %v643 = vadd.f32 0.0, %v642
      %v644 = vpop.f32.mrb[0].mxu0
      %645 = vdwg.mxu0
      %v646 = vadd.f32 %v493, %v616
      %v647 = vadd.f32 %v496, %v619
      %v648 = vadd.f32 %v501, %v624
      %v649 = vadd.f32 %v504, %v627
      %v650 = vadd.f32 %v509, %v632
      %v651 = vadd.f32 %v512, %v635
      %v652 = vadd.f32 %v517, %v640
      %v653 = vadd.f32 %v520, %v643
      %v654 = vld [vmem:[%s523] sm:$0xf]
      %v655 = vld [vmem:[%s523 + $0x4] sm:$0x1]
      %v656 = vld [vmem:[%s523 + $0x8] sm:$0xf]
      %v657 = vld [vmem:[%s523 + $0xc] sm:$0x1]
      %v658 = vld [vmem:[%s523 + $0x10] sm:$0xf]
      %v659 = vld [vmem:[%s523 + $0x14] sm:$0x1]
      %v660 = vld [vmem:[%s523 + $0x18] sm:$0xf]
      %v661 = vld [vmem:[%s523 + $0x1c] sm:$0x1]
      %v662 = vld [vmem:[%s523 + $0x20] sm:$0xf]
      %v663 = vld [vmem:[%s523 + $0x24] sm:$0x1]
      %v664 = vld [vmem:[%s523 + $0x28] sm:$0xf]
      %v665 = vld [vmem:[%s523 + $0x2c] sm:$0x1]
      %v666 = vld [vmem:[%s523 + $0x30] sm:$0xf]
      %v667 = vld [vmem:[%s523 + $0x34] sm:$0x1]
      %v668 = vld [vmem:[%s523 + $0x38] sm:$0xf]
      %v669 = vld [vmem:[%s523 + $0x3c] sm:$0x1]
      %v671 = vshrl.u32 %v654, 16
      %v673 = vrot.slane %v671, 4
      %v674 = vshll.u32 %v654, 16
      %v676 = vrot.slane %v674, 5
      %v677 = vor.u32 %v673, %v676
      %v678 = vrot.slane %v677, 4
      %v680 = vshll.u32 %v655, 16
      %v682 = vrot.slane %v680, 5
      %v683 = vsel %vm194, %v678, %v682
      %v685 = vshrl.u32 %v656, 16
      %v687 = vrot.slane %v685, 4
      %v688 = vshll.u32 %v656, 16
      %v690 = vrot.slane %v688, 5
      %v691 = vor.u32 %v687, %v690
      %v692 = vrot.slane %v691, 4
      %v694 = vshll.u32 %v657, 16
      %v696 = vrot.slane %v694, 5
      %v697 = vsel %vm194, %v692, %v696
      %v699 = vshrl.u32 %v658, 16
      %v701 = vrot.slane %v699, 4
      %v702 = vshll.u32 %v658, 16
      %v704 = vrot.slane %v702, 5
      %v705 = vor.u32 %v701, %v704
      %v706 = vrot.slane %v705, 4
      %v708 = vshll.u32 %v659, 16
      %v710 = vrot.slane %v708, 5
      %v711 = vsel %vm194, %v706, %v710
      %v713 = vshrl.u32 %v660, 16
      %v715 = vrot.slane %v713, 4
      %v716 = vshll.u32 %v660, 16
      %v718 = vrot.slane %v716, 5
      %v719 = vor.u32 %v715, %v718
      %v720 = vrot.slane %v719, 4
      %v722 = vshll.u32 %v661, 16
      %v724 = vrot.slane %v722, 5
      %v725 = vsel %vm194, %v720, %v724
      %v727 = vshrl.u32 %v662, 16
      %v729 = vrot.slane %v727, 4
      %v730 = vshll.u32 %v662, 16
      %v732 = vrot.slane %v730, 5
      %v733 = vor.u32 %v729, %v732
      %v734 = vrot.slane %v733, 4
      %v736 = vshll.u32 %v663, 16
      %v738 = vrot.slane %v736, 5
      %v739 = vsel %vm194, %v734, %v738
      %v741 = vshrl.u32 %v664, 16
      %v743 = vrot.slane %v741, 4
      %v744 = vshll.u32 %v664, 16
      %v746 = vrot.slane %v744, 5
      %v747 = vor.u32 %v743, %v746
      %v748 = vrot.slane %v747, 4
      %v750 = vshll.u32 %v665, 16
      %v752 = vrot.slane %v750, 5
      %v753 = vsel %vm194, %v748, %v752
      %v755 = vshrl.u32 %v666, 16
      %v757 = vrot.slane %v755, 4
      %v758 = vshll.u32 %v666, 16
      %v760 = vrot.slane %v758, 5
      %v761 = vor.u32 %v757, %v760
      %v762 = vrot.slane %v761, 4
      %v764 = vshll.u32 %v667, 16
      %v766 = vrot.slane %v764, 5
      %v767 = vsel %vm194, %v762, %v766
      %v769 = vshrl.u32 %v668, 16
      %v771 = vrot.slane %v769, 4
      %v772 = vshll.u32 %v668, 16
      %v774 = vrot.slane %v772, 5
      %v775 = vor.u32 %v771, %v774
      %v776 = vrot.slane %v775, 4
      %v778 = vshll.u32 %v669, 16
      %v780 = vrot.slane %v778, 5
      %v781 = vsel %vm194, %v776, %v780
      %s782 = scalar_lea.vmem %s1, 48
      %v783 = vld [vmem:[%s782] sm:$0xf]
      %v784 = vld [vmem:[%s782 + $0x4] sm:$0xf]
      %v785 = vld [vmem:[%s782 + $0x8] sm:$0xf]
      %v786 = vld [vmem:[%s782 + $0xc] sm:$0xf]
      %v787 = vunpack.c.l.b16 %v683
      %v788 = vunpack.c.l.b16 %v697
      %v789 = vunpack.c.l.b16 %v711
      %v790 = vunpack.c.l.b16 %v725
      %v791 = vunpack.c.l.b16 %v739
      %v792 = vunpack.c.l.b16 %v753
      %v793 = vunpack.c.l.b16 %v767
      %v794 = vunpack.c.l.b16 %v781
      %v795 = vpack.c.b16 %v788, %v787
      %v796 = vpack.c.b16 %v790, %v789
      %v797 = vpack.c.b16 %v792, %v791
      %v798 = vpack.c.b16 %v794, %v793
      %v803 = vunpack.c.l.b16 %v783
      %v804 = vunpack.c.l.b16 %v784
      %v805 = vunpack.c.l.b16 %v785
      %v806 = vunpack.c.l.b16 %v786
      %v807 = vpack.c.b16 %v804, %v803
      %v808 = vpack.c.b16 %v806, %v805
      %v812 = vsel %vm336, %v795, 0
      %v815 = vsel %vm336, %v796, 0
      %v818 = vsel %vm336, %v797, 0
      %v821 = vsel %vm336, %v798, 0
      %823 = vmatprep.subr.bf16.mxu0 0
      %824 = vmatpush1.bf16.msra.mxu0 %v807
      %825 = vmatprep.subr.bf16.mxu0 0
      %826 = vmatpush1.bf16.msra.mxu0 %v808
      %827 = vmatprep.subr.bf16.mxu0 0
      %828 = vmatpush1.bf16.msra.mxu0 0
      %829 = vmatprep.subr.bf16.mxu0 0
      %830 = vmatpush1.bf16.msra.mxu0 0
      %831 = vmatprep.subr.bf16.mxu0 0
      %832 = vmatpush1.bf16.msra.mxu0 0
      %833 = vmatprep.subr.bf16.mxu0 0
      %834 = vmatpush1.bf16.msra.mxu0 0
      %835 = vmatprep.subr.bf16.mxu0 0
      %836 = vmatpush1.bf16.msra.mxu0 0
      %837 = vmatprep.subr.bf16.mxu0 0
      %838 = vmatpush1.bf16.msra.mxu0 0
      %839 = vmatprep.subr.bf16.mxu0 0
      %840 = vmatpush1.bf16.msra.mxu0 0
      %841 = vmatprep.subr.bf16.mxu0 0
      %842 = vmatpush1.bf16.msra.mxu0 0
      %843 = vmatprep.subr.bf16.mxu0 0
      %844 = vmatpush1.bf16.msra.mxu0 0
      %845 = vmatprep.subr.bf16.mxu0 0
      %846 = vmatpush1.bf16.msra.mxu0 0
      %847 = vmatprep.subr.bf16.mxu0 0
      %848 = vmatpush1.bf16.msra.mxu0 0
      %849 = vmatprep.subr.bf16.mxu0 0
      %850 = vmatpush1.bf16.msra.mxu0 0
      %851 = vmatprep.subr.bf16.mxu0 0
      %852 = vmatpush1.bf16.msra.mxu0 0
      %853 = vmatprep.subr.bf16.mxu0 0
      %854 = vmatpush1.bf16.msra.mxu0 0
      %855 = vmatprep.mubr.bf16.mxu0 0
      %856 = vmatmul.mubr.bf16.gmra.mrb[0].mxu0 %v812
      %v857 = vpop.f32.mrb[0].mxu0
      %v858 = vadd.f32 0.0, %v857
      %v859 = vpop.f32.mrb[0].mxu0
      %v860 = vpop.f32.mrb[0].mxu0
      %v861 = vadd.f32 0.0, %v860
      %v862 = vpop.f32.mrb[0].mxu0
      %863 = vmatprep.mubr.bf16.mxu0 0
      %864 = vmatmul.mubr.bf16.gmra.mrb[0].mxu0 %v815
      %v865 = vpop.f32.mrb[0].mxu0
      %v866 = vadd.f32 0.0, %v865
      %v867 = vpop.f32.mrb[0].mxu0
      %v868 = vpop.f32.mrb[0].mxu0
      %v869 = vadd.f32 0.0, %v868
      %v870 = vpop.f32.mrb[0].mxu0
      %871 = vmatprep.mubr.bf16.mxu0 0
      %872 = vmatmul.mubr.bf16.gmra.mrb[0].mxu0 %v818
      %v873 = vpop.f32.mrb[0].mxu0
      %v874 = vadd.f32 0.0, %v873
      %v875 = vpop.f32.mrb[0].mxu0
      %v876 = vpop.f32.mrb[0].mxu0
      %v877 = vadd.f32 0.0, %v876
      %v878 = vpop.f32.mrb[0].mxu0
      %879 = vmatprep.mubr.bf16.mxu0 0
      %880 = vmatmul.mubr.bf16.gmra.mrb[0].mxu0 %v821
      %v881 = vpop.f32.mrb[0].mxu0
      %v882 = vadd.f32 0.0, %v881
      %v883 = vpop.f32.mrb[0].mxu0
      %v884 = vpop.f32.mrb[0].mxu0
      %v885 = vadd.f32 0.0, %v884
      %v886 = vpop.f32.mrb[0].mxu0
      %887 = vdwg.mxu0
      %v888 = vadd.f32 %v646, %v858
      %v889 = vadd.f32 %v647, %v861
      %v890 = vadd.f32 %v648, %v866
      %v891 = vadd.f32 %v649, %v869
      %v892 = vadd.f32 %v650, %v874
      %v893 = vadd.f32 %v651, %v877
      %v894 = vadd.f32 %v652, %v882
      %v895 = vadd.f32 %v653, %v885
      %v896 = vld [vmem:[%s2] sm:$0x1]
      %v898 = vlaneseq
      %v899 = vshrl.u32 %v898, 7
      %v900 = vsub.s32 0, %v899
      %v901 = vrot.slane %v896, %v900
      %v903 = vadd.f32 %v888, %v901
      %v904 = vadd.f32 %v889, %v901
      %v905 = vadd.f32 %v890, %v901
      %v906 = vadd.f32 %v891, %v901
      %v907 = vadd.f32 %v892, %v901
      %v908 = vadd.f32 %v893, %v901
      %v909 = vadd.f32 %v894, %v901
      %v910 = vadd.f32 %v895, %v901
      %v911 = vmul.f32 %v903, 0.1
      %v912 = vmul.f32 %v904, 0.1
      %v913 = vmul.f32 %v905, 0.1
      %v914 = vmul.f32 %v906, 0.1
      %v915 = vmul.f32 %v907, 0.1
      %v916 = vmul.f32 %v908, 0.1
      %v917 = vmul.f32 %v909, 0.1
      %v918 = vmul.f32 %v910, 0.1
      %v919 = vmax.f32 %v903, %v911
      %v920 = vmax.f32 %v904, %v912
      %v921 = vmax.f32 %v905, %v913
      %v922 = vmax.f32 %v906, %v914
      %v923 = vmax.f32 %v907, %v915
      %v924 = vmax.f32 %v908, %v916
      %v925 = vmax.f32 %v909, %v917
      %v926 = vmax.f32 %v910, %v918
      %v927 = vpack.c.bf16 %v920, %v919
      %v928 = vpack.c.bf16 %v922, %v921
      %v929 = vpack.c.bf16 %v924, %v923
      %v930 = vpack.c.bf16 %v926, %v925
      %v935 = vunpack.c.l.b16 %v927
      %v936 = vunpack.c.h.b16 %v927
      %v937 = vunpack.c.l.b16 %v928
      %v938 = vunpack.c.h.b16 %v928
      %v939 = vunpack.c.l.b16 %v929
      %v940 = vunpack.c.h.b16 %v929
      %v941 = vunpack.c.l.b16 %v930
      %v942 = vunpack.c.h.b16 %v930
      %v943 = vpack.c.b16 %v935, %v935
      %v944 = vpack.c.b16 %v936, %v936
      %v945 = vpack.c.b16 %v937, %v937
      %v946 = vpack.c.b16 %v938, %v938
      %v947 = vpack.c.b16 %v939, %v939
      %v948 = vpack.c.b16 %v940, %v940
      %v949 = vpack.c.b16 %v941, %v941
      %v950 = vpack.c.b16 %v942, %v942
      %vm959 = vcmask 125952
      %960 = vst.msk [vmem:[%s170] sm:$0xf] %vm959, %v943
      %961 = vst.msk [vmem:[%s170 + $0x4] sm:$0xf] %vm959, %v944
      %962 = vst.msk [vmem:[%s170 + $0x8] sm:$0xf] %vm959, %v945
      %963 = vst.msk [vmem:[%s170 + $0xc] sm:$0xf] %vm959, %v946
      %964 = vst.msk [vmem:[%s170 + $0x10] sm:$0xf] %vm959, %v947
      %965 = vst.msk [vmem:[%s170 + $0x14] sm:$0xf] %vm959, %v948
      %966 = vst.msk [vmem:[%s170 + $0x18] sm:$0xf] %vm959, %v949
      %967 = vst.msk [vmem:[%s170 + $0x1c] sm:$0xf] %vm959, %v950
      %p968 = scmp.lt.s32.totalorder %s14, 1
      %s969 = scalar_select %p968, %s14, 1
      %s970 = smul.addr %s969, 8
      %s971 = smul.addr %s970, 4
      %s972 = scalar_lea.vmem %s3, %s971
      // Predicated region
      $region33: #{discriminator_forward.6} parent=31 // pred_check
        %p973 = pneg %p100
      $region34: #{discriminator_forward.6} parent=31 // pred_check_branch
        %975 = sbr.rel (%p973) target = $region36
      $region35: #{discriminator_forward.6} parent=31 // pred_region
        _
      $region36: #{discriminator_forward.6} parent=31 // pred_fallthru
        _
    $region32: #{discriminator_forward.6} parent=5 // pred_fallthru
      _
    %p976 = scmp.le.s32.totalorder 2, %s9
    // Predicated region
    $region37: #{discriminator_forward.6} parent=5 // pred_check
      %p977 = pneg %p976
    $region38: #{discriminator_forward.6} parent=5 // pred_check_branch
      %979 = sbr.rel (%p977) target = $region40
    $region39: #{discriminator_forward.6} parent=5 // pred_region
      %s980 = ssub.s32 %s9, 2
      // Predicated region
      $region41: #{discriminator_forward.6} parent=39 // pred_check
        %p981 = pneg %p106
      $region42: #{discriminator_forward.6} parent=39 // pred_check_branch
        %983 = sbr.rel (%p981) target = $region44
      $region43: #{discriminator_forward.6} parent=39 // pred_region
        %p984 = scmp.lt.s32.totalorder %s15, 1
        %s985 = scalar_select %p984, %s15, 1
        %s986 = smul.addr %s985, 8
        %s987 = smul.addr %s986, 4
        %s988 = scalar_lea.vmem %s3, %s987
      $region44: #{discriminator_forward.6} parent=39 // pred_fallthru
        _
    $region40: #{discriminator_forward.6} parent=5 // pred_fallthru
      _
  $region6: #{discriminator_forward.6} parent=0 // loop_footer
    %s13 = sadd.s32 1, %s9
  $region7: #{discriminator_forward.6} parent=0 // loop_footer_branch
    %8 = sbr.rel target = $region3
  $region8: #{discriminator_forward.6} parent=0 // loop_exit
    _

// kernel: discriminator_forward.7
$region0: #{discriminator_forward.7}
  #allocation0 [shape = 'u32[]', space=smem, size = 0x4, offset = 0x4, fixed_abs, tag = 'smem constant byte address 0x4 - core index']
  #allocation1 [shape = 'u32[144,128]{1,0:T(1,128)}', space=vmem, size = 0x12000, scoped, tag = 'internal scratch']
  %s0 = inlined_call_operand.vmem [shape: bf16[2,5,5,64], index: 0, kind: input, shape index: {}]
  %s1 = inlined_call_operand.vmem [shape: bf16[4,64,32], index: 1, kind: input, shape index: {}]
  %s2 = inlined_call_operand.vmem [shape: f32[1,32], index: 2, kind: input, shape index: {}]
  %s3 = inlined_call_operand.vmem [shape: bf16[2,16,32], index: 3, kind: output, shape index: {}]
  %s4 = sld [smem:[#allocation0]]
  $region45: #{discriminator_forward.7} parent=0
    _
  %s6 = ssub.s32 1, %s4
  %s7 = scalar_select 0, %s6, %s4
  loop: start=0, step=1, limit=4
  $region2: #{discriminator_forward.7} parent=0 // loop_pre_header
    _
  $region3: #{discriminator_forward.7} parent=0 // loop_header
    %s9 = sphi 0, %s13
    %p10 = scmp.ge.s32.totalorder %s9, 4
    %s19 = sphi 0, %s21
    %s22 = sphi 0, %s19
    %s23 = sphi 0, %s22
    %s39 = sphi 0, %s23
    %s43 = sphi 0, %s43
    %s45 = sphi 0, %s43
    %s46 = sphi 0, %s45
    %s60 = sphi 0, %s46
    %s64 = sphi 0, %s64
    %s66 = sphi 0, %s64
    %s67 = sphi 0, %s66
    %s81 = sphi 0, %s67
    %s87 = sphi 0, %s89
    %s90 = sphi 0, %s87
    %s91 = sphi 0, %s90
    %s107 = sphi 0, %s91
  $region4: #{discriminator_forward.7} parent=0 // loop_header_branch
    %12 = sbr.rel (%p10) target = $region8
  $region5: #{discriminator_forward.7} parent=0 // loop_body
    %s14 = ssub.s32 %s9, 1
    %s15 = ssub.s32 %s9, 2
    %s16 = sadd.s32 %s9, 1
    %s17 = ssub.s32 %s9, %s16
    %p18 = scmp.eq.s32.totalorder %s17, 0
    %s20 = sadd.s32 %s19, 1
    %s21 = scalar_select %p18, %s19, %s20
    %p24 = pneg %p18
    %p25 = scmp.eq.s32.totalorder %s9, 1
    %p26 = por %p24, %p25
    %p27 = scmp.ne.s32.totalorder %s19, %s22
    %p28 = scmp.eq.s32.totalorder %s9, 0
    %p29 = por %p27, %p28
    %p30 = scmp.ne.s32.totalorder %s19, %s22
    %p31 = scmp.eq.s32.totalorder %s14, 1
    %p32 = por %p30, %p31
    %p33 = scmp.ne.s32.totalorder %s22, %s23
    %p34 = scmp.eq.s32.totalorder %s14, 0
    %p35 = por %p33, %p34
    %p36 = scmp.ne.s32.totalorder %s22, %s23
    %p37 = scmp.eq.s32.totalorder %s15, 1
    %p38 = por %p36, %p37
    %p40 = scmp.ne.s32.totalorder %s23, %s39
    %p41 = scmp.eq.s32.totalorder %s15, 0
    %p42 = por %p40, %p41
    %s44 = sadd.s32 %s43, 1
    %p47 = scmp.eq.s32.totalorder %s9, 1
    %p48 = scmp.ne.s32.totalorder %s43, %s45
    %p49 = scmp.eq.s32.totalorder %s9, 0
    %p50 = por %p48, %p49
    %p51 = scmp.ne.s32.totalorder %s43, %s45
    %p52 = scmp.eq.s32.totalorder %s14, 1
    %p53 = por %p51, %p52
    %p54 = scmp.ne.s32.totalorder %s45, %s46
    %p55 = scmp.eq.s32.totalorder %s14, 0
    %p56 = por %p54, %p55
    %p57 = scmp.ne.s32.totalorder %s45, %s46
    %p58 = scmp.eq.s32.totalorder %s15, 1
    %p59 = por %p57, %p58
    %p61 = scmp.ne.s32.totalorder %s46, %s60
    %p62 = scmp.eq.s32.totalorder %s15, 0
    %p63 = por %p61, %p62
    %s65 = sadd.s32 %s64, 1
    %p68 = scmp.eq.s32.totalorder %s9, 1
    %p69 = scmp.ne.s32.totalorder %s64, %s66
    %p70 = scmp.eq.s32.totalorder %s9, 0
    %p71 = por %p69, %p70
    %p72 = scmp.ne.s32.totalorder %s64, %s66
    %p73 = scmp.eq.s32.totalorder %s14, 1
    %p74 = por %p72, %p73
    %p75 = scmp.ne.s32.totalorder %s66, %s67
    %p76 = scmp.eq.s32.totalorder %s14, 0
    %p77 = por %p75, %p76
    %p78 = scmp.ne.s32.totalorder %s66, %s67
    %p79 = scmp.eq.s32.totalorder %s15, 1
    %p80 = por %p78, %p79
    %p82 = scmp.ne.s32.totalorder %s67, %s81
    %p83 = scmp.eq.s32.totalorder %s15, 0
    %p84 = por %p82, %p83
    %s85 = ssub.s32 %s9, %s16
    %p86 = scmp.eq.s32.totalorder %s85, 0
    %s88 = sadd.s32 %s87, 1
    %s89 = scalar_select %p86, %s87, %s88
    %p92 = pneg %p86
    %p93 = scmp.eq.s32.totalorder %s9, 1
    %p94 = por %p92, %p93
    %p95 = scmp.ne.s32.totalorder %s87, %s90
    %p96 = scmp.eq.s32.totalorder %s9, 0
    %p97 = por %p95, %p96
    %p98 = scmp.ne.s32.totalorder %s87, %s90
    %p99 = scmp.eq.s32.totalorder %s14, 1
    %p100 = por %p98, %p99
    %p101 = scmp.ne.s32.totalorder %s90, %s91
    %p102 = scmp.eq.s32.totalorder %s14, 0
    %p103 = por %p101, %p102
    %p104 = scmp.ne.s32.totalorder %s90, %s91
    %p105 = scmp.eq.s32.totalorder %s15, 1
    %p106 = por %p104, %p105
    %p108 = scmp.ne.s32.totalorder %s91, %s107
    %p109 = scmp.eq.s32.totalorder %s15, 0
    %p110 = por %p108, %p109
    %p111 = scmp.le.s32.totalorder 1, %s9
    %p112 = scmp.lt.s32.totalorder %s9, 3
    %p113 = pnand %p111, %p112
    %p114 = pneg %p113
    // Predicated region
    $region9: #{discriminator_forward.7} parent=5 // pred_check
      _
    $region10: #{discriminator_forward.7} parent=5 // pred_check_branch
      %116 = sbr.rel (%p113) target = $region12
    $region11: #{discriminator_forward.7} parent=5 // pred_region
      %s117 = ssub.s32 %s9, 1
      // Predicated region
      $region13: #{discriminator_forward.7} parent=11 // pred_check
        %p118 = pneg %p56
      $region14: #{discriminator_forward.7} parent=11 // pred_check_branch
        %120 = sbr.rel (%p118) target = $region16
      $region15: #{discriminator_forward.7} parent=11 // pred_region
        _
      $region16: #{discriminator_forward.7} parent=11 // pred_fallthru
        _
      // Predicated region
      $region17: #{discriminator_forward.7} parent=11 // pred_check
        %p121 = pneg %p77
      $region18: #{discriminator_forward.7} parent=11 // pred_check_branch
        %123 = sbr.rel (%p121) target = $region20
      $region19: #{discriminator_forward.7} parent=11 // pred_region
        _
      $region20: #{discriminator_forward.7} parent=11 // pred_fallthru
        _
    $region12: #{discriminator_forward.7} parent=5 // pred_fallthru
      _
    %p124 = scmp.lt.s32.totalorder %s9, 2
    // Predicated region
    $region21: #{discriminator_forward.7} parent=5 // pred_check
      %p125 = pneg %p124
    $region22: #{discriminator_forward.7} parent=5 // pred_check_branch
      %127 = sbr.rel (%p125) target = $region24
    $region23: #{discriminator_forward.7} parent=5 // pred_region
      // Predicated region
      $region25: #{discriminator_forward.7} parent=23 // pred_check
        %p128 = pneg %p29
      $region26: #{discriminator_forward.7} parent=23 // pred_check_branch
        %130 = sbr.rel (%p128) target = $region28
      $region27: #{discriminator_forward.7} parent=23 // pred_region
        %p131 = scmp.lt.s32.totalorder %s9, 1
        %s132 = scalar_select %p131, %s9, 1
        %s133 = smul.addr %s132, 5
        %s134 = smul.addr %s133, 4
        %s135 = scalar_lea.vmem %s0, %s134
      $region28: #{discriminator_forward.7} parent=23 // pred_fallthru
        _
    $region24: #{discriminator_forward.7} parent=5 // pred_fallthru
      _
    %p136 = scmp.le.s32.totalorder 1, %s9
    %p137 = scmp.lt.s32.totalorder %s9, 3
    %p138 = pnand %p136, %p137
    %p139 = pneg %p138
    // Predicated region
    $region29: #{discriminator_forward.7} parent=5 // pred_check
      _
    $region30: #{discriminator_forward.7} parent=5 // pred_check_branch
      %141 = sbr.rel (%p138) target = $region32
    $region31: #{discriminator_forward.7} parent=5 // pred_region
      %s142 = ssub.s32 %s9, 1
      %p143 = scmp.lt.s32.totalorder %s14, 1
      %s144 = scalar_select %p143, %s14, 1
      %s145 = smul.addr %s144, 5
      %s146 = smul.addr %s145, 4
      %s147 = scalar_lea.vmem %s0, %s146
      %p148 = pneg %p35
      %p149 = pneg %p32
      %p150 = pneg %p56
      %p151 = pneg %p53
      %p152 = pneg %p77
      %p153 = pneg %p74
      %p154 = pneg %p103
      %p155 = pneg %p100
      %p156 = scmp.lt.s32.totalorder %s14, 1
      %s157 = scalar_select %p156, %s14, 1
      %s158 = smul.addr %s157, 2
      %s159 = smul.addr %s158, 4
      %s160 = scalar_lea.vmem %s3, %s159
      %p161 = scmp.lt.s32.totalorder %s14, 1
      %s162 = scalar_select %p161, %s14, 1
      %s163 = smul.addr %s162, 5
      %s164 = smul.addr %s163, 4
      %s165 = scalar_lea.vmem %s0, %s164
      %p166 = scmp.lt.s32.totalorder %s14, 1
      %s167 = scalar_select %p166, %s14, 1
      %s168 = smul.addr %s167, 2
      %s169 = smul.addr %s168, 4
      %s170 = scalar_lea.vmem %s3, %s169
      %v172 = vld [vmem:[%s165] sm:$0x3]
      %s173 = scalar_lea.vmem %s165, 4
      %v174 = vld [vmem:[%s173] sm:$0x3]
      %s175 = scalar_lea.vmem %s165, 8
      %v176 = vld [vmem:[%s175] sm:$0x3]
      %s177 = scalar_lea.vmem %s165, 12
      %v178 = vld [vmem:[%s177] sm:$0x3]
      %v180 = vunpack.c.l.b16 %v174
      %v181 = vpack.c.b16 %v180, %v180
      %v182 = vrot.slane %v181, 6
      %v184 = vunpack.c.l.b16 %v176
      %v185 = vpack.c.b16 %v184, %v184
      %v187 = vunpack.c.l.b16 %v178
      %v188 = vpack.c.b16 %v187, %v187
      %v189 = vrot.slane %v188, 2
      %vm190 = vcmask 1041408
      %v193 = vsel %vm190, %v172, %v182
      %vm194 = vcmask 1043456
      %v196 = vsel %vm194, %v193, %v185
      %vm197 = vcmask 1045504
      %v199 = vsel %vm197, %v196, %v189
      %v200 = vld [vmem:[%s1] sm:$0xf]
      %v201 = vld [vmem:[%s1 + $0x4] sm:$0xf]
      %v202 = vld [vmem:[%s1 + $0x8] sm:$0xf]
      %v203 = vld [vmem:[%s1 + $0xc] sm:$0xf]
      %v204 = vld [vmem:[%s1 + $0x10] sm:$0xf]
      %v205 = vld [vmem:[%s1 + $0x14] sm:$0xf]
      %v206 = vld [vmem:[%s1 + $0x18] sm:$0xf]
      %v207 = vld [vmem:[%s1 + $0x1c] sm:$0xf]
      %v208 = vld [vmem:[%s165] sm:$0x7]
      %v209 = vld [vmem:[%s173] sm:$0x7]
      %v210 = vld [vmem:[%s175] sm:$0x7]
      %v211 = vld [vmem:[%s177] sm:$0x7]
      %v213 = vunpack.c.l.b16 %v208
      %v214 = vpack.c.b16 %v213, %v213
      %v216 = vshrl.u32 %v214, 16
      %v218 = vshll.u32 %v214, 16
      %v220 = vrot.slane %v218, 1
      %v221 = vor.u32 %v216, %v220
      %v223 = vunpack.c.l.b16 %v209
      %v224 = vpack.c.b16 %v223, %v223
      %v226 = vshrl.u32 %v224, 16
      %v228 = vrot.slane %v226, 6
      %v229 = vshll.u32 %v224, 16
      %v231 = vrot.slane %v229, 7
      %v232 = vor.u32 %v228, %v231
      %v234 = vunpack.c.l.b16 %v210
      %v235 = vpack.c.b16 %v234, %v234
      %v237 = vshrl.u32 %v235, 16
      %v239 = vrot.slane %v237, 4
      %v240 = vshll.u32 %v235, 16
      %v242 = vrot.slane %v240, 5
      %v243 = vor.u32 %v239, %v242
      %v245 = vunpack.c.l.b16 %v211
      %v246 = vpack.c.b16 %v245, %v245
      %v248 = vshrl.u32 %v246, 16
      %v250 = vrot.slane %v248, 2
      %v251 = vshll.u32 %v246, 16
      %v253 = vrot.slane %v251, 3
      %v254 = vor.u32 %v250, %v253
      %v257 = vsel %vm190, %v221, %v232
      %v259 = vsel %vm194, %v257, %v243
      %v261 = vsel %vm197, %v259, %v254
      %s262 = scalar_lea.vmem %s1, 32
      %v263 = vld [vmem:[%s262] sm:$0xf]
      %v264 = vld [vmem:[%s262 + $0x4] sm:$0xf]
      %v265 = vld [vmem:[%s262 + $0x8] sm:$0xf]
      %v266 = vld [vmem:[%s262 + $0xc] sm:$0xf]
      %v267 = vld [vmem:[%s262 + $0x10] sm:$0xf]
      %v268 = vld [vmem:[%s262 + $0x14] sm:$0xf]
      %v269 = vld [vmem:[%s262 + $0x18] sm:$0xf]
      %v270 = vld [vmem:[%s262 + $0x1c] sm:$0xf]
      %v279 = vunpack.c.l.b16 %v263
      %v280 = vunpack.c.l.b16 %v264
      %v281 = vunpack.c.l.b16 %v265
      %v282 = vunpack.c.l.b16 %v266
      %v283 = vunpack.c.l.b16 %v267
      %v284 = vunpack.c.l.b16 %v268
      %v285 = vunpack.c.l.b16 %v269
      %v286 = vunpack.c.l.b16 %v270
      %v287 = vpack.c.b16 %v280, %v279
      %v288 = vpack.c.b16 %v282, %v281
      %v289 = vpack.c.b16 %v284, %v283
      %v290 = vpack.c.b16 %v286, %v285
      %vm295 = vcmask 523264
      %v296 = vsel %vm295, %v261, 0
      %298 = vmatprep.subr.bf16.mxu0 0
      %299 = vmatpush1.bf16.msra.mxu0 %v287
      %300 = vmatprep.subr.bf16.mxu0 0
      %301 = vmatpush1.bf16.msra.mxu0 %v288
      %302 = vmatprep.subr.bf16.mxu0 0
      %303 = vmatpush1.bf16.msra.mxu0 %v289
      %304 = vmatprep.subr.bf16.mxu0 0
      %305 = vmatpush1.bf16.msra.mxu0 %v290
      %306 = vmatprep.subr.bf16.mxu0 0
      %307 = vmatpush1.bf16.msra.mxu0 0
      %308 = vmatprep.subr.bf16.mxu0 0
      %309 = vmatpush1.bf16.msra.mxu0 0
      %310 = vmatprep.subr.bf16.mxu0 0
      %311 = vmatpush1.bf16.msra.mxu0 0
      %312 = vmatprep.subr.bf16.mxu0 0
      %313 = vmatpush1.bf16.msra.mxu0 0
      %314 = vmatprep.subr.bf16.mxu0 0
      %315 = vmatpush1.bf16.msra.mxu0 0
      %316 = vmatprep.subr.bf16.mxu0 0
      %317 = vmatpush1.bf16.msra.mxu0 0
      %318 = vmatprep.subr.bf16.mxu0 0
      %319 = vmatpush1.bf16.msra.mxu0 0
      %320 = vmatprep.subr.bf16.mxu0 0
      %321 = vmatpush1.bf16.msra.mxu0 0
      %322 = vmatprep.subr.bf16.mxu0 0
      %323 = vmatpush1.bf16.msra.mxu0 0
      %324 = vmatprep.subr.bf16.mxu0 0
      %325 = vmatpush1.bf16.msra.mxu0 0
      %326 = vmatprep.subr.bf16.mxu0 0
      %327 = vmatpush1.bf16.msra.mxu0 0
      %328 = vmatprep.subr.bf16.mxu0 0
      %329 = vmatpush1.bf16.msra.mxu0 0
      %330 = vmatprep.mubr.bf16.mxu0 0
      %331 = vmatmul.mubr.bf16.gmra.mrb[0].mxu0 %v296
      %v332 = vpop.f32.mrb[0].mxu0
      %v333 = vadd.f32 0.0, %v332
      %v334 = vpop.f32.mrb[0].mxu0
      %v335 = vpop.f32.mrb[0].mxu0
      %v336 = vadd.f32 0.0, %v335
      %v337 = vpop.f32.mrb[0].mxu0
      %338 = vdwg.mxu0
      %v347 = vunpack.c.l.b16 %v200
      %v348 = vunpack.c.l.b16 %v201
      %v349 = vunpack.c.l.b16 %v202
      %v350 = vunpack.c.l.b16 %v203
      %v351 = vunpack.c.l.b16 %v204
      %v352 = vunpack.c.l.b16 %v205
      %v353 = vunpack.c.l.b16 %v206
      %v354 = vunpack.c.l.b16 %v207
      %v355 = vpack.c.b16 %v348, %v347
      %v356 = vpack.c.b16 %v350, %v349
      %v357 = vpack.c.b16 %v352, %v351
      %v358 = vpack.c.b16 %v354, %v353
      %v363 = vsel %vm295, %v199, 0
      %365 = vmatprep.subr.bf16.mxu0 0
      %366 = vmatpush1.bf16.msra.mxu0 %v355
      %367 = vmatprep.subr.bf16.mxu0 0
      %368 = vmatpush1.bf16.msra.mxu0 %v356
      %369 = vmatprep.subr.bf16.mxu0 0
      %370 = vmatpush1.bf16.msra.mxu0 %v357
      %371 = vmatprep.subr.bf16.mxu0 0
      %372 = vmatpush1.bf16.msra.mxu0 %v358
      %373 = vmatprep.subr.bf16.mxu0 0
      %374 = vmatpush1.bf16.msra.mxu0 0
      %375 = vmatprep.subr.bf16.mxu0 0
      %376 = vmatpush1.bf16.msra.mxu0 0
      %377 = vmatprep.subr.bf16.mxu0 0
      %378 = vmatpush1.bf16.msra.mxu0 0
      %379 = vmatprep.subr.bf16.mxu0 0
      %380 = vmatpush1.bf16.msra.mxu0 0
      %381 = vmatprep.subr.bf16.mxu0 0
      %382 = vmatpush1.bf16.msra.mxu0 0
      %383 = vmatprep.subr.bf16.mxu0 0
      %384 = vmatpush1.bf16.msra.mxu0 0
      %385 = vmatprep.subr.bf16.mxu0 0
      %386 = vmatpush1.bf16.msra.mxu0 0
      %387 = vmatprep.subr.bf16.mxu0 0
      %388 = vmatpush1.bf16.msra.mxu0 0
      %389 = vmatprep.subr.bf16.mxu0 0
      %390 = vmatpush1.bf16.msra.mxu0 0
      %391 = vmatprep.subr.bf16.mxu0 0
      %392 = vmatpush1.bf16.msra.mxu0 0
      %393 = vmatprep.subr.bf16.mxu0 0
      %394 = vmatpush1.bf16.msra.mxu0 0
      %395 = vmatprep.subr.bf16.mxu0 0
      %396 = vmatpush1.bf16.msra.mxu0 0
      %397 = vmatprep.mubr.bf16.mxu0 0
      %398 = vmatmul.mubr.bf16.gmra.mrb[0].mxu0 %v363
      %v399 = vpop.f32.mrb[0].mxu0
      %v400 = vadd.f32 %v333, %v399
      %v401 = vpop.f32.mrb[0].mxu0
      %v402 = vpop.f32.mrb[0].mxu0
      %v403 = vadd.f32 %v336, %v402
      %v404 = vpop.f32.mrb[0].mxu0
      %405 = vdwg.mxu0
      %s406 = scalar_lea.vmem %s165, 16
      %v407 = vld [vmem:[%s406] sm:$0x3]
      %v408 = vrot.slane %v185, 6
      %v410 = vunpack.c.l.b16 %v407
      %v411 = vpack.c.b16 %v410, %v410
      %v412 = vrot.slane %v411, 2
      %v415 = vsel %vm190, %v174, %v408
      %v417 = vsel %vm194, %v415, %v188
      %v419 = vsel %vm197, %v417, %v412
      %s420 = scalar_lea.vmem %s1, 64
      %v421 = vld [vmem:[%s420] sm:$0xf]
      %v422 = vld [vmem:[%s420 + $0x4] sm:$0xf]
      %v423 = vld [vmem:[%s420 + $0x8] sm:$0xf]
      %v424 = vld [vmem:[%s420 + $0xc] sm:$0xf]
      %v425 = vld [vmem:[%s420 + $0x10] sm:$0xf]
      %v426 = vld [vmem:[%s420 + $0x14] sm:$0xf]
      %v427 = vld [vmem:[%s420 + $0x18] sm:$0xf]
      %v428 = vld [vmem:[%s420 + $0x1c] sm:$0xf]
      %v437 = vunpack.c.l.b16 %v421
      %v438 = vunpack.c.l.b16 %v422
      %v439 = vunpack.c.l.b16 %v423
      %v440 = vunpack.c.l.b16 %v424
      %v441 = vunpack.c.l.b16 %v425
      %v442 = vunpack.c.l.b16 %v426
      %v443 = vunpack.c.l.b16 %v427
      %v444 = vunpack.c.l.b16 %v428
      %v445 = vpack.c.b16 %v438, %v437
      %v446 = vpack.c.b16 %v440, %v439
      %v447 = vpack.c.b16 %v442, %v441
      %v448 = vpack.c.b16 %v444, %v443
      %v453 = vsel %vm295, %v419, 0
      %455 = vmatprep.subr.bf16.mxu0 0
      %456 = vmatpush1.bf16.msra.mxu0 %v445
      %457 = vmatprep.subr.bf16.mxu0 0
      %458 = vmatpush1.bf16.msra.mxu0 %v446
      %459 = vmatprep.subr.bf16.mxu0 0
      %460 = vmatpush1.bf16.msra.mxu0 %v447
      %461 = vmatprep.subr.bf16.mxu0 0
      %462 = vmatpush1.bf16.msra.mxu0 %v448
      %463 = vmatprep.subr.bf16.mxu0 0
      %464 = vmatpush1.bf16.msra.mxu0 0
      %465 = vmatprep.subr.bf16.mxu0 0
      %466 = vmatpush1.bf16.msra.mxu0 0
      %467 = vmatprep.subr.bf16.mxu0 0
      %468 = vmatpush1.bf16.msra.mxu0 0
      %469 = vmatprep.subr.bf16.mxu0 0
      %470 = vmatpush1.bf16.msra.mxu0 0
      %471 = vmatprep.subr.bf16.mxu0 0
      %472 = vmatpush1.bf16.msra.mxu0 0
      %473 = vmatprep.subr.bf16.mxu0 0
      %474 = vmatpush1.bf16.msra.mxu0 0
      %475 = vmatprep.subr.bf16.mxu0 0
      %476 = vmatpush1.bf16.msra.mxu0 0
      %477 = vmatprep.subr.bf16.mxu0 0
      %478 = vmatpush1.bf16.msra.mxu0 0
      %479 = vmatprep.subr.bf16.mxu0 0
      %480 = vmatpush1.bf16.msra.mxu0 0
      %481 = vmatprep.subr.bf16.mxu0 0
      %482 = vmatpush1.bf16.msra.mxu0 0
      %483 = vmatprep.subr.bf16.mxu0 0
      %484 = vmatpush1.bf16.msra.mxu0 0
      %485 = vmatprep.subr.bf16.mxu0 0
      %486 = vmatpush1.bf16.msra.mxu0 0
      %487 = vmatprep.mubr.bf16.mxu0 0
      %488 = vmatmul.mubr.bf16.gmra.mrb[0].mxu0 %v453
      %v489 = vpop.f32.mrb[0].mxu0
      %v490 = vadd.f32 0.0, %v489
      %v491 = vpop.f32.mrb[0].mxu0
      %v492 = vpop.f32.mrb[0].mxu0
      %v493 = vadd.f32 0.0, %v492
      %v494 = vpop.f32.mrb[0].mxu0
      %495 = vdwg.mxu0
      %v496 = vadd.f32 %v400, %v490
      %v497 = vadd.f32 %v403, %v493
      %v498 = vld [vmem:[%s406] sm:$0x7]
      %v499 = vrot.slane %v229, 1
      %v500 = vor.u32 %v226, %v499
      %v501 = vrot.slane %v237, 6
      %v502 = vrot.slane %v240, 7
      %v503 = vor.u32 %v501, %v502
      %v504 = vrot.slane %v248, 4
      %v505 = vrot.slane %v251, 5
      %v506 = vor.u32 %v504, %v505
      %v508 = vunpack.c.l.b16 %v498
      %v509 = vpack.c.b16 %v508, %v508
      %v511 = vshrl.u32 %v509, 16
      %v513 = vrot.slane %v511, 2
      %v514 = vshll.u32 %v509, 16
      %v516 = vrot.slane %v514, 3
      %v517 = vor.u32 %v513, %v516
      %v520 = vsel %vm190, %v500, %v503
      %v522 = vsel %vm194, %v520, %v506
      %v524 = vsel %vm197, %v522, %v517
      %s525 = scalar_lea.vmem %s1, 96
      %v526 = vld [vmem:[%s525] sm:$0xf]
      %v527 = vld [vmem:[%s525 + $0x4] sm:$0xf]
      %v528 = vld [vmem:[%s525 + $0x8] sm:$0xf]
      %v529 = vld [vmem:[%s525 + $0xc] sm:$0xf]
      %v530 = vld [vmem:[%s525 + $0x10] sm:$0xf]
      %v531 = vld [vmem:[%s525 + $0x14] sm:$0xf]
      %v532 = vld [vmem:[%s525 + $0x18] sm:$0xf]
      %v533 = vld [vmem:[%s525 + $0x1c] sm:$0xf]
      %v542 = vunpack.c.l.b16 %v526
      %v543 = vunpack.c.l.b16 %v527
      %v544 = vunpack.c.l.b16 %v528
      %v545 = vunpack.c.l.b16 %v529
      %v546 = vunpack.c.l.b16 %v530
      %v547 = vunpack.c.l.b16 %v531
      %v548 = vunpack.c.l.b16 %v532
      %v549 = vunpack.c.l.b16 %v533
      %v550 = vpack.c.b16 %v543, %v542
      %v551 = vpack.c.b16 %v545, %v544
      %v552 = vpack.c.b16 %v547, %v546
      %v553 = vpack.c.b16 %v549, %v548
      %v558 = vsel %vm295, %v524, 0
      %560 = vmatprep.subr.bf16.mxu0 0
      %561 = vmatpush1.bf16.msra.mxu0 %v550
      %562 = vmatprep.subr.bf16.mxu0 0
      %563 = vmatpush1.bf16.msra.mxu0 %v551
      %564 = vmatprep.subr.bf16.mxu0 0
      %565 = vmatpush1.bf16.msra.mxu0 %v552
      %566 = vmatprep.subr.bf16.mxu0 0
      %567 = vmatpush1.bf16.msra.mxu0 %v553
      %568 = vmatprep.subr.bf16.mxu0 0
      %569 = vmatpush1.bf16.msra.mxu0 0
      %570 = vmatprep.subr.bf16.mxu0 0
      %571 = vmatpush1.bf16.msra.mxu0 0
      %572 = vmatprep.subr.bf16.mxu0 0
      %573 = vmatpush1.bf16.msra.mxu0 0
      %574 = vmatprep.subr.bf16.mxu0 0
      %575 = vmatpush1.bf16.msra.mxu0 0
      %576 = vmatprep.subr.bf16.mxu0 0
      %577 = vmatpush1.bf16.msra.mxu0 0
      %578 = vmatprep.subr.bf16.mxu0 0
      %579 = vmatpush1.bf16.msra.mxu0 0
      %580 = vmatprep.subr.bf16.mxu0 0
      %581 = vmatpush1.bf16.msra.mxu0 0
      %582 = vmatprep.subr.bf16.mxu0 0
      %583 = vmatpush1.bf16.msra.mxu0 0
      %584 = vmatprep.subr.bf16.mxu0 0
      %585 = vmatpush1.bf16.msra.mxu0 0
      %586 = vmatprep.subr.bf16.mxu0 0
      %587 = vmatpush1.bf16.msra.mxu0 0
      %588 = vmatprep.subr.bf16.mxu0 0
      %589 = vmatpush1.bf16.msra.mxu0 0
      %590 = vmatprep.subr.bf16.mxu0 0
      %591 = vmatpush1.bf16.msra.mxu0 0
      %592 = vmatprep.mubr.bf16.mxu0 0
      %593 = vmatmul.mubr.bf16.gmra.mrb[0].mxu0 %v558
      %v594 = vpop.f32.mrb[0].mxu0
      %v595 = vadd.f32 0.0, %v594
      %v596 = vpop.f32.mrb[0].mxu0
      %v597 = vpop.f32.mrb[0].mxu0
      %v598 = vadd.f32 0.0, %v597
      %v599 = vpop.f32.mrb[0].mxu0
      %600 = vdwg.mxu0
      %v601 = vadd.f32 %v496, %v595
      %v602 = vadd.f32 %v497, %v598
      %v603 = vld [vmem:[%s2] sm:$0x1]
      %v605 = vlaneseq
      %v606 = vshrl.u32 %v605, 7
      %v607 = vsub.s32 0, %v606
      %v608 = vrot.slane %v603, %v607
      %v610 = vadd.f32 %v601, %v608
      %v611 = vadd.f32 %v602, %v608
      %v612 = vmul.f32 %v610, 0.1
      %v613 = vmul.f32 %v611, 0.1
      %v614 = vmax.f32 %v610, %v612
      %v615 = vmax.f32 %v611, %v613
      %v616 = vpack.c.bf16 %v615, %v614
      %v618 = vunpack.c.l.b16 %v616
      %v619 = vunpack.c.h.b16 %v616
      %v620 = vpack.c.b16 %v618, %v618
      %v621 = vpack.c.b16 %v619, %v619
      %vm624 = vcmask 257024
      %625 = vst.msk [vmem:[%s170] sm:$0xf] %vm624, %v620
      %626 = vst.msk [vmem:[%s170 + $0x4] sm:$0xf] %vm624, %v621
      %p627 = scmp.lt.s32.totalorder %s14, 1
      %s628 = scalar_select %p627, %s14, 1
      %s629 = smul.addr %s628, 2
      %s630 = smul.addr %s629, 4
      %s631 = scalar_lea.vmem %s3, %s630
      // Predicated region
      $region33: #{discriminator_forward.7} parent=31 // pred_check
        %p632 = pneg %p100
      $region34: #{discriminator_forward.7} parent=31 // pred_check_branch
        %634 = sbr.rel (%p632) target = $region36
      $region35: #{discriminator_forward.7} parent=31 // pred_region
        _
      $region36: #{discriminator_forward.7} parent=31 // pred_fallthru
        _
    $region32: #{discriminator_forward.7} parent=5 // pred_fallthru
      _
    %p635 = scmp.le.s32.totalorder 2, %s9
    // Predicated region
    $region37: #{discriminator_forward.7} parent=5 // pred_check
      %p636 = pneg %p635
    $region38: #{discriminator_forward.7} parent=5 // pred_check_branch
      %638 = sbr.rel (%p636) target = $region40
    $region39: #{discriminator_forward.7} parent=5 // pred_region
      %s639 = ssub.s32 %s9, 2
      // Predicated region
      $region41: #{discriminator_forward.7} parent=39 // pred_check
        %p640 = pneg %p106
      $region42: #{discriminator_forward.7} parent=39 // pred_check_branch
        %642 = sbr.rel (%p640) target = $region44
      $region43: #{discriminator_forward.7} parent=39 // pred_region
        %p643 = scmp.lt.s32.totalorder %s15, 1
        %s644 = scalar_select %p643, %s15, 1
        %s645 = smul.addr %s644, 2
        %s646 = smul.addr %s645, 4
        %s647 = scalar_lea.vmem %s3, %s646
      $region44: #{discriminator_forward.7} parent=39 // pred_fallthru
        _
    $region40: #{discriminator_forward.7} parent=5 // pred_fallthru
      _
  $region6: #{discriminator_forward.7} parent=0 // loop_footer
    %s13 = sadd.s32 1, %s9
  $region7: #{discriminator_forward.7} parent=0 // loop_footer_branch
    %8 = sbr.rel target = $region3
  $region8: #{discriminator_forward.7} parent=0 // loop_exit
    _

// kernel: discriminator_forward.9
$region0: #{discriminator_forward.9}
  #allocation0 [shape = 'u32[]', space=smem, size = 0x4, offset = 0x4, fixed_abs, tag = 'smem constant byte address 0x4 - core index']
  #allocation1 [shape = 'u32[144,128]{1,0:T(1,128)}', space=vmem, size = 0x12000, scoped, tag = 'internal scratch']
  #allocation2 [shape = 'f32[1,1]{1,0:T(1,128)S(1)}', space=vmem, size = 0x200, scoped, tag = 'scoped memory for discriminator_forward.9']
  %s0 = inlined_call_operand.vmem [shape: bf16[2,2,2,256], index: 0, kind: input, shape index: {}]
  %s1 = inlined_call_operand.vmem [shape: f32[1,1024], index: 1, kind: input, shape index: {}]
  %s2 = inlined_call_operand.<no memory space> [shape: f32[1,1], index: 2, kind: input, shape index: {}]
  %s3 = inlined_call_operand.vmem [shape: f32[2,1], index: 3, kind: output, shape index: {}]
  %s4 = sld [smem:[#allocation0]]
  $region22: #{discriminator_forward.9} parent=0
    _
  %s6 = ssub.s32 1, %s4
  %s7 = scalar_select 0, %s6, %s4
  %v8 = vstv %s2
  %9 = vst [vmem:[#allocation2] sm:$0x1] %v8
  // Predicated region
  $region2: #{discriminator_forward.9} parent=0 // pred_check
    _
  $region3: #{discriminator_forward.9} parent=0 // pred_check_branch
    %11 = sbr.rel (0) target = $region5
  $region4: #{discriminator_forward.9} parent=0 // pred_region
    _
  $region5: #{discriminator_forward.9} parent=0 // pred_fallthru
    _
  // Predicated region
  $region6: #{discriminator_forward.9} parent=0 // pred_check
    _
  $region7: #{discriminator_forward.9} parent=0 // pred_check_branch
    %13 = sbr.rel (0) target = $region9
  $region8: #{discriminator_forward.9} parent=0 // pred_region
    _
  $region9: #{discriminator_forward.9} parent=0 // pred_fallthru
    _
  // Predicated region
  $region10: #{discriminator_forward.9} parent=0 // pred_check
    _
  $region11: #{discriminator_forward.9} parent=0 // pred_check_branch
    %15 = sbr.rel (0) target = $region13
  $region12: #{discriminator_forward.9} parent=0 // pred_region
    _
  $region13: #{discriminator_forward.9} parent=0 // pred_fallthru
    _
  %v16 = vld [vmem:[%s0] sm:$0x3]
  %v17 = vld [vmem:[%s0 + $0x2] sm:$0x3]
  %v18 = vld [vmem:[%s0 + $0x4] sm:$0x3]
  %v19 = vld [vmem:[%s0 + $0x6] sm:$0x3]
  %v20 = vunpack.c.l.bf16 %v16
  %v21 = vunpack.c.l.bf16 %v17
  %v22 = vunpack.c.l.bf16 %v18
  %v23 = vunpack.c.l.bf16 %v19
  %v24 = vadd.f32 %v20, 0.0
  %v25 = vadd.f32 %v22, 0.0
  %v26 = vadd.f32 %v24, 0.0
  %v27 = vadd.f32 %v25, 0.0
  %v28 = vadd.f32 %v21, 0.0
  %v29 = vadd.f32 %v23, 0.0
  %v30 = vadd.f32 %v28, 0.0
  %v31 = vadd.f32 %v29, 0.0
  %v34 = vlaneseq
  %v35 = vshrl.u32 %v34, 7
  %v36 = vsub.s32 0, %v35
  %v37 = vrot.slane %v26, %v36
  %v38 = vlaneseq
  %v39 = vshrl.u32 %v38, 7
  %v40 = vsub.s32 2, %v39
  %v41 = vrot.slane %v26, %v40
  %v42 = vlaneseq
  %v43 = vshrl.u32 %v42, 7
  %v44 = vsub.s32 0, %v43
  %v45 = vrot.slane %v27, %v44
  %v46 = vlaneseq
  %v47 = vshrl.u32 %v46, 7
  %v48 = vsub.s32 2, %v47
  %v49 = vrot.slane %v27, %v48
  %vm50 = vcmask 1041409
  %v51 = vsel %vm50, %v45, %v37
  %v52 = vsel %vm50, %v49, %v41
  %v55 = vlaneseq
  %v56 = vshrl.u32 %v55, 7
  %v57 = vsub.s32 1, %v56
  %v58 = vrot.slane %v26, %v57
  %v59 = vlaneseq
  %v60 = vshrl.u32 %v59, 7
  %v61 = vsub.s32 3, %v60
  %v62 = vrot.slane %v26, %v61
  %v63 = vlaneseq
  %v64 = vshrl.u32 %v63, 7
  %v65 = vsub.s32 1, %v64
  %v66 = vrot.slane %v27, %v65
  %v67 = vlaneseq
  %v68 = vshrl.u32 %v67, 7
  %v69 = vsub.s32 3, %v68
  %v70 = vrot.slane %v27, %v69
  %v71 = vsel %vm50, %v66, %v58
  %v72 = vsel %vm50, %v70, %v62
  %v77 = vlaneseq
  %v78 = vshrl.u32 %v77, 7
  %v79 = vsub.s32 0, %v78
  %v80 = vrot.slane %v30, %v79
  %v81 = vlaneseq
  %v82 = vshrl.u32 %v81, 7
  %v83 = vsub.s32 2, %v82
  %v84 = vrot.slane %v30, %v83
  %v85 = vlaneseq
  %v86 = vshrl.u32 %v85, 7
  %v87 = vsub.s32 0, %v86
  %v88 = vrot.slane %v31, %v87
  %v89 = vlaneseq
  %v90 = vshrl.u32 %v89, 7
  %v91 = vsub.s32 2, %v90
  %v92 = vrot.slane %v31, %v91
  %v93 = vsel %vm50, %v88, %v80
  %v94 = vsel %vm50, %v92, %v84
  %v97 = vlaneseq
  %v98 = vshrl.u32 %v97, 7
  %v99 = vsub.s32 1, %v98
  %v100 = vrot.slane %v30, %v99
  %v101 = vlaneseq
  %v102 = vshrl.u32 %v101, 7
  %v103 = vsub.s32 3, %v102
  %v104 = vrot.slane %v30, %v103
  %v105 = vlaneseq
  %v106 = vshrl.u32 %v105, 7
  %v107 = vsub.s32 1, %v106
  %v108 = vrot.slane %v31, %v107
  %v109 = vlaneseq
  %v110 = vshrl.u32 %v109, 7
  %v111 = vsub.s32 3, %v110
  %v112 = vrot.slane %v31, %v111
  %v113 = vsel %vm50, %v108, %v100
  %v114 = vsel %vm50, %v112, %v104
  %v117 = vld [vmem:[%s1] sm:$0xff]
  %v119 = vlaneseq
  %v120 = vshrl.u32 %v119, 7
  %v121 = vsub.s32 0, %v120
  %v122 = vrot.slane %v117, %v121
  %v123 = vlaneseq
  %v124 = vshrl.u32 %v123, 7
  %v125 = vsub.s32 1, %v124
  %v126 = vrot.slane %v117, %v125
  %v127 = vlaneseq
  %v128 = vshrl.u32 %v127, 7
  %v129 = vsub.s32 2, %v128
  %v130 = vrot.slane %v117, %v129
  %v131 = vlaneseq
  %v132 = vshrl.u32 %v131, 7
  %v133 = vsub.s32 3, %v132
  %v134 = vrot.slane %v117, %v133
  %v135 = vlaneseq
  %v136 = vshrl.u32 %v135, 7
  %v137 = vsub.s32 4, %v136
  %v138 = vrot.slane %v117, %v137
  %v139 = vlaneseq
  %v140 = vshrl.u32 %v139, 7
  %v141 = vsub.s32 5, %v140
  %v142 = vrot.slane %v117, %v141
  %v143 = vlaneseq
  %v144 = vshrl.u32 %v143, 7
  %v145 = vsub.s32 6, %v144
  %v146 = vrot.slane %v117, %v145
  %v147 = vlaneseq
  %v148 = vshrl.u32 %v147, 7
  %v149 = vsub.s32 7, %v148
  %v150 = vrot.slane %v117, %v149
  %v159 = vmul.f32 %v51, %v122
  %v160 = vmul.f32 %v52, %v126
  %v161 = vmul.f32 %v71, %v130
  %v162 = vmul.f32 %v72, %v134
  %v163 = vmul.f32 %v93, %v138
  %v164 = vmul.f32 %v94, %v142
  %v165 = vmul.f32 %v113, %v146
  %v166 = vmul.f32 %v114, %v150
  %vm167 = vcmask 1041408
  %v168 = vsel %vm167, %v159, 0.0
  %v169 = vsel %vm167, %v160, 0.0
  %v170 = vadd.f32 %v168, %v169
  %v171 = vsel %vm167, %v161, 0.0
  %v172 = vadd.f32 %v170, %v171
  %v173 = vsel %vm167, %v162, 0.0
  %v174 = vadd.f32 %v172, %v173
  %v175 = vsel %vm167, %v163, 0.0
  %v176 = vadd.f32 %v174, %v175
  %v177 = vsel %vm167, %v164, 0.0
  %v178 = vadd.f32 %v176, %v177
  %v179 = vsel %vm167, %v165, 0.0
  %v180 = vadd.f32 %v178, %v179
  %v181 = vsel %vm167, %v166, 0.0
  %v182 = vadd.f32 %v180, %v181
  %183 = vadd.xlane.f32.xlu0 %v182
  %v184 = vpop.xlane.xlu0 %183
  %v185 = vld [vmem:[#allocation2] sm:$0x1]
  %v187 = vlaneseq
  %v188 = vshrl.u32 %v187, 7
  %v189 = vsub.s32 0, %v188
  %v190 = vrot.slane %v185, %v189
  %v192 = vadd.f32 %v184, %v190
  %vm193 = vcmask 1024
  %194 = vst.msk [vmem:[%s3] sm:$0x3] %vm193, %v192
  // Predicated region
  $region14: #{discriminator_forward.9} parent=0 // pred_check
    _
  $region15: #{discriminator_forward.9} parent=0 // pred_check_branch
    %196 = sbr.rel (0) target = $region17
  $region16: #{discriminator_forward.9} parent=0 // pred_region
    _
  $region17: #{discriminator_forward.9} parent=0 // pred_fallthru
    _
  // Predicated region
  $region18: #{discriminator_forward.9} parent=0 // pred_check
    _
  $region19: #{discriminator_forward.9} parent=0 // pred_check_branch
    %198 = sbr.rel (0) target = $region21
  $region20: #{discriminator_forward.9} parent=0 // pred_region
    _
  $region21: #{discriminator_forward.9} parent=0 // pred_fallthru
    _

// kernel: discriminator_forward.8
$region0: #{discriminator_forward.8}
  #allocation0 [shape = 'u32[]', space=smem, size = 0x4, offset = 0x4, fixed_abs, tag = 'smem constant byte address 0x4 - core index']
  #allocation1 [shape = 'u32[144,128]{1,0:T(1,128)}', space=vmem, size = 0x12000, scoped, tag = 'internal scratch']
  %s0 = inlined_call_operand.vmem [shape: bf16[2,3,3,128], index: 0, kind: input, shape index: {}]
  %s1 = inlined_call_operand.vmem [shape: bf16[4,128,64], index: 1, kind: input, shape index: {}]
  %s2 = inlined_call_operand.vmem [shape: f32[1,64], index: 2, kind: input, shape index: {}]
  %s3 = inlined_call_operand.vmem [shape: bf16[2,4,64], index: 3, kind: output, shape index: {}]
  %s4 = sld [smem:[#allocation0]]
  $region45: #{discriminator_forward.8} parent=0
    _
  %s6 = ssub.s32 1, %s4
  %s7 = scalar_select 0, %s6, %s4
  loop: start=0, step=1, limit=4
  $region2: #{discriminator_forward.8} parent=0 // loop_pre_header
    _
  $region3: #{discriminator_forward.8} parent=0 // loop_header
    %s9 = sphi 0, %s13
    %p10 = scmp.ge.s32.totalorder %s9, 4
    %s19 = sphi 0, %s21
    %s22 = sphi 0, %s19
    %s23 = sphi 0, %s22
    %s39 = sphi 0, %s23
    %s43 = sphi 0, %s43
    %s45 = sphi 0, %s43
    %s46 = sphi 0, %s45
    %s60 = sphi 0, %s46
    %s64 = sphi 0, %s64
    %s66 = sphi 0, %s64
    %s67 = sphi 0, %s66
    %s81 = sphi 0, %s67
    %s87 = sphi 0, %s89
    %s90 = sphi 0, %s87
    %s91 = sphi 0, %s90
    %s107 = sphi 0, %s91
  $region4: #{discriminator_forward.8} parent=0 // loop_header_branch
    %12 = sbr.rel (%p10) target = $region8
  $region5: #{discriminator_forward.8} parent=0 // loop_body
    %s14 = ssub.s32 %s9, 1
    %s15 = ssub.s32 %s9, 2
    %s16 = sadd.s32 %s9, 1
    %s17 = ssub.s32 %s9, %s16
    %p18 = scmp.eq.s32.totalorder %s17, 0
    %s20 = sadd.s32 %s19, 1
    %s21 = scalar_select %p18, %s19, %s20
    %p24 = pneg %p18
    %p25 = scmp.eq.s32.totalorder %s9, 1
    %p26 = por %p24, %p25
    %p27 = scmp.ne.s32.totalorder %s19, %s22
    %p28 = scmp.eq.s32.totalorder %s9, 0
    %p29 = por %p27, %p28
    %p30 = scmp.ne.s32.totalorder %s19, %s22
    %p31 = scmp.eq.s32.totalorder %s14, 1
    %p32 = por %p30, %p31
    %p33 = scmp.ne.s32.totalorder %s22, %s23
    %p34 = scmp.eq.s32.totalorder %s14, 0
    %p35 = por %p33, %p34
    %p36 = scmp.ne.s32.totalorder %s22, %s23
    %p37 = scmp.eq.s32.totalorder %s15, 1
    %p38 = por %p36, %p37
    %p40 = scmp.ne.s32.totalorder %s23, %s39
    %p41 = scmp.eq.s32.totalorder %s15, 0
    %p42 = por %p40, %p41
    %s44 = sadd.s32 %s43, 1
    %p47 = scmp.eq.s32.totalorder %s9, 1
    %p48 = scmp.ne.s32.totalorder %s43, %s45
    %p49 = scmp.eq.s32.totalorder %s9, 0
    %p50 = por %p48, %p49
    %p51 = scmp.ne.s32.totalorder %s43, %s45
    %p52 = scmp.eq.s32.totalorder %s14, 1
    %p53 = por %p51, %p52
    %p54 = scmp.ne.s32.totalorder %s45, %s46
    %p55 = scmp.eq.s32.totalorder %s14, 0
    %p56 = por %p54, %p55
    %p57 = scmp.ne.s32.totalorder %s45, %s46
    %p58 = scmp.eq.s32.totalorder %s15, 1
    %p59 = por %p57, %p58
    %p61 = scmp.ne.s32.totalorder %s46, %s60
    %p62 = scmp.eq.s32.totalorder %s15, 0
    %p63 = por %p61, %p62
    %s65 = sadd.s32 %s64, 1
    %p68 = scmp.eq.s32.totalorder %s9, 1
    %p69 = scmp.ne.s32.totalorder %s64, %s66
    %p70 = scmp.eq.s32.totalorder %s9, 0
    %p71 = por %p69, %p70
    %p72 = scmp.ne.s32.totalorder %s64, %s66
    %p73 = scmp.eq.s32.totalorder %s14, 1
    %p74 = por %p72, %p73
    %p75 = scmp.ne.s32.totalorder %s66, %s67
    %p76 = scmp.eq.s32.totalorder %s14, 0
    %p77 = por %p75, %p76
    %p78 = scmp.ne.s32.totalorder %s66, %s67
    %p79 = scmp.eq.s32.totalorder %s15, 1
    %p80 = por %p78, %p79
    %p82 = scmp.ne.s32.totalorder %s67, %s81
    %p83 = scmp.eq.s32.totalorder %s15, 0
    %p84 = por %p82, %p83
    %s85 = ssub.s32 %s9, %s16
    %p86 = scmp.eq.s32.totalorder %s85, 0
    %s88 = sadd.s32 %s87, 1
    %s89 = scalar_select %p86, %s87, %s88
    %p92 = pneg %p86
    %p93 = scmp.eq.s32.totalorder %s9, 1
    %p94 = por %p92, %p93
    %p95 = scmp.ne.s32.totalorder %s87, %s90
    %p96 = scmp.eq.s32.totalorder %s9, 0
    %p97 = por %p95, %p96
    %p98 = scmp.ne.s32.totalorder %s87, %s90
    %p99 = scmp.eq.s32.totalorder %s14, 1
    %p100 = por %p98, %p99
    %p101 = scmp.ne.s32.totalorder %s90, %s91
    %p102 = scmp.eq.s32.totalorder %s14, 0
    %p103 = por %p101, %p102
    %p104 = scmp.ne.s32.totalorder %s90, %s91
    %p105 = scmp.eq.s32.totalorder %s15, 1
    %p106 = por %p104, %p105
    %p108 = scmp.ne.s32.totalorder %s91, %s107
    %p109 = scmp.eq.s32.totalorder %s15, 0
    %p110 = por %p108, %p109
    %p111 = scmp.le.s32.totalorder 1, %s9
    %p112 = scmp.lt.s32.totalorder %s9, 3
    %p113 = pnand %p111, %p112
    %p114 = pneg %p113
    // Predicated region
    $region9: #{discriminator_forward.8} parent=5 // pred_check
      _
    $region10: #{discriminator_forward.8} parent=5 // pred_check_branch
      %116 = sbr.rel (%p113) target = $region12
    $region11: #{discriminator_forward.8} parent=5 // pred_region
      %s117 = ssub.s32 %s9, 1
      // Predicated region
      $region13: #{discriminator_forward.8} parent=11 // pred_check
        %p118 = pneg %p56
      $region14: #{discriminator_forward.8} parent=11 // pred_check_branch
        %120 = sbr.rel (%p118) target = $region16
      $region15: #{discriminator_forward.8} parent=11 // pred_region
        _
      $region16: #{discriminator_forward.8} parent=11 // pred_fallthru
        _
      // Predicated region
      $region17: #{discriminator_forward.8} parent=11 // pred_check
        %p121 = pneg %p77
      $region18: #{discriminator_forward.8} parent=11 // pred_check_branch
        %123 = sbr.rel (%p121) target = $region20
      $region19: #{discriminator_forward.8} parent=11 // pred_region
        _
      $region20: #{discriminator_forward.8} parent=11 // pred_fallthru
        _
    $region12: #{discriminator_forward.8} parent=5 // pred_fallthru
      _
    %p124 = scmp.lt.s32.totalorder %s9, 2
    // Predicated region
    $region21: #{discriminator_forward.8} parent=5 // pred_check
      %p125 = pneg %p124
    $region22: #{discriminator_forward.8} parent=5 // pred_check_branch
      %127 = sbr.rel (%p125) target = $region24
    $region23: #{discriminator_forward.8} parent=5 // pred_region
      // Predicated region
      $region25: #{discriminator_forward.8} parent=23 // pred_check
        %p128 = pneg %p29
      $region26: #{discriminator_forward.8} parent=23 // pred_check_branch
        %130 = sbr.rel (%p128) target = $region28
      $region27: #{discriminator_forward.8} parent=23 // pred_region
        %p131 = scmp.lt.s32.totalorder %s9, 1
        %s132 = scalar_select %p131, %s9, 1
        %s133 = smul.addr %s132, 3
        %s134 = smul.addr %s133, 2
        %s135 = scalar_lea.vmem %s0, %s134
      $region28: #{discriminator_forward.8} parent=23 // pred_fallthru
        _
    $region24: #{discriminator_forward.8} parent=5 // pred_fallthru
      _
    %p136 = scmp.le.s32.totalorder 1, %s9
    %p137 = scmp.lt.s32.totalorder %s9, 3
    %p138 = pnand %p136, %p137
    %p139 = pneg %p138
    // Predicated region
    $region29: #{discriminator_forward.8} parent=5 // pred_check
      _
    $region30: #{discriminator_forward.8} parent=5 // pred_check_branch
      %141 = sbr.rel (%p138) target = $region32
    $region31: #{discriminator_forward.8} parent=5 // pred_region
      %s142 = ssub.s32 %s9, 1
      %p143 = scmp.lt.s32.totalorder %s14, 1
      %s144 = scalar_select %p143, %s14, 1
      %s145 = smul.addr %s144, 3
      %s146 = smul.addr %s145, 2
      %s147 = scalar_lea.vmem %s0, %s146
      %p148 = pneg %p35
      %p149 = pneg %p32
      %p150 = pneg %p56
      %p151 = pneg %p53
      %p152 = pneg %p77
      %p153 = pneg %p74
      %p154 = pneg %p103
      %p155 = pneg %p100
      %p156 = scmp.lt.s32.totalorder %s14, 1
      %s157 = scalar_select %p156, %s14, 1
      %s158 = smul.addr %s157, 2
      %s159 = scalar_lea.vmem %s3, %s158
      %p160 = scmp.lt.s32.totalorder %s14, 1
      %s161 = scalar_select %p160, %s14, 1
      %s162 = smul.addr %s161, 3
      %s163 = smul.addr %s162, 2
      %s164 = scalar_lea.vmem %s0, %s163
      %p165 = scmp.lt.s32.totalorder %s14, 1
      %s166 = scalar_select %p165, %s14, 1
      %s167 = smul.addr %s166, 2
      %s168 = scalar_lea.vmem %s3, %s167
      %v170 = vld [vmem:[%s164] sm:$0x1]
      %s171 = scalar_lea.vmem %s164, 2
      %v172 = vld [vmem:[%s171] sm:$0x1]
      %v175 = vunpack.c.l.s4 1983009808
      %v176 = vunpack.c.0.s8 %v175
      %v177 = vlaneseq
      %v178 = vshrl.u32 %v177, 7
      %v179 = vsub.s32 %v176, %v178
      %v180 = vrot.slane %v172, %v179
      %v181 = vrot.slane %v180, 7
      %vm182 = vcmask 1040384
      %v185 = vsel %vm182, %v170, %v181
      %v187 = vld [vmem:[%s1] sm:$0xf]
      %v188 = vld [vmem:[%s1 + $0x4] sm:$0xf]
      %v189 = vld [vmem:[%s1 + $0x8] sm:$0xf]
      %v190 = vld [vmem:[%s1 + $0xc] sm:$0xf]
      %v191 = vld [vmem:[%s1 + $0x10] sm:$0xf]
      %v192 = vld [vmem:[%s1 + $0x14] sm:$0xf]
      %v193 = vld [vmem:[%s1 + $0x18] sm:$0xf]
      %v194 = vld [vmem:[%s1 + $0x1c] sm:$0xf]
      %v195 = vld [vmem:[%s1 + $0x20] sm:$0xf]
      %v196 = vld [vmem:[%s1 + $0x24] sm:$0xf]
      %v197 = vld [vmem:[%s1 + $0x28] sm:$0xf]
      %v198 = vld [vmem:[%s1 + $0x2c] sm:$0xf]
      %v199 = vld [vmem:[%s1 + $0x30] sm:$0xf]
      %v200 = vld [vmem:[%s1 + $0x34] sm:$0xf]
      %v201 = vld [vmem:[%s1 + $0x38] sm:$0xf]
      %v202 = vld [vmem:[%s1 + $0x3c] sm:$0xf]
      %v203 = vld [vmem:[%s164] sm:$0x3]
      %v204 = vld [vmem:[%s171] sm:$0x3]
      %v207 = vunpack.c.l.s4 1983009808
      %v208 = vunpack.c.0.s8 %v207
      %v209 = vlaneseq
      %v210 = vshrl.u32 %v209, 7
      %v211 = vsub.s32 %v208, %v210
      %v212 = vrot.slane %v203, %v211
      %v214 = vshrl.u32 %v212, 16
      %v216 = vshll.u32 %v212, 16
      %v218 = vrot.slane %v216, 1
      %v219 = vor.u32 %v214, %v218
      %v222 = vunpack.c.l.s4 1983009808
      %v223 = vunpack.c.0.s8 %v222
      %v224 = vlaneseq
      %v225 = vshrl.u32 %v224, 7
      %v226 = vsub.s32 %v223, %v225
      %v227 = vrot.slane %v204, %v226
      %v229 = vshrl.u32 %v227, 16
      %v231 = vrot.slane %v229, 7
      %v232 = vshll.u32 %v227, 16
      %v234 = vor.u32 %v231, %v232
      %v237 = vsel %vm182, %v219, %v234
      %s239 = scalar_lea.vmem %s1, 64
      %v240 = vld [vmem:[%s239] sm:$0xf]
      %v241 = vld [vmem:[%s239 + $0x4] sm:$0xf]
      %v242 = vld [vmem:[%s239 + $0x8] sm:$0xf]
      %v243 = vld [vmem:[%s239 + $0xc] sm:$0xf]
      %v244 = vld [vmem:[%s239 + $0x10] sm:$0xf]
      %v245 = vld [vmem:[%s239 + $0x14] sm:$0xf]
      %v246 = vld [vmem:[%s239 + $0x18] sm:$0xf]
      %v247 = vld [vmem:[%s239 + $0x1c] sm:$0xf]
      %v248 = vld [vmem:[%s239 + $0x20] sm:$0xf]
      %v249 = vld [vmem:[%s239 + $0x24] sm:$0xf]
      %v250 = vld [vmem:[%s239 + $0x28] sm:$0xf]
      %v251 = vld [vmem:[%s239 + $0x2c] sm:$0xf]
      %v252 = vld [vmem:[%s239 + $0x30] sm:$0xf]
      %v253 = vld [vmem:[%s239 + $0x34] sm:$0xf]
      %v254 = vld [vmem:[%s239 + $0x38] sm:$0xf]
      %v255 = vld [vmem:[%s239 + $0x3c] sm:$0xf]
      %v272 = vunpack.c.l.b16 %v240
      %v273 = vunpack.c.l.b16 %v241
      %v274 = vunpack.c.l.b16 %v242
      %v275 = vunpack.c.l.b16 %v243
      %v276 = vunpack.c.l.b16 %v244
      %v277 = vunpack.c.l.b16 %v245
      %v278 = vunpack.c.l.b16 %v246
      %v279 = vunpack.c.l.b16 %v247
      %v280 = vunpack.c.l.b16 %v248
      %v281 = vunpack.c.l.b16 %v249
      %v282 = vunpack.c.l.b16 %v250
      %v283 = vunpack.c.l.b16 %v251
      %v284 = vunpack.c.l.b16 %v252
      %v285 = vunpack.c.l.b16 %v253
      %v286 = vunpack.c.l.b16 %v254
      %v287 = vunpack.c.l.b16 %v255
      %v288 = vpack.c.b16 %v273, %v272
      %v289 = vpack.c.b16 %v275, %v274
      %v290 = vpack.c.b16 %v277, %v276
      %v291 = vpack.c.b16 %v279, %v278
      %v292 = vpack.c.b16 %v281, %v280
      %v293 = vpack.c.b16 %v283, %v282
      %v294 = vpack.c.b16 %v285, %v284
      %v295 = vpack.c.b16 %v287, %v286
      %304 = vmatprep.subr.bf16.mxu0 0
      %305 = vmatpush1.bf16.msra.mxu0 %v288
      %306 = vmatprep.subr.bf16.mxu0 0
      %307 = vmatpush1.bf16.msra.mxu0 %v289
      %308 = vmatprep.subr.bf16.mxu0 0
      %309 = vmatpush1.bf16.msra.mxu0 %v290
      %310 = vmatprep.subr.bf16.mxu0 0
      %311 = vmatpush1.bf16.msra.mxu0 %v291
      %312 = vmatprep.subr.bf16.mxu0 0
      %313 = vmatpush1.bf16.msra.mxu0 %v292
      %314 = vmatprep.subr.bf16.mxu0 0
      %315 = vmatpush1.bf16.msra.mxu0 %v293
      %316 = vmatprep.subr.bf16.mxu0 0
      %317 = vmatpush1.bf16.msra.mxu0 %v294
      %318 = vmatprep.subr.bf16.mxu0 0
      %319 = vmatpush1.bf16.msra.mxu0 %v295
      %320 = vmatprep.subr.bf16.mxu0 0
      %321 = vmatpush1.bf16.msra.mxu0 0
      %322 = vmatprep.subr.bf16.mxu0 0
      %323 = vmatpush1.bf16.msra.mxu0 0
      %324 = vmatprep.subr.bf16.mxu0 0
      %325 = vmatpush1.bf16.msra.mxu0 0
      %326 = vmatprep.subr.bf16.mxu0 0
      %327 = vmatpush1.bf16.msra.mxu0 0
      %328 = vmatprep.subr.bf16.mxu0 0
      %329 = vmatpush1.bf16.msra.mxu0 0
      %330 = vmatprep.subr.bf16.mxu0 0
      %331 = vmatpush1.bf16.msra.mxu0 0
      %332 = vmatprep.subr.bf16.mxu0 0
      %333 = vmatpush1.bf16.msra.mxu0 0
      %334 = vmatprep.subr.bf16.mxu0 0
      %335 = vmatpush1.bf16.msra.mxu0 0
      %336 = vmatprep.mubr.bf16.mxu0 0
      %337 = vmatmul.mubr.bf16.gmra.mrb[0].mxu0 %v237
      %v338 = vpop.f32.mrb[0].mxu0
      %v339 = vadd.f32 0.0, %v338
      %v340 = vpop.f32.mrb[0].mxu0
      %v341 = vpop.f32.mrb[0].mxu0
      %v342 = vpop.f32.mrb[0].mxu0
      %343 = vdwg.mxu0
      %v360 = vunpack.c.l.b16 %v187
      %v361 = vunpack.c.l.b16 %v188
      %v362 = vunpack.c.l.b16 %v189
      %v363 = vunpack.c.l.b16 %v190
      %v364 = vunpack.c.l.b16 %v191
      %v365 = vunpack.c.l.b16 %v192
      %v366 = vunpack.c.l.b16 %v193
      %v367 = vunpack.c.l.b16 %v194
      %v368 = vunpack.c.l.b16 %v195
      %v369 = vunpack.c.l.b16 %v196
      %v370 = vunpack.c.l.b16 %v197
      %v371 = vunpack.c.l.b16 %v198
      %v372 = vunpack.c.l.b16 %v199
      %v373 = vunpack.c.l.b16 %v200
      %v374 = vunpack.c.l.b16 %v201
      %v375 = vunpack.c.l.b16 %v202
      %v376 = vpack.c.b16 %v361, %v360
      %v377 = vpack.c.b16 %v363, %v362
      %v378 = vpack.c.b16 %v365, %v364
      %v379 = vpack.c.b16 %v367, %v366
      %v380 = vpack.c.b16 %v369, %v368
      %v381 = vpack.c.b16 %v371, %v370
      %v382 = vpack.c.b16 %v373, %v372
      %v383 = vpack.c.b16 %v375, %v374
      %392 = vmatprep.subr.bf16.mxu0 0
      %393 = vmatpush1.bf16.msra.mxu0 %v376
      %394 = vmatprep.subr.bf16.mxu0 0
      %395 = vmatpush1.bf16.msra.mxu0 %v377
      %396 = vmatprep.subr.bf16.mxu0 0
      %397 = vmatpush1.bf16.msra.mxu0 %v378
      %398 = vmatprep.subr.bf16.mxu0 0
      %399 = vmatpush1.bf16.msra.mxu0 %v379
      %400 = vmatprep.subr.bf16.mxu0 0
      %401 = vmatpush1.bf16.msra.mxu0 %v380
      %402 = vmatprep.subr.bf16.mxu0 0
      %403 = vmatpush1.bf16.msra.mxu0 %v381
      %404 = vmatprep.subr.bf16.mxu0 0
      %405 = vmatpush1.bf16.msra.mxu0 %v382
      %406 = vmatprep.subr.bf16.mxu0 0
      %407 = vmatpush1.bf16.msra.mxu0 %v383
      %408 = vmatprep.subr.bf16.mxu0 0
      %409 = vmatpush1.bf16.msra.mxu0 0
      %410 = vmatprep.subr.bf16.mxu0 0
      %411 = vmatpush1.bf16.msra.mxu0 0
      %412 = vmatprep.subr.bf16.mxu0 0
      %413 = vmatpush1.bf16.msra.mxu0 0
      %414 = vmatprep.subr.bf16.mxu0 0
      %415 = vmatpush1.bf16.msra.mxu0 0
      %416 = vmatprep.subr.bf16.mxu0 0
      %417 = vmatpush1.bf16.msra.mxu0 0
      %418 = vmatprep.subr.bf16.mxu0 0
      %419 = vmatpush1.bf16.msra.mxu0 0
      %420 = vmatprep.subr.bf16.mxu0 0
      %421 = vmatpush1.bf16.msra.mxu0 0
      %422 = vmatprep.subr.bf16.mxu0 0
      %423 = vmatpush1.bf16.msra.mxu0 0
      %424 = vmatprep.mubr.bf16.mxu0 0
      %425 = vmatmul.mubr.bf16.gmra.mrb[0].mxu0 %v185
      %v426 = vpop.f32.mrb[0].mxu0
      %v427 = vadd.f32 %v339, %v426
      %v428 = vpop.f32.mrb[0].mxu0
      %v429 = vpop.f32.mrb[0].mxu0
      %v430 = vpop.f32.mrb[0].mxu0
      %431 = vdwg.mxu0
      %s432 = scalar_lea.vmem %s164, 4
      %v433 = vld [vmem:[%s432] sm:$0x1]
      %v436 = vunpack.c.l.s4 1983009808
      %v437 = vunpack.c.0.s8 %v436
      %v438 = vlaneseq
      %v439 = vshrl.u32 %v438, 7
      %v440 = vsub.s32 %v437, %v439
      %v441 = vrot.slane %v433, %v440
      %v442 = vrot.slane %v441, 7
      %v445 = vsel %vm182, %v172, %v442
      %s447 = scalar_lea.vmem %s1, 128
      %v448 = vld [vmem:[%s447] sm:$0xf]
      %v449 = vld [vmem:[%s447 + $0x4] sm:$0xf]
      %v450 = vld [vmem:[%s447 + $0x8] sm:$0xf]
      %v451 = vld [vmem:[%s447 + $0xc] sm:$0xf]
      %v452 = vld [vmem:[%s447 + $0x10] sm:$0xf]
      %v453 = vld [vmem:[%s447 + $0x14] sm:$0xf]
      %v454 = vld [vmem:[%s447 + $0x18] sm:$0xf]
      %v455 = vld [vmem:[%s447 + $0x1c] sm:$0xf]
      %v456 = vld [vmem:[%s447 + $0x20] sm:$0xf]
      %v457 = vld [vmem:[%s447 + $0x24] sm:$0xf]
      %v458 = vld [vmem:[%s447 + $0x28] sm:$0xf]
      %v459 = vld [vmem:[%s447 + $0x2c] sm:$0xf]
      %v460 = vld [vmem:[%s447 + $0x30] sm:$0xf]
      %v461 = vld [vmem:[%s447 + $0x34] sm:$0xf]
      %v462 = vld [vmem:[%s447 + $0x38] sm:$0xf]
      %v463 = vld [vmem:[%s447 + $0x3c] sm:$0xf]
      %v480 = vunpack.c.l.b16 %v448
      %v481 = vunpack.c.l.b16 %v449
      %v482 = vunpack.c.l.b16 %v450
      %v483 = vunpack.c.l.b16 %v451
      %v484 = vunpack.c.l.b16 %v452
      %v485 = vunpack.c.l.b16 %v453
      %v486 = vunpack.c.l.b16 %v454
      %v487 = vunpack.c.l.b16 %v455
      %v488 = vunpack.c.l.b16 %v456
      %v489 = vunpack.c.l.b16 %v457
      %v490 = vunpack.c.l.b16 %v458
      %v491 = vunpack.c.l.b16 %v459
      %v492 = vunpack.c.l.b16 %v460
      %v493 = vunpack.c.l.b16 %v461
      %v494 = vunpack.c.l.b16 %v462
      %v495 = vunpack.c.l.b16 %v463
      %v496 = vpack.c.b16 %v481, %v480
      %v497 = vpack.c.b16 %v483, %v482
      %v498 = vpack.c.b16 %v485, %v484
      %v499 = vpack.c.b16 %v487, %v486
      %v500 = vpack.c.b16 %v489, %v488
      %v501 = vpack.c.b16 %v491, %v490
      %v502 = vpack.c.b16 %v493, %v492
      %v503 = vpack.c.b16 %v495, %v494
      %512 = vmatprep.subr.bf16.mxu0 0
      %513 = vmatpush1.bf16.msra.mxu0 %v496
      %514 = vmatprep.subr.bf16.mxu0 0
      %515 = vmatpush1.bf16.msra.mxu0 %v497
      %516 = vmatprep.subr.bf16.mxu0 0
      %517 = vmatpush1.bf16.msra.mxu0 %v498
      %518 = vmatprep.subr.bf16.mxu0 0
      %519 = vmatpush1.bf16.msra.mxu0 %v499
      %520 = vmatprep.subr.bf16.mxu0 0
      %521 = vmatpush1.bf16.msra.mxu0 %v500
      %522 = vmatprep.subr.bf16.mxu0 0
      %523 = vmatpush1.bf16.msra.mxu0 %v501
      %524 = vmatprep.subr.bf16.mxu0 0
      %525 = vmatpush1.bf16.msra.mxu0 %v502
      %526 = vmatprep.subr.bf16.mxu0 0
      %527 = vmatpush1.bf16.msra.mxu0 %v503
      %528 = vmatprep.subr.bf16.mxu0 0
      %529 = vmatpush1.bf16.msra.mxu0 0
      %530 = vmatprep.subr.bf16.mxu0 0
      %531 = vmatpush1.bf16.msra.mxu0 0
      %532 = vmatprep.subr.bf16.mxu0 0
      %533 = vmatpush1.bf16.msra.mxu0 0
      %534 = vmatprep.subr.bf16.mxu0 0
      %535 = vmatpush1.bf16.msra.mxu0 0
      %536 = vmatprep.subr.bf16.mxu0 0
      %537 = vmatpush1.bf16.msra.mxu0 0
      %538 = vmatprep.subr.bf16.mxu0 0
      %539 = vmatpush1.bf16.msra.mxu0 0
      %540 = vmatprep.subr.bf16.mxu0 0
      %541 = vmatpush1.bf16.msra.mxu0 0
      %542 = vmatprep.subr.bf16.mxu0 0
      %543 = vmatpush1.bf16.msra.mxu0 0
      %544 = vmatprep.mubr.bf16.mxu0 0
      %545 = vmatmul.mubr.bf16.gmra.mrb[0].mxu0 %v445
      %v546 = vpop.f32.mrb[0].mxu0
      %v547 = vadd.f32 0.0, %v546
      %v548 = vpop.f32.mrb[0].mxu0
      %v549 = vpop.f32.mrb[0].mxu0
      %v550 = vpop.f32.mrb[0].mxu0
      %551 = vdwg.mxu0
      %v552 = vadd.f32 %v427, %v547
      %v553 = vld [vmem:[%s432] sm:$0x3]
      %v554 = vrot.slane %v232, 1
      %v555 = vor.u32 %v229, %v554
      %v558 = vunpack.c.l.s4 1983009808
      %v559 = vunpack.c.0.s8 %v558
      %v560 = vlaneseq
      %v561 = vshrl.u32 %v560, 7
      %v562 = vsub.s32 %v559, %v561
      %v563 = vrot.slane %v553, %v562
      %v565 = vshrl.u32 %v563, 16
      %v567 = vrot.slane %v565, 7
      %v568 = vshll.u32 %v563, 16
      %v570 = vor.u32 %v567, %v568
      %v573 = vsel %vm182, %v555, %v570
      %s575 = scalar_lea.vmem %s1, 192
      %v576 = vld [vmem:[%s575] sm:$0xf]
      %v577 = vld [vmem:[%s575 + $0x4] sm:$0xf]
      %v578 = vld [vmem:[%s575 + $0x8] sm:$0xf]
      %v579 = vld [vmem:[%s575 + $0xc] sm:$0xf]
      %v580 = vld [vmem:[%s575 + $0x10] sm:$0xf]
      %v581 = vld [vmem:[%s575 + $0x14] sm:$0xf]
      %v582 = vld [vmem:[%s575 + $0x18] sm:$0xf]
      %v583 = vld [vmem:[%s575 + $0x1c] sm:$0xf]
      %v584 = vld [vmem:[%s575 + $0x20] sm:$0xf]
      %v585 = vld [vmem:[%s575 + $0x24] sm:$0xf]
      %v586 = vld [vmem:[%s575 + $0x28] sm:$0xf]
      %v587 = vld [vmem:[%s575 + $0x2c] sm:$0xf]
      %v588 = vld [vmem:[%s575 + $0x30] sm:$0xf]
      %v589 = vld [vmem:[%s575 + $0x34] sm:$0xf]
      %v590 = vld [vmem:[%s575 + $0x38] sm:$0xf]
      %v591 = vld [vmem:[%s575 + $0x3c] sm:$0xf]
      %v608 = vunpack.c.l.b16 %v576
      %v609 = vunpack.c.l.b16 %v577
      %v610 = vunpack.c.l.b16 %v578
      %v611 = vunpack.c.l.b16 %v579
      %v612 = vunpack.c.l.b16 %v580
      %v613 = vunpack.c.l.b16 %v581
      %v614 = vunpack.c.l.b16 %v582
      %v615 = vunpack.c.l.b16 %v583
      %v616 = vunpack.c.l.b16 %v584
      %v617 = vunpack.c.l.b16 %v585
      %v618 = vunpack.c.l.b16 %v586
      %v619 = vunpack.c.l.b16 %v587
      %v620 = vunpack.c.l.b16 %v588
      %v621 = vunpack.c.l.b16 %v589
      %v622 = vunpack.c.l.b16 %v590
      %v623 = vunpack.c.l.b16 %v591
      %v624 = vpack.c.b16 %v609, %v608
      %v625 = vpack.c.b16 %v611, %v610
      %v626 = vpack.c.b16 %v613, %v612
      %v627 = vpack.c.b16 %v615, %v614
      %v628 = vpack.c.b16 %v617, %v616
      %v629 = vpack.c.b16 %v619, %v618
      %v630 = vpack.c.b16 %v621, %v620
      %v631 = vpack.c.b16 %v623, %v622
      %640 = vmatprep.subr.bf16.mxu0 0
      %641 = vmatpush1.bf16.msra.mxu0 %v624
      %642 = vmatprep.subr.bf16.mxu0 0
      %643 = vmatpush1.bf16.msra.mxu0 %v625
      %644 = vmatprep.subr.bf16.mxu0 0
      %645 = vmatpush1.bf16.msra.mxu0 %v626
      %646 = vmatprep.subr.bf16.mxu0 0
      %647 = vmatpush1.bf16.msra.mxu0 %v627
      %648 = vmatprep.subr.bf16.mxu0 0
      %649 = vmatpush1.bf16.msra.mxu0 %v628
      %650 = vmatprep.subr.bf16.mxu0 0
      %651 = vmatpush1.bf16.msra.mxu0 %v629
      %652 = vmatprep.subr.bf16.mxu0 0
      %653 = vmatpush1.bf16.msra.mxu0 %v630
      %654 = vmatprep.subr.bf16.mxu0 0
      %655 = vmatpush1.bf16.msra.mxu0 %v631
      %656 = vmatprep.subr.bf16.mxu0 0
      %657 = vmatpush1.bf16.msra.mxu0 0
      %658 = vmatprep.subr.bf16.mxu0 0
      %659 = vmatpush1.bf16.msra.mxu0 0
      %660 = vmatprep.subr.bf16.mxu0 0
      %661 = vmatpush1.bf16.msra.mxu0 0
      %662 = vmatprep.subr.bf16.mxu0 0
      %663 = vmatpush1.bf16.msra.mxu0 0
      %664 = vmatprep.subr.bf16.mxu0 0
      %665 = vmatpush1.bf16.msra.mxu0 0
      %666 = vmatprep.subr.bf16.mxu0 0
      %667 = vmatpush1.bf16.msra.mxu0 0
      %668 = vmatprep.subr.bf16.mxu0 0
      %669 = vmatpush1.bf16.msra.mxu0 0
      %670 = vmatprep.subr.bf16.mxu0 0
      %671 = vmatpush1.bf16.msra.mxu0 0
      %672 = vmatprep.mubr.bf16.mxu0 0
      %673 = vmatmul.mubr.bf16.gmra.mrb[0].mxu0 %v573
      %v674 = vpop.f32.mrb[0].mxu0
      %v675 = vadd.f32 0.0, %v674
      %v676 = vpop.f32.mrb[0].mxu0
      %v677 = vpop.f32.mrb[0].mxu0
      %v678 = vpop.f32.mrb[0].mxu0
      %679 = vdwg.mxu0
      %v680 = vadd.f32 %v552, %v675
      %v681 = vld [vmem:[%s2] sm:$0x1]
      %v683 = vlaneseq
      %v684 = vshrl.u32 %v683, 7
      %v685 = vsub.s32 0, %v684
      %v686 = vrot.slane %v681, %v685
      %v688 = vadd.f32 %v680, %v686
      %v689 = vmul.f32 %v688, 0.1
      %v690 = vmax.f32 %v688, %v689
      %v691 = vpack.c.bf16 %v690, %v690
      %vm692 = vcmask 517120
      %693 = vst.msk [vmem:[%s168] sm:$0x3] %vm692, %v691
      %p694 = scmp.lt.s32.totalorder %s14, 1
      %s695 = scalar_select %p694, %s14, 1
      %s696 = smul.addr %s695, 2
      %s697 = scalar_lea.vmem %s3, %s696
      // Predicated region
      $region33: #{discriminator_forward.8} parent=31 // pred_check
        %p698 = pneg %p100
      $region34: #{discriminator_forward.8} parent=31 // pred_check_branch
        %700 = sbr.rel (%p698) target = $region36
      $region35: #{discriminator_forward.8} parent=31 // pred_region
        _
      $region36: #{discriminator_forward.8} parent=31 // pred_fallthru
        _
    $region32: #{discriminator_forward.8} parent=5 // pred_fallthru
      _
    %p701 = scmp.le.s32.totalorder 2, %s9
    // Predicated region
    $region37: #{discriminator_forward.8} parent=5 // pred_check
      %p702 = pneg %p701
    $region38: #{discriminator_forward.8} parent=5 // pred_check_branch
      %704 = sbr.rel (%p702) target = $region40
    $region39: #{discriminator_forward.8} parent=5 // pred_region
      %s705 = ssub.s32 %s9, 2
      // Predicated region
      $region41: #{discriminator_forward.8} parent=39 // pred_check
        %p706 = pneg %p106
      $region42: #{discriminator_forward.8} parent=39 // pred_check_branch
        %708 = sbr.rel (%p706) target = $region44
      $region43: #{discriminator_forward.8} parent=39 // pred_region
        %p709 = scmp.lt.s32.totalorder %s15, 1
        %s710 = scalar_select %p709, %s15, 1
        %s711 = smul.addr %s710, 2
        %s712 = scalar_lea.vmem %s3, %s711
      $region44: #{discriminator_forward.8} parent=39 // pred_fallthru
        _
    $region40: #{discriminator_forward.8} parent=5 // pred_fallthru
      _
  $region6: #{discriminator_forward.8} parent=0 // loop_footer
    %s13 = sadd.s32 1, %s9
  $region7: #{discriminator_forward.8} parent=0 // loop_footer_branch
    %8 = sbr.rel target = $region3
  $region8: #{discriminator_forward.8} parent=0 // loop_exit
    _

</llo_original>
